<compile_context>
chip_gen: v7x
topology: tpu7x:2x2x1
jax: 0.10.0
libtpu: 0.0.40
codegen_flags: <defaults>
</compile_context>

<pallas_src>
import functools

import jax
import jax.numpy as jnp
from jax.experimental import pallas as pl
from jax.experimental.pallas import tpu as pltpu

C_IN = 32
C_OUT = 64
C_HALF = 32


def residual_block_kernel(x_ref, z_ref, w12_ref, b12_ref, w3a_ref, b3_ref,
                          out_ref, *, H, W, d):
    HW = H * W
    K = 9 * C_IN + 9                                  # 297

    xt = x_ref[0]                                     # (H+2d, W+2d, 32)
    zt = z_ref[0]                                     # (H+2,  W+2)

    # ---- Fused im2col patch (HW, 297).
    #   cols [0:288)  : x taps, order (ky, kx, cin)  (matches w1.reshape(288,64))
    #   cols [288:297): z taps, order (ky, kx)        (matches w2.reshape(9,64))
    parts = []
    for ky in range(3):
        rows = xt[ky * d: ky * d + H]                 # (H, W+2d, 32)
        for kx in range(3):
            parts.append(rows[:, kx * d: kx * d + W, :])          # (H, W, 32)
    for ky in range(3):
        for kx in range(3):
            parts.append(zt[ky: ky + H, kx: kx + W][..., None])   # (H, W, 1)
    patch = jnp.concatenate(parts, axis=-1).reshape(HW, K)        # (HW, 297)

    # ---- b1(x) + b2(z) in ONE MXU matmul; fused bias (b1 + b2).
    acc = jnp.dot(patch, w12_ref[...],
                  preferred_element_type=jnp.float32) + b12_ref[...]

    # ---- gate: chunks of (b1(x)+b2(z)) are exactly (a0+c0, a1+c1).
    g = jax.nn.sigmoid(acc[:, :C_HALF]) * jnp.tanh(acc[:, C_HALF:])

    # ---- 1x1 conv + half-residual, fused into one matmul.
    # Center tap (ky=1, kx=1) of the patch == x interior; lane offset 128 is
    # vreg-aligned so this slice is free.
    xres = patch[:, 4 * C_IN: 5 * C_IN]               # (HW, 32)
    lhs = jnp.concatenate([g, xres], axis=-1)         # (HW, 64)
    # w3a = [[w3]; [I_32 | 0]]  =>  lhs @ w3a = g @ w3 + [xres, 0]
    out = jnp.dot(lhs, w3a_ref[...],
                  preferred_element_type=jnp.float32) + b3_ref[...]

    # ---- lane-dense store: (64, HW) with HW a multiple of 128.
    out_ref[0] = jnp.transpose(out)


def residual_block(x_nchw, z_nchw, w1, b1, w2, b2, w3, b3, *, dilation):
    """NCHW in / NCHW out, matching the PyTorch module's forward."""
    N, _, H, W = x_nchw.shape
    d = dilation
    HW = H * W

    # x: transpose to NHWC (channels on lanes for the im2col matmul), pad the
    # halo ONCE; the kernel block is the whole padded frame -> no per-tile
    # halo duplication and no x_tiles copy in HBM.
    x_nhwc = jnp.transpose(x_nchw, (0, 2, 3, 1))
    xpad = jnp.pad(x_nhwc, ((0, 0), (d, d), (d, d), (0, 0)))

    # z: squeeze the 1-wide channel dim and pad by 1; the kernel never sees a
    # 1-wide or 9-wide trailing dim and no im2col copy of z hits HBM.
    zpad = jnp.pad(z_nchw[:, 0], ((0, 0), (1, 1), (1, 1)))

    # Combined im2col RHS: rows [0:288) = w1 flattened (ky,kx,cin),
    # rows [288:297) = w2 flattened (ky,kx). Bias b1+b2 fused.
    w12 = jnp.concatenate([w1.reshape(9 * C_IN, C_OUT),
                           w2.reshape(9, C_OUT)], axis=0)          # (297, 64)
    b12 = (b1 + b2).reshape(1, C_OUT)

    # 1x1-conv RHS augmented with an identity block so the half-residual
    # (out[:, :32] += x_center) rides the same MXU pass.
    eye_pad = jnp.concatenate([jnp.eye(C_HALF, dtype=w3.dtype),
                               jnp.zeros((C_HALF, C_HALF), w3.dtype)], axis=1)
    w3a = jnp.concatenate([w3, eye_pad], axis=0)                   # (64, 64)
    b3r = b3.reshape(1, C_OUT)

    kernel = functools.partial(residual_block_kernel, H=H, W=W, d=d)

    out = pl.pallas_call(
        kernel,
        out_shape=jax.ShapeDtypeStruct((N, C_OUT, HW), jnp.float32),
        grid_spec=pltpu.PrefetchScalarGridSpec(
            num_scalar_prefetch=0,
            grid=(N,),
            in_specs=[
                pl.BlockSpec((1, H + 2 * d, W + 2 * d, C_IN),
                             lambda i: (i, 0, 0, 0)),
                pl.BlockSpec((1, H + 2, W + 2), lambda i: (i, 0, 0)),
                pl.BlockSpec((9 * C_IN + 9, C_OUT), lambda i: (0, 0)),
                pl.BlockSpec((1, C_OUT), lambda i: (0, 0)),
                pl.BlockSpec((C_OUT, C_OUT), lambda i: (0, 0)),
                pl.BlockSpec((1, C_OUT), lambda i: (0, 0)),
            ],
            out_specs=pl.BlockSpec((1, C_OUT, HW), lambda i: (i, 0, 0)),
        ),
        compiler_params=pltpu.CompilerParams(
            dimension_semantics=("parallel",),
            # Per-step footprint is < 1 MiB; 32 MiB fits the scoped default on
            # v5e/v6e/v7x with ample headroom.
            vmem_limit_bytes=32 * 1024 * 1024,
        ),
    )(xpad, zpad, w12, b12, w3a, b3r)

    out = out.reshape(N, C_OUT, H, W)                  # NCHW, channels fused
    # NOTE: the channel split matches the module's return signature; a
    # consumer that accepts the fused (N, 64, H, W) tensor should skip it.
    return out[:, :C_HALF], out[:, C_HALF:]


def reference(x_nchw, z_nchw, w1, b1, w2, b2, w3, b3, *, dilation):
    """Pure-JAX reference mirroring the PyTorch forward (NCHW in/out)."""
    x = jnp.transpose(x_nchw, (0, 2, 3, 1))
    z = jnp.transpose(z_nchw, (0, 2, 3, 1))

    def conv(inp, w, pad, dil):
        return jax.lax.conv_general_dilated(
            inp, w, window_strides=(1, 1),
            padding=[(pad, pad), (pad, pad)],
            rhs_dilation=(dil, dil),
            dimension_numbers=("NHWC", "HWIO", "NHWC"),
            precision=jax.lax.Precision.HIGHEST)

    h1 = conv(x, w1, dilation, dilation) + b1
    h2 = conv(z, w2, 1, 1) + b2
    g = (jax.nn.sigmoid(h1[..., :C_HALF] + h2[..., :C_HALF])
         * jnp.tanh(h1[..., C_HALF:] + h2[..., C_HALF:]))
    out = jnp.einsum("nhwc,co->nhwo", g, w3,
                     precision=jax.lax.Precision.HIGHEST) + b3
    r0 = out[..., :C_HALF] + x
    r1 = out[..., C_HALF:]
    to_nchw = lambda t: jnp.transpose(t, (0, 3, 1, 2))
    return to_nchw(r0), to_nchw(r1)


if __name__ == "__main__":
    N, H, W = 2, 16, 16
    dilation = 2

    key = jax.random.PRNGKey(0)
    kx, kz, k1, k2, k3, kb1, kb2, kb3 = jax.random.split(key, 8)

    # PyTorch-convention inputs (NCHW), as the module expects.
    x_nchw = jax.random.normal(kx, (N, C_IN, H, W), dtype=jnp.float32)
    z_nchw = jax.random.normal(kz, (N, 1, H, W), dtype=jnp.float32)

    # Deterministic synthetic parameters (shapes match nn.Conv2d in __init__,
    # in HWIO / (cin, cout) form).
    w1 = 0.05 * jax.random.normal(k1, (3, 3, C_IN, C_OUT), dtype=jnp.float32)
    w2 = 0.05 * jax.random.normal(k2, (3, 3, 1, C_OUT), dtype=jnp.float32)
    w3 = 0.05 * jax.random.normal(k3, (C_IN, C_OUT), dtype=jnp.float32)
    b1 = 0.1 * jax.random.normal(kb1, (C_OUT,), dtype=jnp.float32)
    b2 = 0.1 * jax.random.normal(kb2, (C_OUT,), dtype=jnp.float32)
    b3 = 0.1 * jax.random.normal(kb3, (C_OUT,), dtype=jnp.float32)

    out0, out1 = residual_block(x_nchw, z_nchw, w1, b1, w2, b2, w3, b3,
                                dilation=dilation)
    jax.block_until_ready((out0, out1))

    ref0, ref1 = reference(x_nchw, z_nchw, w1, b1, w2, b2, w3, b3,
                           dilation=dilation)
    err0 = float(jnp.max(jnp.abs(out0 - ref0)))
    err1 = float(jnp.max(jnp.abs(out1 - ref1)))
    assert jnp.allclose(out0, ref0, atol=2e-4, rtol=1e-4), err0
    assert jnp.allclose(out1, ref1, atol=2e-4, rtol=1e-4), err1

    print("KERNEL_OK")
</pallas_src>

<mosaic_0001>
module attributes {stable_mosaic.version = 11 : i64} {
  func.func @residual_block_kernel(%arg0: i32, %arg1: memref<1x20x20x32xf32, #tpu.memory_space<vmem>>, %arg2: memref<1x18x18xf32, #tpu.memory_space<vmem>>, %arg3: memref<297x64xf32, #tpu.memory_space<vmem>>, %arg4: memref<1x64xf32, #tpu.memory_space<vmem>>, %arg5: memref<64x64xf32, #tpu.memory_space<vmem>>, %arg6: memref<1x64xf32, #tpu.memory_space<vmem>>, %arg7: memref<1x64x256xf32, #tpu.memory_space<vmem>>) attributes {dimension_semantics = [#tpu.dimension_semantics<parallel>], iteration_bounds = array<i64: 2>, scalar_prefetch = 0 : i64, scratch_operands = 0 : i64, tpu.core_type = #tpu.core_type<tc>, window_params = [{transform_indices = @transform_0, window_bounds = array<i64: 1, 20, 20, 32>}, {transform_indices = @transform_1, window_bounds = array<i64: 1, 18, 18>}, {pipeline_mode = #tpu.pipeline_mode<synchronous>, transform_indices = @transform_2, window_bounds = array<i64: 297, 64>}, {pipeline_mode = #tpu.pipeline_mode<synchronous>, transform_indices = @transform_3, window_bounds = array<i64: 1, 64>}, {pipeline_mode = #tpu.pipeline_mode<synchronous>, transform_indices = @transform_4, window_bounds = array<i64: 64, 64>}, {pipeline_mode = #tpu.pipeline_mode<synchronous>, transform_indices = @transform_5, window_bounds = array<i64: 1, 64>}, {transform_indices = @transform_6, window_bounds = array<i64: 1, 64, 256>}]} {
    %c0 = arith.constant 0 : index
    %c0_0 = arith.constant 0 : index
    %c0_1 = arith.constant 0 : index
    %c0_2 = arith.constant 0 : index
    %0 = vector.load %arg1[%c0, %c0_0, %c0_1, %c0_2] : memref<1x20x20x32xf32, #tpu.memory_space<vmem>>, vector<1x20x20x32xf32>
    %1 = vector.shape_cast %0 : vector<1x20x20x32xf32> to vector<20x20x32xf32>
    %c0_3 = arith.constant 0 : index
    %c0_4 = arith.constant 0 : index
    %c0_5 = arith.constant 0 : index
    %2 = vector.load %arg2[%c0_3, %c0_4, %c0_5] : memref<1x18x18xf32, #tpu.memory_space<vmem>>, vector<1x18x18xf32>
    %3 = vector.shape_cast %2 : vector<1x18x18xf32> to vector<18x18xf32>
    %4 = vector.extract_strided_slice %1 {offsets = [0, 0, 0], sizes = [16, 20, 32], strides = [1, 1, 1]} : vector<20x20x32xf32> to vector<16x20x32xf32>
    %5 = vector.extract_strided_slice %4 {offsets = [0, 0, 0], sizes = [16, 16, 32], strides = [1, 1, 1]} : vector<16x20x32xf32> to vector<16x16x32xf32>
    %6 = vector.extract_strided_slice %4 {offsets = [0, 2, 0], sizes = [16, 16, 32], strides = [1, 1, 1]} : vector<16x20x32xf32> to vector<16x16x32xf32>
    %7 = vector.extract_strided_slice %4 {offsets = [0, 4, 0], sizes = [16, 16, 32], strides = [1, 1, 1]} : vector<16x20x32xf32> to vector<16x16x32xf32>
    %8 = vector.extract_strided_slice %1 {offsets = [2, 0, 0], sizes = [16, 20, 32], strides = [1, 1, 1]} : vector<20x20x32xf32> to vector<16x20x32xf32>
    %9 = vector.extract_strided_slice %8 {offsets = [0, 0, 0], sizes = [16, 16, 32], strides = [1, 1, 1]} : vector<16x20x32xf32> to vector<16x16x32xf32>
    %10 = vector.extract_strided_slice %8 {offsets = [0, 2, 0], sizes = [16, 16, 32], strides = [1, 1, 1]} : vector<16x20x32xf32> to vector<16x16x32xf32>
    %11 = vector.extract_strided_slice %8 {offsets = [0, 4, 0], sizes = [16, 16, 32], strides = [1, 1, 1]} : vector<16x20x32xf32> to vector<16x16x32xf32>
    %12 = vector.extract_strided_slice %1 {offsets = [4, 0, 0], sizes = [16, 20, 32], strides = [1, 1, 1]} : vector<20x20x32xf32> to vector<16x20x32xf32>
    %13 = vector.extract_strided_slice %12 {offsets = [0, 0, 0], sizes = [16, 16, 32], strides = [1, 1, 1]} : vector<16x20x32xf32> to vector<16x16x32xf32>
    %14 = vector.extract_strided_slice %12 {offsets = [0, 2, 0], sizes = [16, 16, 32], strides = [1, 1, 1]} : vector<16x20x32xf32> to vector<16x16x32xf32>
    %15 = vector.extract_strided_slice %12 {offsets = [0, 4, 0], sizes = [16, 16, 32], strides = [1, 1, 1]} : vector<16x20x32xf32> to vector<16x16x32xf32>
    %16 = vector.extract_strided_slice %3 {offsets = [0, 0], sizes = [16, 16], strides = [1, 1]} : vector<18x18xf32> to vector<16x16xf32>
    %17 = vector.shape_cast %16 : vector<16x16xf32> to vector<16x16x1xf32>
    %18 = vector.extract_strided_slice %3 {offsets = [0, 1], sizes = [16, 16], strides = [1, 1]} : vector<18x18xf32> to vector<16x16xf32>
    %19 = vector.shape_cast %18 : vector<16x16xf32> to vector<16x16x1xf32>
    %20 = vector.extract_strided_slice %3 {offsets = [0, 2], sizes = [16, 16], strides = [1, 1]} : vector<18x18xf32> to vector<16x16xf32>
    %21 = vector.shape_cast %20 : vector<16x16xf32> to vector<16x16x1xf32>
    %22 = vector.extract_strided_slice %3 {offsets = [1, 0], sizes = [16, 16], strides = [1, 1]} : vector<18x18xf32> to vector<16x16xf32>
    %23 = vector.shape_cast %22 : vector<16x16xf32> to vector<16x16x1xf32>
    %24 = vector.extract_strided_slice %3 {offsets = [1, 1], sizes = [16, 16], strides = [1, 1]} : vector<18x18xf32> to vector<16x16xf32>
    %25 = vector.shape_cast %24 : vector<16x16xf32> to vector<16x16x1xf32>
    %26 = vector.extract_strided_slice %3 {offsets = [1, 2], sizes = [16, 16], strides = [1, 1]} : vector<18x18xf32> to vector<16x16xf32>
    %27 = vector.shape_cast %26 : vector<16x16xf32> to vector<16x16x1xf32>
    %28 = vector.extract_strided_slice %3 {offsets = [2, 0], sizes = [16, 16], strides = [1, 1]} : vector<18x18xf32> to vector<16x16xf32>
    %29 = vector.shape_cast %28 : vector<16x16xf32> to vector<16x16x1xf32>
    %30 = vector.extract_strided_slice %3 {offsets = [2, 1], sizes = [16, 16], strides = [1, 1]} : vector<18x18xf32> to vector<16x16xf32>
    %31 = vector.shape_cast %30 : vector<16x16xf32> to vector<16x16x1xf32>
    %32 = vector.extract_strided_slice %3 {offsets = [2, 2], sizes = [16, 16], strides = [1, 1]} : vector<18x18xf32> to vector<16x16xf32>
    %33 = vector.shape_cast %32 : vector<16x16xf32> to vector<16x16x1xf32>
    %34 = tpu.concatenate %5, %6, %7, %9, %10, %11, %13, %14, %15, %17, %19, %21, %23, %25, %27, %29 in 2 : vector<16x16x32xf32>, vector<16x16x32xf32>, vector<16x16x32xf32>, vector<16x16x32xf32>, vector<16x16x32xf32>, vector<16x16x32xf32>, vector<16x16x32xf32>, vector<16x16x32xf32>, vector<16x16x32xf32>, vector<16x16x1xf32>, vector<16x16x1xf32>, vector<16x16x1xf32>, vector<16x16x1xf32>, vector<16x16x1xf32>, vector<16x16x1xf32>, vector<16x16x1xf32> -> vector<16x16x295xf32>
    %35 = tpu.concatenate %31, %33 in 2 : vector<16x16x1xf32>, vector<16x16x1xf32> -> vector<16x16x2xf32>
    %36 = tpu.concatenate %34, %35 in 2 : vector<16x16x295xf32>, vector<16x16x2xf32> -> vector<16x16x297xf32>
    %37 = vector.shape_cast %36 : vector<16x16x297xf32> to vector<256x297xf32>
    %c0_6 = arith.constant 0 : index
    %c0_7 = arith.constant 0 : index
    %38 = vector.load %arg3[%c0_6, %c0_7] : memref<297x64xf32, #tpu.memory_space<vmem>>, vector<297x64xf32>
    %cst = arith.constant dense<0.000000e+00> : vector<256x64xf32>
    %39 = tpu.matmul %37, %38, %cst {dimension_numbers = #tpu.dot_dimension_numbers<[1], [0], [0], [1], [0, 0, 1, 1], [], []>} : vector<256x297xf32>, vector<297x64xf32>, vector<256x64xf32> -> vector<256x64xf32>
    %c0_8 = arith.constant 0 : index
    %c0_9 = arith.constant 0 : index
    %40 = vector.load %arg4[%c0_8, %c0_9] : memref<1x64xf32, #tpu.memory_space<vmem>>, vector<1x64xf32>
    %41 = vector.broadcast %40 : vector<1x64xf32> to vector<256x64xf32>
    %42 = arith.addf %39, %41 : vector<256x64xf32>
    %43 = vector.extract_strided_slice %42 {offsets = [0, 0], sizes = [256, 32], strides = [1, 1]} : vector<256x64xf32> to vector<256x32xf32>
    %44 = arith.negf %43 : vector<256x32xf32>
    %45 = math.exp %44 : vector<256x32xf32>
    %cst_10 = arith.constant 1.000000e+00 : f32
    %46 = vector.broadcast %cst_10 : f32 to vector<256x32xf32>
    %47 = arith.addf %46, %45 : vector<256x32xf32>
    %48 = arith.divf %46, %47 : vector<256x32xf32>
    %49 = vector.extract_strided_slice %42 {offsets = [0, 32], sizes = [256, 32], strides = [1, 1]} : vector<256x64xf32> to vector<256x32xf32>
    %50 = math.tanh %49 : vector<256x32xf32>
    %51 = arith.mulf %48, %50 : vector<256x32xf32>
    %52 = vector.extract_strided_slice %37 {offsets = [0, 128], sizes = [256, 32], strides = [1, 1]} : vector<256x297xf32> to vector<256x32xf32>
    %53 = tpu.concatenate %51, %52 in 1 : vector<256x32xf32>, vector<256x32xf32> -> vector<256x64xf32>
    %c0_11 = arith.constant 0 : index
    %c0_12 = arith.constant 0 : index
    %54 = vector.load %arg5[%c0_11, %c0_12] : memref<64x64xf32, #tpu.memory_space<vmem>>, vector<64x64xf32>
    %cst_13 = arith.constant dense<0.000000e+00> : vector<256x64xf32>
    %55 = tpu.matmul %53, %54, %cst_13 {dimension_numbers = #tpu.dot_dimension_numbers<[1], [0], [0], [1], [0, 0, 1, 1], [], []>} : vector<256x64xf32>, vector<64x64xf32>, vector<256x64xf32> -> vector<256x64xf32>
    %c0_14 = arith.constant 0 : index
    %c0_15 = arith.constant 0 : index
    %56 = vector.load %arg6[%c0_14, %c0_15] : memref<1x64xf32, #tpu.memory_space<vmem>>, vector<1x64xf32>
    %57 = vector.broadcast %56 : vector<1x64xf32> to vector<256x64xf32>
    %58 = arith.addf %55, %57 : vector<256x64xf32>
    %59 = tpu.transpose %58, [1, 0] : vector<256x64xf32> -> vector<64x256xf32>
    %c0_16 = arith.constant 0 : index
    %c0_17 = arith.constant 0 : index
    %c0_18 = arith.constant 0 : index
    %60 = vector.load %arg7[%c0_16, %c0_17, %c0_18] : memref<1x64x256xf32, #tpu.memory_space<vmem>>, vector<1x64x256xf32>
    %61 = vector.shape_cast %60 : vector<1x64x256xf32> to vector<64x256xf32>
    %62 = vector.shape_cast %59 : vector<64x256xf32> to vector<1x64x256xf32>
    tpu.vector_store %arg7[%c0_16, %c0_17, %c0_18], %62 {strides = array<i32>} : memref<1x64x256xf32, #tpu.memory_space<vmem>>, vector<1x64x256xf32>,
    return
  }
  func.func @transform_0(%arg0: i32) -> (i32, i32, i32, i32) {
    %c0_i32 = arith.constant 0 : i32
    %c0_i32_0 = arith.constant 0 : i32
    %c0_i32_1 = arith.constant 0 : i32
    %c0_i32_2 = arith.constant 0 : i32
    return %arg0, %c0_i32, %c0_i32_0, %c0_i32_1 : i32, i32, i32, i32
  }
  func.func @transform_1(%arg0: i32) -> (i32, i32, i32) {
    %c0_i32 = arith.constant 0 : i32
    %c0_i32_0 = arith.constant 0 : i32
    %c0_i32_1 = arith.constant 0 : i32
    return %arg0, %c0_i32, %c0_i32_0 : i32, i32, i32
  }
  func.func @transform_2(%arg0: i32) -> (i32, i32) {
    %c0_i32 = arith.constant 0 : i32
    %c0_i32_0 = arith.constant 0 : i32
    %c0_i32_1 = arith.constant 0 : i32
    return %c0_i32, %c0_i32_0 : i32, i32
  }
  func.func @transform_3(%arg0: i32) -> (i32, i32) {
    %c0_i32 = arith.constant 0 : i32
    %c0_i32_0 = arith.constant 0 : i32
    %c0_i32_1 = arith.constant 0 : i32
    return %c0_i32, %c0_i32_0 : i32, i32
  }
  func.func @transform_4(%arg0: i32) -> (i32, i32) {
    %c0_i32 = arith.constant 0 : i32
    %c0_i32_0 = arith.constant 0 : i32
    %c0_i32_1 = arith.constant 0 : i32
    return %c0_i32, %c0_i32_0 : i32, i32
  }
  func.func @transform_5(%arg0: i32) -> (i32, i32) {
    %c0_i32 = arith.constant 0 : i32
    %c0_i32_0 = arith.constant 0 : i32
    %c0_i32_1 = arith.constant 0 : i32
    return %c0_i32, %c0_i32_0 : i32, i32
  }
  func.func @transform_6(%arg0: i32) -> (i32, i32, i32) {
    %c0_i32 = arith.constant 0 : i32
    %c0_i32_0 = arith.constant 0 : i32
    %c0_i32_1 = arith.constant 0 : i32
    return %arg0, %c0_i32, %c0_i32_0 : i32, i32, i32
  }
}

</mosaic_0001>

<llo_original>
// kernel: tpu_custom_call.1
$region0: #{tpu_custom_call.1}
  #allocation0 [shape = 'u32[]', space=smem, size = 0x4, offset = 0x4, fixed_abs, tag = 'smem constant byte address 0x4 - core index']
  #allocation1 [shape = 'u32[144,128]{1,0:T(1,128)}', space=vmem, size = 0x12000, scoped, tag = 'internal scratch']
  %s0 = inlined_call_operand.vmem [shape: f32[2,20,20,32], index: 0, kind: input, shape index: {}]
  %s1 = inlined_call_operand.vmem [shape: f32[2,18,18], index: 1, kind: input, shape index: {}]
  %s2 = inlined_call_operand.vmem [shape: f32[297,64], index: 2, kind: input, shape index: {}]
  %s3 = inlined_call_operand.vmem [shape: f32[1,64], index: 3, kind: input, shape index: {}]
  %s4 = inlined_call_operand.vmem [shape: f32[64,64], index: 4, kind: input, shape index: {}]
  %s5 = inlined_call_operand.vmem [shape: f32[1,64], index: 5, kind: input, shape index: {}]
  %s6 = inlined_call_operand.hbm [shape: f32[2,64,256], index: 6, kind: output, shape index: {}]
  %s7 = sld [smem:[#allocation0]]
  $region57: #{tpu_custom_call.1} parent=0
    _
  %s9 = ssub.s32 1, %s7
  %s10 = scalar_select 0, %s9, %s7
  $region1: #{tpu_custom_call.1} parent=0
    #allocation2 [shape = 'u8[131072]{0}', space=vmem, size = 0x20000, scoped, tag = 'output window, operand 0']
    #allocation3 [shape = 's32[2]{0}', space=sflag, size = 0x8, scoped, tag = 'scoped memory for tpu_custom_call.1']
    %11 = vsyncpa [#allocation3], 0
    %s12 = scalar_lea.sflag [#allocation3], 1
    %13 = vsyncpa %s12, 0
    loop: start=0, step=1, limit=4
    $region2: #{tpu_custom_call.1} parent=1 // loop_pre_header
      _
    $region3: #{tpu_custom_call.1} parent=1 // loop_header
      %s15 = sphi 0, %s19
      %p16 = scmp.ge.s32.totalorder %s15, 4
      %s25 = sphi 0, %s27
      %s28 = sphi 0, %s25
      %s29 = sphi 0, %s28
      %s45 = sphi 0, %s29
      %s51 = sphi 0, %s53
      %s54 = sphi 0, %s51
      %s55 = sphi 0, %s54
      %s71 = sphi 0, %s55
      %s75 = sphi 0, %s75
      %s77 = sphi 0, %s75
      %s78 = sphi 0, %s77
      %s92 = sphi 0, %s78
      %s96 = sphi 0, %s96
      %s98 = sphi 0, %s96
      %s99 = sphi 0, %s98
      %s113 = sphi 0, %s99
      %s117 = sphi 0, %s117
      %s119 = sphi 0, %s117
      %s120 = sphi 0, %s119
      %s134 = sphi 0, %s120
      %s138 = sphi 0, %s138
      %s140 = sphi 0, %s138
      %s141 = sphi 0, %s140
      %s155 = sphi 0, %s141
      %s161 = sphi 0, %s163
      %s164 = sphi 0, %s161
      %s165 = sphi 0, %s164
      %s181 = sphi 0, %s165
    $region4: #{tpu_custom_call.1} parent=1 // loop_header_branch
      %18 = sbr.rel (%p16) target = $region8
    $region5: #{tpu_custom_call.1} parent=1 // loop_body
      %s20 = ssub.s32 %s15, 1
      %s21 = ssub.s32 %s15, 2
      %s22 = sadd.s32 %s15, 1
      %s23 = ssub.s32 %s15, %s22
      %p24 = scmp.eq.s32.totalorder %s23, 0
      %s26 = sadd.s32 %s25, 1
      %s27 = scalar_select %p24, %s25, %s26
      %p30 = pneg %p24
      %p31 = scmp.eq.s32.totalorder %s15, 1
      %p32 = por %p30, %p31
      %p33 = scmp.ne.s32.totalorder %s25, %s28
      %p34 = scmp.eq.s32.totalorder %s15, 0
      %p35 = por %p33, %p34
      %p36 = scmp.ne.s32.totalorder %s25, %s28
      %p37 = scmp.eq.s32.totalorder %s20, 1
      %p38 = por %p36, %p37
      %p39 = scmp.ne.s32.totalorder %s28, %s29
      %p40 = scmp.eq.s32.totalorder %s20, 0
      %p41 = por %p39, %p40
      %p42 = scmp.ne.s32.totalorder %s28, %s29
      %p43 = scmp.eq.s32.totalorder %s21, 1
      %p44 = por %p42, %p43
      %p46 = scmp.ne.s32.totalorder %s29, %s45
      %p47 = scmp.eq.s32.totalorder %s21, 0
      %p48 = por %p46, %p47
      %s49 = ssub.s32 %s15, %s22
      %p50 = scmp.eq.s32.totalorder %s49, 0
      %s52 = sadd.s32 %s51, 1
      %s53 = scalar_select %p50, %s51, %s52
      %p56 = pneg %p50
      %p57 = scmp.eq.s32.totalorder %s15, 1
      %p58 = por %p56, %p57
      %p59 = scmp.ne.s32.totalorder %s51, %s54
      %p60 = scmp.eq.s32.totalorder %s15, 0
      %p61 = por %p59, %p60
      %p62 = scmp.ne.s32.totalorder %s51, %s54
      %p63 = scmp.eq.s32.totalorder %s20, 1
      %p64 = por %p62, %p63
      %p65 = scmp.ne.s32.totalorder %s54, %s55
      %p66 = scmp.eq.s32.totalorder %s20, 0
      %p67 = por %p65, %p66
      %p68 = scmp.ne.s32.totalorder %s54, %s55
      %p69 = scmp.eq.s32.totalorder %s21, 1
      %p70 = por %p68, %p69
      %p72 = scmp.ne.s32.totalorder %s55, %s71
      %p73 = scmp.eq.s32.totalorder %s21, 0
      %p74 = por %p72, %p73
      %s76 = sadd.s32 %s75, 1
      %p79 = scmp.eq.s32.totalorder %s15, 1
      %p80 = scmp.ne.s32.totalorder %s75, %s77
      %p81 = scmp.eq.s32.totalorder %s15, 0
      %p82 = por %p80, %p81
      %p83 = scmp.ne.s32.totalorder %s75, %s77
      %p84 = scmp.eq.s32.totalorder %s20, 1
      %p85 = por %p83, %p84
      %p86 = scmp.ne.s32.totalorder %s77, %s78
      %p87 = scmp.eq.s32.totalorder %s20, 0
      %p88 = por %p86, %p87
      %p89 = scmp.ne.s32.totalorder %s77, %s78
      %p90 = scmp.eq.s32.totalorder %s21, 1
      %p91 = por %p89, %p90
      %p93 = scmp.ne.s32.totalorder %s78, %s92
      %p94 = scmp.eq.s32.totalorder %s21, 0
      %p95 = por %p93, %p94
      %s97 = sadd.s32 %s96, 1
      %p100 = scmp.eq.s32.totalorder %s15, 1
      %p101 = scmp.ne.s32.totalorder %s96, %s98
      %p102 = scmp.eq.s32.totalorder %s15, 0
      %p103 = por %p101, %p102
      %p104 = scmp.ne.s32.totalorder %s96, %s98
      %p105 = scmp.eq.s32.totalorder %s20, 1
      %p106 = por %p104, %p105
      %p107 = scmp.ne.s32.totalorder %s98, %s99
      %p108 = scmp.eq.s32.totalorder %s20, 0
      %p109 = por %p107, %p108
      %p110 = scmp.ne.s32.totalorder %s98, %s99
      %p111 = scmp.eq.s32.totalorder %s21, 1
      %p112 = por %p110, %p111
      %p114 = scmp.ne.s32.totalorder %s99, %s113
      %p115 = scmp.eq.s32.totalorder %s21, 0
      %p116 = por %p114, %p115
      %s118 = sadd.s32 %s117, 1
      %p121 = scmp.eq.s32.totalorder %s15, 1
      %p122 = scmp.ne.s32.totalorder %s117, %s119
      %p123 = scmp.eq.s32.totalorder %s15, 0
      %p124 = por %p122, %p123
      %p125 = scmp.ne.s32.totalorder %s117, %s119
      %p126 = scmp.eq.s32.totalorder %s20, 1
      %p127 = por %p125, %p126
      %p128 = scmp.ne.s32.totalorder %s119, %s120
      %p129 = scmp.eq.s32.totalorder %s20, 0
      %p130 = por %p128, %p129
      %p131 = scmp.ne.s32.totalorder %s119, %s120
      %p132 = scmp.eq.s32.totalorder %s21, 1
      %p133 = por %p131, %p132
      %p135 = scmp.ne.s32.totalorder %s120, %s134
      %p136 = scmp.eq.s32.totalorder %s21, 0
      %p137 = por %p135, %p136
      %s139 = sadd.s32 %s138, 1
      %p142 = scmp.eq.s32.totalorder %s15, 1
      %p143 = scmp.ne.s32.totalorder %s138, %s140
      %p144 = scmp.eq.s32.totalorder %s15, 0
      %p145 = por %p143, %p144
      %p146 = scmp.ne.s32.totalorder %s138, %s140
      %p147 = scmp.eq.s32.totalorder %s20, 1
      %p148 = por %p146, %p147
      %p149 = scmp.ne.s32.totalorder %s140, %s141
      %p150 = scmp.eq.s32.totalorder %s20, 0
      %p151 = por %p149, %p150
      %p152 = scmp.ne.s32.totalorder %s140, %s141
      %p153 = scmp.eq.s32.totalorder %s21, 1
      %p154 = por %p152, %p153
      %p156 = scmp.ne.s32.totalorder %s141, %s155
      %p157 = scmp.eq.s32.totalorder %s21, 0
      %p158 = por %p156, %p157
      %s159 = ssub.s32 %s15, %s22
      %p160 = scmp.eq.s32.totalorder %s159, 0
      %s162 = sadd.s32 %s161, 1
      %s163 = scalar_select %p160, %s161, %s162
      %p166 = pneg %p160
      %p167 = scmp.eq.s32.totalorder %s15, 1
      %p168 = por %p166, %p167
      %p169 = scmp.ne.s32.totalorder %s161, %s164
      %p170 = scmp.eq.s32.totalorder %s15, 0
      %p171 = por %p169, %p170
      %p172 = scmp.ne.s32.totalorder %s161, %s164
      %p173 = scmp.eq.s32.totalorder %s20, 1
      %p174 = por %p172, %p173
      %p175 = scmp.ne.s32.totalorder %s164, %s165
      %p176 = scmp.eq.s32.totalorder %s20, 0
      %p177 = por %p175, %p176
      %p178 = scmp.ne.s32.totalorder %s164, %s165
      %p179 = scmp.eq.s32.totalorder %s21, 1
      %p180 = por %p178, %p179
      %p182 = scmp.ne.s32.totalorder %s165, %s181
      %p183 = scmp.eq.s32.totalorder %s21, 0
      %p184 = por %p182, %p183
      %p185 = scmp.le.s32.totalorder 1, %s15
      %p186 = scmp.lt.s32.totalorder %s15, 3
      %p187 = pnand %p185, %p186
      %p188 = pneg %p187
      // Predicated region
      $region9: #{tpu_custom_call.1} parent=5 // pred_check
        _
      $region10: #{tpu_custom_call.1} parent=5 // pred_check_branch
        %190 = sbr.rel (%p187) target = $region12
      $region11: #{tpu_custom_call.1} parent=5 // pred_region
        %s191 = ssub.s32 %s15, 1
        // Predicated region
        $region13: #{tpu_custom_call.1} parent=11 // pred_check
          %p192 = pneg %p88
        $region14: #{tpu_custom_call.1} parent=11 // pred_check_branch
          %194 = sbr.rel (%p192) target = $region16
        $region15: #{tpu_custom_call.1} parent=11 // pred_region
          _
        $region16: #{tpu_custom_call.1} parent=11 // pred_fallthru
          _
        // Predicated region
        $region17: #{tpu_custom_call.1} parent=11 // pred_check
          %p195 = pneg %p109
        $region18: #{tpu_custom_call.1} parent=11 // pred_check_branch
          %197 = sbr.rel (%p195) target = $region20
        $region19: #{tpu_custom_call.1} parent=11 // pred_region
          _
        $region20: #{tpu_custom_call.1} parent=11 // pred_fallthru
          _
        // Predicated region
        $region21: #{tpu_custom_call.1} parent=11 // pred_check
          %p198 = pneg %p130
        $region22: #{tpu_custom_call.1} parent=11 // pred_check_branch
          %200 = sbr.rel (%p198) target = $region24
        $region23: #{tpu_custom_call.1} parent=11 // pred_region
          _
        $region24: #{tpu_custom_call.1} parent=11 // pred_fallthru
          _
        // Predicated region
        $region25: #{tpu_custom_call.1} parent=11 // pred_check
          %p201 = pneg %p151
        $region26: #{tpu_custom_call.1} parent=11 // pred_check_branch
          %203 = sbr.rel (%p201) target = $region28
        $region27: #{tpu_custom_call.1} parent=11 // pred_region
          _
        $region28: #{tpu_custom_call.1} parent=11 // pred_fallthru
          _
      $region12: #{tpu_custom_call.1} parent=5 // pred_fallthru
        _
      %p204 = scmp.lt.s32.totalorder %s15, 2
      // Predicated region
      $region29: #{tpu_custom_call.1} parent=5 // pred_check
        %p205 = pneg %p204
      $region30: #{tpu_custom_call.1} parent=5 // pred_check_branch
        %207 = sbr.rel (%p205) target = $region32
      $region31: #{tpu_custom_call.1} parent=5 // pred_region
        // Predicated region
        $region33: #{tpu_custom_call.1} parent=31 // pred_check
          %p208 = pneg %p35
        $region34: #{tpu_custom_call.1} parent=31 // pred_check_branch
          %210 = sbr.rel (%p208) target = $region36
        $region35: #{tpu_custom_call.1} parent=31 // pred_region
          %p211 = scmp.lt.s32.totalorder %s15, 1
          %s212 = scalar_select %p211, %s15, 1
          %s213 = smul.addr %s212, 60
          %s214 = smul.addr %s213, 8
          %s215 = scalar_lea.vmem %s0, %s214
        $region36: #{tpu_custom_call.1} parent=31 // pred_fallthru
          _
        // Predicated region
        $region37: #{tpu_custom_call.1} parent=31 // pred_check
          %p216 = pneg %p61
        $region38: #{tpu_custom_call.1} parent=31 // pred_check_branch
          %218 = sbr.rel (%p216) target = $region40
        $region39: #{tpu_custom_call.1} parent=31 // pred_region
          %p219 = scmp.lt.s32.totalorder %s15, 1
          %s220 = scalar_select %p219, %s15, 1
          %s221 = smul.addr %s220, 3
          %s222 = smul.addr %s221, 8
          %s223 = scalar_lea.vmem %s1, %s222
        $region40: #{tpu_custom_call.1} parent=31 // pred_fallthru
          _
      $region32: #{tpu_custom_call.1} parent=5 // pred_fallthru
        _
      %p224 = scmp.le.s32.totalorder 1, %s15
      %p225 = scmp.lt.s32.totalorder %s15, 3
      %p226 = pnand %p224, %p225
      %p227 = pneg %p226
      // Predicated region
      $region41: #{tpu_custom_call.1} parent=5 // pred_check
        _
      $region42: #{tpu_custom_call.1} parent=5 // pred_check_branch
        %229 = sbr.rel (%p226) target = $region44
      $region43: #{tpu_custom_call.1} parent=5 // pred_region
        %s230 = ssub.s32 %s15, 1
        %p231 = scmp.lt.s32.totalorder %s20, 1
        %s232 = scalar_select %p231, %s20, 1
        %s233 = smul.addr %s232, 60
        %s234 = smul.addr %s233, 8
        %s235 = scalar_lea.vmem %s0, %s234
        %p236 = pneg %p41
        %p237 = pneg %p38
        %p238 = scmp.lt.s32.totalorder %s20, 1
        %s239 = scalar_select %p238, %s20, 1
        %s240 = smul.addr %s239, 3
        %s241 = smul.addr %s240, 8
        %s242 = scalar_lea.vmem %s1, %s241
        %p243 = pneg %p67
        %p244 = pneg %p64
        %p245 = pneg %p88
        %p246 = pneg %p85
        %p247 = pneg %p109
        %p248 = pneg %p106
        %p249 = pneg %p130
        %p250 = pneg %p127
        %p251 = pneg %p151
        %p252 = pneg %p148
        %p253 = pneg %p177
        %p254 = pneg %p174
        %s255 = sand.u32 %s164, 1
        %s256 = scalar_lea.sflag [#allocation3], %s255
        %s257 = sand.u32 %s164, 1
        %s258 = smul.addr %s257, 128
        %s259 = scalar_lea.vmem [#allocation2], %s258
        %p260 = scmp.lt.s32.totalorder %s20, 1
        %s261 = scalar_select %p260, %s20, 1
        %s262 = smul.addr %s261, 60
        %s263 = smul.addr %s262, 8
        %s264 = scalar_lea.vmem %s0, %s263
        %p265 = scmp.lt.s32.totalorder %s20, 1
        %s266 = scalar_select %p265, %s20, 1
        %s267 = smul.addr %s266, 3
        %s268 = smul.addr %s267, 8
        %s269 = scalar_lea.vmem %s1, %s268
        %v270 = vld [vmem:[%s264] sm:$0xff]
        %v271 = vld [vmem:[%s264 + $0x8] sm:$0xff]
        %v272 = vld [vmem:[%s264 + $0x10] sm:$0xf]
        %v273 = vld [vmem:[%s264 + $0x18] sm:$0xff]
        %v274 = vld [vmem:[%s264 + $0x20] sm:$0xff]
        %v275 = vld [vmem:[%s264 + $0x28] sm:$0xf]
        %v276 = vld [vmem:[%s264 + $0x30] sm:$0xff]
        %v277 = vld [vmem:[%s264 + $0x38] sm:$0xff]
        %v278 = vld [vmem:[%s264 + $0x40] sm:$0xf]
        %v279 = vld [vmem:[%s264 + $0x48] sm:$0xff]
        %v280 = vld [vmem:[%s264 + $0x50] sm:$0xff]
        %v281 = vld [vmem:[%s264 + $0x58] sm:$0xf]
        %v282 = vld [vmem:[%s264 + $0x60] sm:$0xff]
        %v283 = vld [vmem:[%s264 + $0x68] sm:$0xff]
        %v284 = vld [vmem:[%s264 + $0x70] sm:$0xf]
        %v285 = vld [vmem:[%s264 + $0x78] sm:$0xff]
        %v286 = vld [vmem:[%s264 + $0x80] sm:$0xff]
        %v287 = vld [vmem:[%s264 + $0x88] sm:$0xf]
        %v288 = vld [vmem:[%s264 + $0x90] sm:$0xff]
        %v289 = vld [vmem:[%s264 + $0x98] sm:$0xff]
        %v290 = vld [vmem:[%s264 + $0xa0] sm:$0xf]
        %v291 = vld [vmem:[%s264 + $0xa8] sm:$0xff]
        %v292 = vld [vmem:[%s264 + $0xb0] sm:$0xff]
        %v293 = vld [vmem:[%s264 + $0xb8] sm:$0xf]
        %v294 = vld [vmem:[%s264 + $0xc0] sm:$0xff]
        %v295 = vld [vmem:[%s264 + $0xc8] sm:$0xff]
        %v296 = vld [vmem:[%s264 + $0xd0] sm:$0xf]
        %v297 = vld [vmem:[%s264 + $0xd8] sm:$0xff]
        %v298 = vld [vmem:[%s264 + $0xe0] sm:$0xff]
        %v299 = vld [vmem:[%s264 + $0xe8] sm:$0xf]
        %v300 = vld [vmem:[%s264 + $0xf0] sm:$0xff]
        %v301 = vld [vmem:[%s264 + $0xf8] sm:$0xff]
        %v302 = vld [vmem:[%s264 + $0x100] sm:$0xf]
        %v303 = vld [vmem:[%s264 + $0x108] sm:$0xff]
        %v304 = vld [vmem:[%s264 + $0x110] sm:$0xff]
        %v305 = vld [vmem:[%s264 + $0x118] sm:$0xf]
        %v306 = vld [vmem:[%s264 + $0x120] sm:$0xff]
        %v307 = vld [vmem:[%s264 + $0x128] sm:$0xff]
        %v308 = vld [vmem:[%s264 + $0x130] sm:$0xf]
        %v309 = vld [vmem:[%s264 + $0x138] sm:$0xff]
        %v310 = vld [vmem:[%s264 + $0x140] sm:$0xff]
        %v311 = vld [vmem:[%s264 + $0x148] sm:$0xf]
        %v312 = vld [vmem:[%s264 + $0x150] sm:$0xff]
        %v313 = vld [vmem:[%s264 + $0x158] sm:$0xff]
        %v314 = vld [vmem:[%s264 + $0x160] sm:$0xf]
        %v315 = vld [vmem:[%s264 + $0x168] sm:$0xff]
        %v316 = vld [vmem:[%s264 + $0x170] sm:$0xff]
        %v317 = vld [vmem:[%s264 + $0x178] sm:$0xf]
        %v318 = vld [vmem:[%s264 + $0x180] sm:$0xff]
        %v319 = vld [vmem:[%s264 + $0x188] sm:$0xff]
        %v320 = vld [vmem:[%s264 + $0x190] sm:$0xf]
        %v321 = vld [vmem:[%s264 + $0x198] sm:$0xff]
        %v322 = vld [vmem:[%s264 + $0x1a0] sm:$0xff]
        %v323 = vld [vmem:[%s264 + $0x1a8] sm:$0xf]
        %v324 = vld [vmem:[%s264 + $0x1b0] sm:$0xff]
        %v325 = vld [vmem:[%s264 + $0x1b8] sm:$0xff]
        %v326 = vld [vmem:[%s264 + $0x1c0] sm:$0xf]
        %v327 = vld [vmem:[%s264 + $0x1c8] sm:$0xff]
        %v328 = vld [vmem:[%s264 + $0x1d0] sm:$0xff]
        %v329 = vld [vmem:[%s264 + $0x1d8] sm:$0xf]
        %v330 = vld [vmem:[%s269] sm:$0xff]
        %v331 = vld [vmem:[%s269 + $0x8] sm:$0xff]
        %v332 = vld [vmem:[%s269 + $0x10] sm:$0x3]
        %v333 = vlaneseq
        %v334 = vshrl.u32 %v333, 7
        %v335 = vsub.s32 0, %v334
        %v336 = vrot.slane %v330, %v335
        %338 = vbcast.lane.b32.xlu0 %v336, 256
        %v339 = vpop.permute.xlu0 %338
        %s341 = sor.u32 256, 8
        %342 = vbcast.lane.b32.xlu0 %v336, %s341
        %v343 = vpop.permute.xlu0 %342
        %v344 = vlaneseq
        %v345 = vshrl.u32 %v344, 7
        %v346 = vsub.s32 1, %v345
        %v347 = vrot.slane %v330, %v346
        %349 = vbcast.lane.b32.xlu0 %v347, 256
        %v350 = vpop.permute.xlu0 %349
        %s352 = sor.u32 256, 8
        %353 = vbcast.lane.b32.xlu0 %v347, %s352
        %v354 = vpop.permute.xlu0 %353
        %v355 = vlaneseq
        %v356 = vshrl.u32 %v355, 7
        %v357 = vsub.s32 2, %v356
        %v358 = vrot.slane %v330, %v357
        %360 = vbcast.lane.b32.xlu0 %v358, 256
        %v361 = vpop.permute.xlu0 %360
        %s363 = sor.u32 256, 8
        %364 = vbcast.lane.b32.xlu0 %v358, %s363
        %v365 = vpop.permute.xlu0 %364
        %v366 = vlaneseq
        %v367 = vshrl.u32 %v366, 7
        %v368 = vsub.s32 3, %v367
        %v369 = vrot.slane %v330, %v368
        %371 = vbcast.lane.b32.xlu0 %v369, 256
        %v372 = vpop.permute.xlu0 %371
        %s374 = sor.u32 256, 8
        %375 = vbcast.lane.b32.xlu0 %v369, %s374
        %v376 = vpop.permute.xlu0 %375
        %v377 = vlaneseq
        %v378 = vshrl.u32 %v377, 7
        %v379 = vsub.s32 4, %v378
        %v380 = vrot.slane %v330, %v379
        %382 = vbcast.lane.b32.xlu0 %v380, 256
        %v383 = vpop.permute.xlu0 %382
        %s385 = sor.u32 256, 8
        %386 = vbcast.lane.b32.xlu0 %v380, %s385
        %v387 = vpop.permute.xlu0 %386
        %v388 = vlaneseq
        %v389 = vshrl.u32 %v388, 7
        %v390 = vsub.s32 5, %v389
        %v391 = vrot.slane %v330, %v390
        %393 = vbcast.lane.b32.xlu0 %v391, 256
        %v394 = vpop.permute.xlu0 %393
        %s396 = sor.u32 256, 8
        %397 = vbcast.lane.b32.xlu0 %v391, %s396
        %v398 = vpop.permute.xlu0 %397
        %v399 = vlaneseq
        %v400 = vshrl.u32 %v399, 7
        %v401 = vsub.s32 6, %v400
        %v402 = vrot.slane %v330, %v401
        %404 = vbcast.lane.b32.xlu0 %v402, 256
        %v405 = vpop.permute.xlu0 %404
        %s407 = sor.u32 256, 8
        %408 = vbcast.lane.b32.xlu0 %v402, %s407
        %v409 = vpop.permute.xlu0 %408
        %v410 = vlaneseq
        %v411 = vshrl.u32 %v410, 7
        %v412 = vsub.s32 7, %v411
        %v413 = vrot.slane %v330, %v412
        %415 = vbcast.lane.b32.xlu0 %v413, 256
        %v416 = vpop.permute.xlu0 %415
        %s418 = sor.u32 256, 8
        %419 = vbcast.lane.b32.xlu0 %v413, %s418
        %v420 = vpop.permute.xlu0 %419
        %v421 = vlaneseq
        %v422 = vshrl.u32 %v421, 7
        %v423 = vsub.s32 0, %v422
        %v424 = vrot.slane %v331, %v423
        %426 = vbcast.lane.b32.xlu0 %v424, 256
        %v427 = vpop.permute.xlu0 %426
        %s429 = sor.u32 256, 8
        %430 = vbcast.lane.b32.xlu0 %v424, %s429
        %v431 = vpop.permute.xlu0 %430
        %v432 = vlaneseq
        %v433 = vshrl.u32 %v432, 7
        %v434 = vsub.s32 1, %v433
        %v435 = vrot.slane %v331, %v434
        %437 = vbcast.lane.b32.xlu0 %v435, 256
        %v438 = vpop.permute.xlu0 %437
        %s440 = sor.u32 256, 8
        %441 = vbcast.lane.b32.xlu0 %v435, %s440
        %v442 = vpop.permute.xlu0 %441
        %v443 = vlaneseq
        %v444 = vshrl.u32 %v443, 7
        %v445 = vsub.s32 2, %v444
        %v446 = vrot.slane %v331, %v445
        %448 = vbcast.lane.b32.xlu0 %v446, 256
        %v449 = vpop.permute.xlu0 %448
        %s451 = sor.u32 256, 8
        %452 = vbcast.lane.b32.xlu0 %v446, %s451
        %v453 = vpop.permute.xlu0 %452
        %v454 = vlaneseq
        %v455 = vshrl.u32 %v454, 7
        %v456 = vsub.s32 3, %v455
        %v457 = vrot.slane %v331, %v456
        %459 = vbcast.lane.b32.xlu0 %v457, 256
        %v460 = vpop.permute.xlu0 %459
        %s462 = sor.u32 256, 8
        %463 = vbcast.lane.b32.xlu0 %v457, %s462
        %v464 = vpop.permute.xlu0 %463
        %v465 = vlaneseq
        %v466 = vshrl.u32 %v465, 7
        %v467 = vsub.s32 4, %v466
        %v468 = vrot.slane %v331, %v467
        %470 = vbcast.lane.b32.xlu0 %v468, 256
        %v471 = vpop.permute.xlu0 %470
        %s473 = sor.u32 256, 8
        %474 = vbcast.lane.b32.xlu0 %v468, %s473
        %v475 = vpop.permute.xlu0 %474
        %v476 = vlaneseq
        %v477 = vshrl.u32 %v476, 7
        %v478 = vsub.s32 5, %v477
        %v479 = vrot.slane %v331, %v478
        %481 = vbcast.lane.b32.xlu0 %v479, 256
        %v482 = vpop.permute.xlu0 %481
        %s484 = sor.u32 256, 8
        %485 = vbcast.lane.b32.xlu0 %v479, %s484
        %v486 = vpop.permute.xlu0 %485
        %v487 = vlaneseq
        %v488 = vshrl.u32 %v487, 7
        %v489 = vsub.s32 6, %v488
        %v490 = vrot.slane %v331, %v489
        %492 = vbcast.lane.b32.xlu0 %v490, 256
        %v493 = vpop.permute.xlu0 %492
        %s495 = sor.u32 256, 8
        %496 = vbcast.lane.b32.xlu0 %v490, %s495
        %v497 = vpop.permute.xlu0 %496
        %v498 = vlaneseq
        %v499 = vshrl.u32 %v498, 7
        %v500 = vsub.s32 7, %v499
        %v501 = vrot.slane %v331, %v500
        %503 = vbcast.lane.b32.xlu0 %v501, 256
        %v504 = vpop.permute.xlu0 %503
        %s506 = sor.u32 256, 8
        %507 = vbcast.lane.b32.xlu0 %v501, %s506
        %v508 = vpop.permute.xlu0 %507
        %s510 = sor.u32 256, 1
        %511 = vbcast.lane.b32.xlu0 %v336, %s510
        %v512 = vpop.permute.xlu0 %511
        %s514 = sor.u32 256, 9
        %515 = vbcast.lane.b32.xlu0 %v336, %s514
        %v516 = vpop.permute.xlu0 %515
        %s518 = sor.u32 256, 1
        %519 = vbcast.lane.b32.xlu0 %v347, %s518
        %v520 = vpop.permute.xlu0 %519
        %s522 = sor.u32 256, 9
        %523 = vbcast.lane.b32.xlu0 %v347, %s522
        %v524 = vpop.permute.xlu0 %523
        %s526 = sor.u32 256, 1
        %527 = vbcast.lane.b32.xlu0 %v358, %s526
        %v528 = vpop.permute.xlu0 %527
        %s530 = sor.u32 256, 9
        %531 = vbcast.lane.b32.xlu0 %v358, %s530
        %v532 = vpop.permute.xlu0 %531
        %s534 = sor.u32 256, 1
        %535 = vbcast.lane.b32.xlu0 %v369, %s534
        %v536 = vpop.permute.xlu0 %535
        %s538 = sor.u32 256, 9
        %539 = vbcast.lane.b32.xlu0 %v369, %s538
        %v540 = vpop.permute.xlu0 %539
        %s542 = sor.u32 256, 1
        %543 = vbcast.lane.b32.xlu0 %v380, %s542
        %v544 = vpop.permute.xlu0 %543
        %s546 = sor.u32 256, 9
        %547 = vbcast.lane.b32.xlu0 %v380, %s546
        %v548 = vpop.permute.xlu0 %547
        %s550 = sor.u32 256, 1
        %551 = vbcast.lane.b32.xlu0 %v391, %s550
        %v552 = vpop.permute.xlu0 %551
        %s554 = sor.u32 256, 9
        %555 = vbcast.lane.b32.xlu0 %v391, %s554
        %v556 = vpop.permute.xlu0 %555
        %s558 = sor.u32 256, 1
        %559 = vbcast.lane.b32.xlu0 %v402, %s558
        %v560 = vpop.permute.xlu0 %559
        %s562 = sor.u32 256, 9
        %563 = vbcast.lane.b32.xlu0 %v402, %s562
        %v564 = vpop.permute.xlu0 %563
        %s566 = sor.u32 256, 1
        %567 = vbcast.lane.b32.xlu0 %v413, %s566
        %v568 = vpop.permute.xlu0 %567
        %s570 = sor.u32 256, 9
        %571 = vbcast.lane.b32.xlu0 %v413, %s570
        %v572 = vpop.permute.xlu0 %571
        %s574 = sor.u32 256, 1
        %575 = vbcast.lane.b32.xlu0 %v424, %s574
        %v576 = vpop.permute.xlu0 %575
        %s578 = sor.u32 256, 9
        %579 = vbcast.lane.b32.xlu0 %v424, %s578
        %v580 = vpop.permute.xlu0 %579
        %s582 = sor.u32 256, 1
        %583 = vbcast.lane.b32.xlu0 %v435, %s582
        %v584 = vpop.permute.xlu0 %583
        %s586 = sor.u32 256, 9
        %587 = vbcast.lane.b32.xlu0 %v435, %s586
        %v588 = vpop.permute.xlu0 %587
        %s590 = sor.u32 256, 1
        %591 = vbcast.lane.b32.xlu0 %v446, %s590
        %v592 = vpop.permute.xlu0 %591
        %s594 = sor.u32 256, 9
        %595 = vbcast.lane.b32.xlu0 %v446, %s594
        %v596 = vpop.permute.xlu0 %595
        %s598 = sor.u32 256, 1
        %599 = vbcast.lane.b32.xlu0 %v457, %s598
        %v600 = vpop.permute.xlu0 %599
        %s602 = sor.u32 256, 9
        %603 = vbcast.lane.b32.xlu0 %v457, %s602
        %v604 = vpop.permute.xlu0 %603
        %s606 = sor.u32 256, 1
        %607 = vbcast.lane.b32.xlu0 %v468, %s606
        %v608 = vpop.permute.xlu0 %607
        %s610 = sor.u32 256, 9
        %611 = vbcast.lane.b32.xlu0 %v468, %s610
        %v612 = vpop.permute.xlu0 %611
        %s614 = sor.u32 256, 1
        %615 = vbcast.lane.b32.xlu0 %v479, %s614
        %v616 = vpop.permute.xlu0 %615
        %s618 = sor.u32 256, 9
        %619 = vbcast.lane.b32.xlu0 %v479, %s618
        %v620 = vpop.permute.xlu0 %619
        %s622 = sor.u32 256, 1
        %623 = vbcast.lane.b32.xlu0 %v490, %s622
        %v624 = vpop.permute.xlu0 %623
        %s626 = sor.u32 256, 9
        %627 = vbcast.lane.b32.xlu0 %v490, %s626
        %v628 = vpop.permute.xlu0 %627
        %s630 = sor.u32 256, 1
        %631 = vbcast.lane.b32.xlu0 %v501, %s630
        %v632 = vpop.permute.xlu0 %631
        %s634 = sor.u32 256, 9
        %635 = vbcast.lane.b32.xlu0 %v501, %s634
        %v636 = vpop.permute.xlu0 %635
        %s638 = sor.u32 256, 2
        %639 = vbcast.lane.b32.xlu0 %v336, %s638
        %v640 = vpop.permute.xlu0 %639
        %s642 = sor.u32 256, 10
        %643 = vbcast.lane.b32.xlu0 %v336, %s642
        %v644 = vpop.permute.xlu0 %643
        %s646 = sor.u32 256, 2
        %647 = vbcast.lane.b32.xlu0 %v347, %s646
        %v648 = vpop.permute.xlu0 %647
        %s650 = sor.u32 256, 10
        %651 = vbcast.lane.b32.xlu0 %v347, %s650
        %v652 = vpop.permute.xlu0 %651
        %s654 = sor.u32 256, 2
        %655 = vbcast.lane.b32.xlu0 %v358, %s654
        %v656 = vpop.permute.xlu0 %655
        %s658 = sor.u32 256, 10
        %659 = vbcast.lane.b32.xlu0 %v358, %s658
        %v660 = vpop.permute.xlu0 %659
        %s662 = sor.u32 256, 2
        %663 = vbcast.lane.b32.xlu0 %v369, %s662
        %v664 = vpop.permute.xlu0 %663
        %s666 = sor.u32 256, 10
        %667 = vbcast.lane.b32.xlu0 %v369, %s666
        %v668 = vpop.permute.xlu0 %667
        %s670 = sor.u32 256, 2
        %671 = vbcast.lane.b32.xlu0 %v380, %s670
        %v672 = vpop.permute.xlu0 %671
        %s674 = sor.u32 256, 10
        %675 = vbcast.lane.b32.xlu0 %v380, %s674
        %v676 = vpop.permute.xlu0 %675
        %s678 = sor.u32 256, 2
        %679 = vbcast.lane.b32.xlu0 %v391, %s678
        %v680 = vpop.permute.xlu0 %679
        %s682 = sor.u32 256, 10
        %683 = vbcast.lane.b32.xlu0 %v391, %s682
        %v684 = vpop.permute.xlu0 %683
        %s686 = sor.u32 256, 2
        %687 = vbcast.lane.b32.xlu0 %v402, %s686
        %v688 = vpop.permute.xlu0 %687
        %s690 = sor.u32 256, 10
        %691 = vbcast.lane.b32.xlu0 %v402, %s690
        %v692 = vpop.permute.xlu0 %691
        %s694 = sor.u32 256, 2
        %695 = vbcast.lane.b32.xlu0 %v413, %s694
        %v696 = vpop.permute.xlu0 %695
        %s698 = sor.u32 256, 10
        %699 = vbcast.lane.b32.xlu0 %v413, %s698
        %v700 = vpop.permute.xlu0 %699
        %s702 = sor.u32 256, 2
        %703 = vbcast.lane.b32.xlu0 %v424, %s702
        %v704 = vpop.permute.xlu0 %703
        %s706 = sor.u32 256, 10
        %707 = vbcast.lane.b32.xlu0 %v424, %s706
        %v708 = vpop.permute.xlu0 %707
        %s710 = sor.u32 256, 2
        %711 = vbcast.lane.b32.xlu0 %v435, %s710
        %v712 = vpop.permute.xlu0 %711
        %s714 = sor.u32 256, 10
        %715 = vbcast.lane.b32.xlu0 %v435, %s714
        %v716 = vpop.permute.xlu0 %715
        %s718 = sor.u32 256, 2
        %719 = vbcast.lane.b32.xlu0 %v446, %s718
        %v720 = vpop.permute.xlu0 %719
        %s722 = sor.u32 256, 10
        %723 = vbcast.lane.b32.xlu0 %v446, %s722
        %v724 = vpop.permute.xlu0 %723
        %s726 = sor.u32 256, 2
        %727 = vbcast.lane.b32.xlu0 %v457, %s726
        %v728 = vpop.permute.xlu0 %727
        %s730 = sor.u32 256, 10
        %731 = vbcast.lane.b32.xlu0 %v457, %s730
        %v732 = vpop.permute.xlu0 %731
        %s734 = sor.u32 256, 2
        %735 = vbcast.lane.b32.xlu0 %v468, %s734
        %v736 = vpop.permute.xlu0 %735
        %s738 = sor.u32 256, 10
        %739 = vbcast.lane.b32.xlu0 %v468, %s738
        %v740 = vpop.permute.xlu0 %739
        %s742 = sor.u32 256, 2
        %743 = vbcast.lane.b32.xlu0 %v479, %s742
        %v744 = vpop.permute.xlu0 %743
        %s746 = sor.u32 256, 10
        %747 = vbcast.lane.b32.xlu0 %v479, %s746
        %v748 = vpop.permute.xlu0 %747
        %s750 = sor.u32 256, 2
        %751 = vbcast.lane.b32.xlu0 %v490, %s750
        %v752 = vpop.permute.xlu0 %751
        %s754 = sor.u32 256, 10
        %755 = vbcast.lane.b32.xlu0 %v490, %s754
        %v756 = vpop.permute.xlu0 %755
        %s758 = sor.u32 256, 2
        %759 = vbcast.lane.b32.xlu0 %v501, %s758
        %v760 = vpop.permute.xlu0 %759
        %s762 = sor.u32 256, 10
        %763 = vbcast.lane.b32.xlu0 %v501, %s762
        %v764 = vpop.permute.xlu0 %763
        %v765 = vlaneseq
        %v766 = vshrl.u32 %v765, 7
        %v767 = vsub.s32 0, %v766
        %v768 = vrot.slane %v332, %v767
        %770 = vbcast.lane.b32.xlu0 %v768, 256
        %v771 = vpop.permute.xlu0 %770
        %s773 = sor.u32 256, 8
        %774 = vbcast.lane.b32.xlu0 %v768, %s773
        %v775 = vpop.permute.xlu0 %774
        %s777 = sor.u32 256, 1
        %778 = vbcast.lane.b32.xlu0 %v768, %s777
        %v779 = vpop.permute.xlu0 %778
        %s781 = sor.u32 256, 9
        %782 = vbcast.lane.b32.xlu0 %v768, %s781
        %v783 = vpop.permute.xlu0 %782
        %s785 = sor.u32 256, 2
        %786 = vbcast.lane.b32.xlu0 %v768, %s785
        %v787 = vpop.permute.xlu0 %786
        %s789 = sor.u32 256, 10
        %790 = vbcast.lane.b32.xlu0 %v768, %s789
        %v791 = vpop.permute.xlu0 %790
        %v792 = vlaneseq
        %v793 = vshrl.u32 %v792, 7
        %v794 = vsub.s32 1, %v793
        %v795 = vrot.slane %v332, %v794
        %797 = vbcast.lane.b32.xlu0 %v795, 256
        %v798 = vpop.permute.xlu0 %797
        %s800 = sor.u32 256, 8
        %801 = vbcast.lane.b32.xlu0 %v795, %s800
        %v802 = vpop.permute.xlu0 %801
        %s804 = sor.u32 256, 1
        %805 = vbcast.lane.b32.xlu0 %v795, %s804
        %v806 = vpop.permute.xlu0 %805
        %s808 = sor.u32 256, 9
        %809 = vbcast.lane.b32.xlu0 %v795, %s808
        %v810 = vpop.permute.xlu0 %809
        %s812 = sor.u32 256, 2
        %813 = vbcast.lane.b32.xlu0 %v795, %s812
        %v814 = vpop.permute.xlu0 %813
        %s816 = sor.u32 256, 10
        %817 = vbcast.lane.b32.xlu0 %v795, %s816
        %v818 = vpop.permute.xlu0 %817
        %vm867 = vcmask 1045504
        %v868 = vrot.slane %v270, 2
        %v869 = vrot.slane %v271, 2
        %v870 = vsel %vm867, %v868, %v869
        %v871 = vrot.slane %v272, 2
        %v872 = vsel %vm867, %v869, %v871
        %v873 = vrot.slane %v273, 2
        %v874 = vrot.slane %v274, 2
        %v875 = vsel %vm867, %v873, %v874
        %v876 = vrot.slane %v275, 2
        %v877 = vsel %vm867, %v874, %v876
        %v878 = vrot.slane %v276, 2
        %v879 = vrot.slane %v277, 2
        %v880 = vsel %vm867, %v878, %v879
        %v881 = vrot.slane %v278, 2
        %v882 = vsel %vm867, %v879, %v881
        %v883 = vrot.slane %v279, 2
        %v884 = vrot.slane %v280, 2
        %v885 = vsel %vm867, %v883, %v884
        %v886 = vrot.slane %v281, 2
        %v887 = vsel %vm867, %v884, %v886
        %v888 = vrot.slane %v282, 2
        %v889 = vrot.slane %v283, 2
        %v890 = vsel %vm867, %v888, %v889
        %v891 = vrot.slane %v284, 2
        %v892 = vsel %vm867, %v889, %v891
        %v893 = vrot.slane %v285, 2
        %v894 = vrot.slane %v286, 2
        %v895 = vsel %vm867, %v893, %v894
        %v896 = vrot.slane %v287, 2
        %v897 = vsel %vm867, %v894, %v896
        %v898 = vrot.slane %v288, 2
        %v899 = vrot.slane %v289, 2
        %v900 = vsel %vm867, %v898, %v899
        %v901 = vrot.slane %v290, 2
        %v902 = vsel %vm867, %v899, %v901
        %v903 = vrot.slane %v291, 2
        %v904 = vrot.slane %v292, 2
        %v905 = vsel %vm867, %v903, %v904
        %v906 = vrot.slane %v293, 2
        %v907 = vsel %vm867, %v904, %v906
        %v908 = vrot.slane %v294, 2
        %v909 = vrot.slane %v295, 2
        %v910 = vsel %vm867, %v908, %v909
        %v911 = vrot.slane %v296, 2
        %v912 = vsel %vm867, %v909, %v911
        %v913 = vrot.slane %v297, 2
        %v914 = vrot.slane %v298, 2
        %v915 = vsel %vm867, %v913, %v914
        %v916 = vrot.slane %v299, 2
        %v917 = vsel %vm867, %v914, %v916
        %v918 = vrot.slane %v300, 2
        %v919 = vrot.slane %v301, 2
        %v920 = vsel %vm867, %v918, %v919
        %v921 = vrot.slane %v302, 2
        %v922 = vsel %vm867, %v919, %v921
        %v923 = vrot.slane %v303, 2
        %v924 = vrot.slane %v304, 2
        %v925 = vsel %vm867, %v923, %v924
        %v926 = vrot.slane %v305, 2
        %v927 = vsel %vm867, %v924, %v926
        %v928 = vrot.slane %v306, 2
        %v929 = vrot.slane %v307, 2
        %v930 = vsel %vm867, %v928, %v929
        %v931 = vrot.slane %v308, 2
        %v932 = vsel %vm867, %v929, %v931
        %v933 = vrot.slane %v309, 2
        %v934 = vrot.slane %v310, 2
        %v935 = vsel %vm867, %v933, %v934
        %v936 = vrot.slane %v311, 2
        %v937 = vsel %vm867, %v934, %v936
        %v938 = vrot.slane %v312, 2
        %v939 = vrot.slane %v313, 2
        %v940 = vsel %vm867, %v938, %v939
        %v941 = vrot.slane %v314, 2
        %v942 = vsel %vm867, %v939, %v941
        %v943 = vrot.slane %v315, 2
        %v944 = vrot.slane %v316, 2
        %v945 = vsel %vm867, %v943, %v944
        %v946 = vrot.slane %v317, 2
        %v947 = vsel %vm867, %v944, %v946
        %948 = vrot.lane.b32.xlu0 %v870, 32
        %v949 = vpop.permute.xlu0 %948
        %950 = vrot.lane.b32.xlu0 %v872, 32
        %v951 = vpop.permute.xlu0 %950
        %952 = vrot.lane.b32.xlu0 %v875, 32
        %v953 = vpop.permute.xlu0 %952
        %954 = vrot.lane.b32.xlu0 %v877, 32
        %v955 = vpop.permute.xlu0 %954
        %956 = vrot.lane.b32.xlu0 %v880, 32
        %v957 = vpop.permute.xlu0 %956
        %958 = vrot.lane.b32.xlu0 %v882, 32
        %v959 = vpop.permute.xlu0 %958
        %960 = vrot.lane.b32.xlu0 %v885, 32
        %v961 = vpop.permute.xlu0 %960
        %962 = vrot.lane.b32.xlu0 %v887, 32
        %v963 = vpop.permute.xlu0 %962
        %964 = vrot.lane.b32.xlu0 %v890, 32
        %v965 = vpop.permute.xlu0 %964
        %966 = vrot.lane.b32.xlu0 %v892, 32
        %v967 = vpop.permute.xlu0 %966
        %968 = vrot.lane.b32.xlu0 %v895, 32
        %v969 = vpop.permute.xlu0 %968
        %970 = vrot.lane.b32.xlu0 %v897, 32
        %v971 = vpop.permute.xlu0 %970
        %972 = vrot.lane.b32.xlu0 %v900, 32
        %v973 = vpop.permute.xlu0 %972
        %974 = vrot.lane.b32.xlu0 %v902, 32
        %v975 = vpop.permute.xlu0 %974
        %976 = vrot.lane.b32.xlu0 %v905, 32
        %v977 = vpop.permute.xlu0 %976
        %978 = vrot.lane.b32.xlu0 %v907, 32
        %v979 = vpop.permute.xlu0 %978
        %980 = vrot.lane.b32.xlu0 %v910, 32
        %v981 = vpop.permute.xlu0 %980
        %982 = vrot.lane.b32.xlu0 %v912, 32
        %v983 = vpop.permute.xlu0 %982
        %984 = vrot.lane.b32.xlu0 %v915, 32
        %v985 = vpop.permute.xlu0 %984
        %986 = vrot.lane.b32.xlu0 %v917, 32
        %v987 = vpop.permute.xlu0 %986
        %988 = vrot.lane.b32.xlu0 %v920, 32
        %v989 = vpop.permute.xlu0 %988
        %990 = vrot.lane.b32.xlu0 %v922, 32
        %v991 = vpop.permute.xlu0 %990
        %992 = vrot.lane.b32.xlu0 %v925, 32
        %v993 = vpop.permute.xlu0 %992
        %994 = vrot.lane.b32.xlu0 %v927, 32
        %v995 = vpop.permute.xlu0 %994
        %996 = vrot.lane.b32.xlu0 %v930, 32
        %v997 = vpop.permute.xlu0 %996
        %998 = vrot.lane.b32.xlu0 %v932, 32
        %v999 = vpop.permute.xlu0 %998
        %1000 = vrot.lane.b32.xlu0 %v935, 32
        %v1001 = vpop.permute.xlu0 %1000
        %1002 = vrot.lane.b32.xlu0 %v937, 32
        %v1003 = vpop.permute.xlu0 %1002
        %1004 = vrot.lane.b32.xlu0 %v940, 32
        %v1005 = vpop.permute.xlu0 %1004
        %1006 = vrot.lane.b32.xlu0 %v942, 32
        %v1007 = vpop.permute.xlu0 %1006
        %1008 = vrot.lane.b32.xlu0 %v945, 32
        %v1009 = vpop.permute.xlu0 %1008
        %1010 = vrot.lane.b32.xlu0 %v947, 32
        %v1011 = vpop.permute.xlu0 %1010
        %vm1044 = vcmask 1043456
        %v1045 = vrot.slane %v270, 4
        %v1046 = vrot.slane %v271, 4
        %v1047 = vsel %vm1044, %v1045, %v1046
        %v1048 = vrot.slane %v272, 4
        %v1049 = vsel %vm1044, %v1046, %v1048
        %v1050 = vrot.slane %v273, 4
        %v1051 = vrot.slane %v274, 4
        %v1052 = vsel %vm1044, %v1050, %v1051
        %v1053 = vrot.slane %v275, 4
        %v1054 = vsel %vm1044, %v1051, %v1053
        %v1055 = vrot.slane %v276, 4
        %v1056 = vrot.slane %v277, 4
        %v1057 = vsel %vm1044, %v1055, %v1056
        %v1058 = vrot.slane %v278, 4
        %v1059 = vsel %vm1044, %v1056, %v1058
        %v1060 = vrot.slane %v279, 4
        %v1061 = vrot.slane %v280, 4
        %v1062 = vsel %vm1044, %v1060, %v1061
        %v1063 = vrot.slane %v281, 4
        %v1064 = vsel %vm1044, %v1061, %v1063
        %v1065 = vrot.slane %v282, 4
        %v1066 = vrot.slane %v283, 4
        %v1067 = vsel %vm1044, %v1065, %v1066
        %v1068 = vrot.slane %v284, 4
        %v1069 = vsel %vm1044, %v1066, %v1068
        %v1070 = vrot.slane %v285, 4
        %v1071 = vrot.slane %v286, 4
        %v1072 = vsel %vm1044, %v1070, %v1071
        %v1073 = vrot.slane %v287, 4
        %v1074 = vsel %vm1044, %v1071, %v1073
        %v1075 = vrot.slane %v288, 4
        %v1076 = vrot.slane %v289, 4
        %v1077 = vsel %vm1044, %v1075, %v1076
        %v1078 = vrot.slane %v290, 4
        %v1079 = vsel %vm1044, %v1076, %v1078
        %v1080 = vrot.slane %v291, 4
        %v1081 = vrot.slane %v292, 4
        %v1082 = vsel %vm1044, %v1080, %v1081
        %v1083 = vrot.slane %v293, 4
        %v1084 = vsel %vm1044, %v1081, %v1083
        %v1085 = vrot.slane %v294, 4
        %v1086 = vrot.slane %v295, 4
        %v1087 = vsel %vm1044, %v1085, %v1086
        %v1088 = vrot.slane %v296, 4
        %v1089 = vsel %vm1044, %v1086, %v1088
        %v1090 = vrot.slane %v297, 4
        %v1091 = vrot.slane %v298, 4
        %v1092 = vsel %vm1044, %v1090, %v1091
        %v1093 = vrot.slane %v299, 4
        %v1094 = vsel %vm1044, %v1091, %v1093
        %v1095 = vrot.slane %v300, 4
        %v1096 = vrot.slane %v301, 4
        %v1097 = vsel %vm1044, %v1095, %v1096
        %v1098 = vrot.slane %v302, 4
        %v1099 = vsel %vm1044, %v1096, %v1098
        %v1100 = vrot.slane %v303, 4
        %v1101 = vrot.slane %v304, 4
        %v1102 = vsel %vm1044, %v1100, %v1101
        %v1103 = vrot.slane %v305, 4
        %v1104 = vsel %vm1044, %v1101, %v1103
        %v1105 = vrot.slane %v306, 4
        %v1106 = vrot.slane %v307, 4
        %v1107 = vsel %vm1044, %v1105, %v1106
        %v1108 = vrot.slane %v308, 4
        %v1109 = vsel %vm1044, %v1106, %v1108
        %v1110 = vrot.slane %v309, 4
        %v1111 = vrot.slane %v310, 4
        %v1112 = vsel %vm1044, %v1110, %v1111
        %v1113 = vrot.slane %v311, 4
        %v1114 = vsel %vm1044, %v1111, %v1113
        %v1115 = vrot.slane %v312, 4
        %v1116 = vrot.slane %v313, 4
        %v1117 = vsel %vm1044, %v1115, %v1116
        %v1118 = vrot.slane %v314, 4
        %v1119 = vsel %vm1044, %v1116, %v1118
        %v1120 = vrot.slane %v315, 4
        %v1121 = vrot.slane %v316, 4
        %v1122 = vsel %vm1044, %v1120, %v1121
        %v1123 = vrot.slane %v317, 4
        %v1124 = vsel %vm1044, %v1121, %v1123
        %1125 = vrot.lane.b32.xlu0 %v1047, 64
        %v1126 = vpop.permute.xlu0 %1125
        %1127 = vrot.lane.b32.xlu0 %v1049, 64
        %v1128 = vpop.permute.xlu0 %1127
        %1129 = vrot.lane.b32.xlu0 %v1052, 64
        %v1130 = vpop.permute.xlu0 %1129
        %1131 = vrot.lane.b32.xlu0 %v1054, 64
        %v1132 = vpop.permute.xlu0 %1131
        %1133 = vrot.lane.b32.xlu0 %v1057, 64
        %v1134 = vpop.permute.xlu0 %1133
        %1135 = vrot.lane.b32.xlu0 %v1059, 64
        %v1136 = vpop.permute.xlu0 %1135
        %1137 = vrot.lane.b32.xlu0 %v1062, 64
        %v1138 = vpop.permute.xlu0 %1137
        %1139 = vrot.lane.b32.xlu0 %v1064, 64
        %v1140 = vpop.permute.xlu0 %1139
        %1141 = vrot.lane.b32.xlu0 %v1067, 64
        %v1142 = vpop.permute.xlu0 %1141
        %1143 = vrot.lane.b32.xlu0 %v1069, 64
        %v1144 = vpop.permute.xlu0 %1143
        %1145 = vrot.lane.b32.xlu0 %v1072, 64
        %v1146 = vpop.permute.xlu0 %1145
        %1147 = vrot.lane.b32.xlu0 %v1074, 64
        %v1148 = vpop.permute.xlu0 %1147
        %1149 = vrot.lane.b32.xlu0 %v1077, 64
        %v1150 = vpop.permute.xlu0 %1149
        %1151 = vrot.lane.b32.xlu0 %v1079, 64
        %v1152 = vpop.permute.xlu0 %1151
        %1153 = vrot.lane.b32.xlu0 %v1082, 64
        %v1154 = vpop.permute.xlu0 %1153
        %1155 = vrot.lane.b32.xlu0 %v1084, 64
        %v1156 = vpop.permute.xlu0 %1155
        %1157 = vrot.lane.b32.xlu0 %v1087, 64
        %v1158 = vpop.permute.xlu0 %1157
        %1159 = vrot.lane.b32.xlu0 %v1089, 64
        %v1160 = vpop.permute.xlu0 %1159
        %1161 = vrot.lane.b32.xlu0 %v1092, 64
        %v1162 = vpop.permute.xlu0 %1161
        %1163 = vrot.lane.b32.xlu0 %v1094, 64
        %v1164 = vpop.permute.xlu0 %1163
        %1165 = vrot.lane.b32.xlu0 %v1097, 64
        %v1166 = vpop.permute.xlu0 %1165
        %1167 = vrot.lane.b32.xlu0 %v1099, 64
        %v1168 = vpop.permute.xlu0 %1167
        %1169 = vrot.lane.b32.xlu0 %v1102, 64
        %v1170 = vpop.permute.xlu0 %1169
        %1171 = vrot.lane.b32.xlu0 %v1104, 64
        %v1172 = vpop.permute.xlu0 %1171
        %1173 = vrot.lane.b32.xlu0 %v1107, 64
        %v1174 = vpop.permute.xlu0 %1173
        %1175 = vrot.lane.b32.xlu0 %v1109, 64
        %v1176 = vpop.permute.xlu0 %1175
        %1177 = vrot.lane.b32.xlu0 %v1112, 64
        %v1178 = vpop.permute.xlu0 %1177
        %1179 = vrot.lane.b32.xlu0 %v1114, 64
        %v1180 = vpop.permute.xlu0 %1179
        %1181 = vrot.lane.b32.xlu0 %v1117, 64
        %v1182 = vpop.permute.xlu0 %1181
        %1183 = vrot.lane.b32.xlu0 %v1119, 64
        %v1184 = vpop.permute.xlu0 %1183
        %1185 = vrot.lane.b32.xlu0 %v1122, 64
        %v1186 = vpop.permute.xlu0 %1185
        %1187 = vrot.lane.b32.xlu0 %v1124, 64
        %v1188 = vpop.permute.xlu0 %1187
        %1225 = vrot.lane.b32.xlu0 %v276, 96
        %v1226 = vpop.permute.xlu0 %1225
        %1227 = vrot.lane.b32.xlu0 %v277, 96
        %v1228 = vpop.permute.xlu0 %1227
        %1229 = vrot.lane.b32.xlu0 %v279, 96
        %v1230 = vpop.permute.xlu0 %1229
        %1231 = vrot.lane.b32.xlu0 %v280, 96
        %v1232 = vpop.permute.xlu0 %1231
        %1233 = vrot.lane.b32.xlu0 %v282, 96
        %v1234 = vpop.permute.xlu0 %1233
        %1235 = vrot.lane.b32.xlu0 %v283, 96
        %v1236 = vpop.permute.xlu0 %1235
        %1237 = vrot.lane.b32.xlu0 %v285, 96
        %v1238 = vpop.permute.xlu0 %1237
        %1239 = vrot.lane.b32.xlu0 %v286, 96
        %v1240 = vpop.permute.xlu0 %1239
        %1241 = vrot.lane.b32.xlu0 %v288, 96
        %v1242 = vpop.permute.xlu0 %1241
        %1243 = vrot.lane.b32.xlu0 %v289, 96
        %v1244 = vpop.permute.xlu0 %1243
        %1245 = vrot.lane.b32.xlu0 %v291, 96
        %v1246 = vpop.permute.xlu0 %1245
        %1247 = vrot.lane.b32.xlu0 %v292, 96
        %v1248 = vpop.permute.xlu0 %1247
        %1249 = vrot.lane.b32.xlu0 %v294, 96
        %v1250 = vpop.permute.xlu0 %1249
        %1251 = vrot.lane.b32.xlu0 %v295, 96
        %v1252 = vpop.permute.xlu0 %1251
        %1253 = vrot.lane.b32.xlu0 %v297, 96
        %v1254 = vpop.permute.xlu0 %1253
        %1255 = vrot.lane.b32.xlu0 %v298, 96
        %v1256 = vpop.permute.xlu0 %1255
        %1257 = vrot.lane.b32.xlu0 %v300, 96
        %v1258 = vpop.permute.xlu0 %1257
        %1259 = vrot.lane.b32.xlu0 %v301, 96
        %v1260 = vpop.permute.xlu0 %1259
        %1261 = vrot.lane.b32.xlu0 %v303, 96
        %v1262 = vpop.permute.xlu0 %1261
        %1263 = vrot.lane.b32.xlu0 %v304, 96
        %v1264 = vpop.permute.xlu0 %1263
        %1265 = vrot.lane.b32.xlu0 %v306, 96
        %v1266 = vpop.permute.xlu0 %1265
        %1267 = vrot.lane.b32.xlu0 %v307, 96
        %v1268 = vpop.permute.xlu0 %1267
        %1269 = vrot.lane.b32.xlu0 %v309, 96
        %v1270 = vpop.permute.xlu0 %1269
        %1271 = vrot.lane.b32.xlu0 %v310, 96
        %v1272 = vpop.permute.xlu0 %1271
        %1273 = vrot.lane.b32.xlu0 %v312, 96
        %v1274 = vpop.permute.xlu0 %1273
        %1275 = vrot.lane.b32.xlu0 %v313, 96
        %v1276 = vpop.permute.xlu0 %1275
        %1277 = vrot.lane.b32.xlu0 %v315, 96
        %v1278 = vpop.permute.xlu0 %1277
        %1279 = vrot.lane.b32.xlu0 %v316, 96
        %v1280 = vpop.permute.xlu0 %1279
        %1281 = vrot.lane.b32.xlu0 %v318, 96
        %v1282 = vpop.permute.xlu0 %1281
        %1283 = vrot.lane.b32.xlu0 %v319, 96
        %v1284 = vpop.permute.xlu0 %1283
        %1285 = vrot.lane.b32.xlu0 %v321, 96
        %v1286 = vpop.permute.xlu0 %1285
        %1287 = vrot.lane.b32.xlu0 %v322, 96
        %v1288 = vpop.permute.xlu0 %1287
        %v1323 = vrot.slane %v318, 2
        %v1324 = vrot.slane %v319, 2
        %v1325 = vsel %vm867, %v1323, %v1324
        %v1326 = vrot.slane %v320, 2
        %v1327 = vsel %vm867, %v1324, %v1326
        %v1328 = vrot.slane %v321, 2
        %v1329 = vrot.slane %v322, 2
        %v1330 = vsel %vm867, %v1328, %v1329
        %v1331 = vrot.slane %v323, 2
        %v1332 = vsel %vm867, %v1329, %v1331
        %v1365 = vrot.slane %v318, 4
        %v1366 = vrot.slane %v319, 4
        %v1367 = vsel %vm1044, %v1365, %v1366
        %v1368 = vrot.slane %v320, 4
        %v1369 = vsel %vm1044, %v1366, %v1368
        %v1370 = vrot.slane %v321, 4
        %v1371 = vrot.slane %v322, 4
        %v1372 = vsel %vm1044, %v1370, %v1371
        %v1373 = vrot.slane %v323, 4
        %v1374 = vsel %vm1044, %v1371, %v1373
        %1375 = vrot.lane.b32.xlu0 %v1057, 32
        %v1376 = vpop.permute.xlu0 %1375
        %1377 = vrot.lane.b32.xlu0 %v1059, 32
        %v1378 = vpop.permute.xlu0 %1377
        %1379 = vrot.lane.b32.xlu0 %v1062, 32
        %v1380 = vpop.permute.xlu0 %1379
        %1381 = vrot.lane.b32.xlu0 %v1064, 32
        %v1382 = vpop.permute.xlu0 %1381
        %1383 = vrot.lane.b32.xlu0 %v1067, 32
        %v1384 = vpop.permute.xlu0 %1383
        %1385 = vrot.lane.b32.xlu0 %v1069, 32
        %v1386 = vpop.permute.xlu0 %1385
        %1387 = vrot.lane.b32.xlu0 %v1072, 32
        %v1388 = vpop.permute.xlu0 %1387
        %1389 = vrot.lane.b32.xlu0 %v1074, 32
        %v1390 = vpop.permute.xlu0 %1389
        %1391 = vrot.lane.b32.xlu0 %v1077, 32
        %v1392 = vpop.permute.xlu0 %1391
        %1393 = vrot.lane.b32.xlu0 %v1079, 32
        %v1394 = vpop.permute.xlu0 %1393
        %1395 = vrot.lane.b32.xlu0 %v1082, 32
        %v1396 = vpop.permute.xlu0 %1395
        %1397 = vrot.lane.b32.xlu0 %v1084, 32
        %v1398 = vpop.permute.xlu0 %1397
        %1399 = vrot.lane.b32.xlu0 %v1087, 32
        %v1400 = vpop.permute.xlu0 %1399
        %1401 = vrot.lane.b32.xlu0 %v1089, 32
        %v1402 = vpop.permute.xlu0 %1401
        %1403 = vrot.lane.b32.xlu0 %v1092, 32
        %v1404 = vpop.permute.xlu0 %1403
        %1405 = vrot.lane.b32.xlu0 %v1094, 32
        %v1406 = vpop.permute.xlu0 %1405
        %1407 = vrot.lane.b32.xlu0 %v1097, 32
        %v1408 = vpop.permute.xlu0 %1407
        %1409 = vrot.lane.b32.xlu0 %v1099, 32
        %v1410 = vpop.permute.xlu0 %1409
        %1411 = vrot.lane.b32.xlu0 %v1102, 32
        %v1412 = vpop.permute.xlu0 %1411
        %1413 = vrot.lane.b32.xlu0 %v1104, 32
        %v1414 = vpop.permute.xlu0 %1413
        %1415 = vrot.lane.b32.xlu0 %v1107, 32
        %v1416 = vpop.permute.xlu0 %1415
        %1417 = vrot.lane.b32.xlu0 %v1109, 32
        %v1418 = vpop.permute.xlu0 %1417
        %1419 = vrot.lane.b32.xlu0 %v1112, 32
        %v1420 = vpop.permute.xlu0 %1419
        %1421 = vrot.lane.b32.xlu0 %v1114, 32
        %v1422 = vpop.permute.xlu0 %1421
        %1423 = vrot.lane.b32.xlu0 %v1117, 32
        %v1424 = vpop.permute.xlu0 %1423
        %1425 = vrot.lane.b32.xlu0 %v1119, 32
        %v1426 = vpop.permute.xlu0 %1425
        %1427 = vrot.lane.b32.xlu0 %v1122, 32
        %v1428 = vpop.permute.xlu0 %1427
        %1429 = vrot.lane.b32.xlu0 %v1124, 32
        %v1430 = vpop.permute.xlu0 %1429
        %1431 = vrot.lane.b32.xlu0 %v1367, 32
        %v1432 = vpop.permute.xlu0 %1431
        %1433 = vrot.lane.b32.xlu0 %v1369, 32
        %v1434 = vpop.permute.xlu0 %1433
        %1435 = vrot.lane.b32.xlu0 %v1372, 32
        %v1436 = vpop.permute.xlu0 %1435
        %1437 = vrot.lane.b32.xlu0 %v1374, 32
        %v1438 = vpop.permute.xlu0 %1437
        %1475 = vrot.lane.b32.xlu0 %v282, 64
        %v1476 = vpop.permute.xlu0 %1475
        %1477 = vrot.lane.b32.xlu0 %v283, 64
        %v1478 = vpop.permute.xlu0 %1477
        %1479 = vrot.lane.b32.xlu0 %v285, 64
        %v1480 = vpop.permute.xlu0 %1479
        %1481 = vrot.lane.b32.xlu0 %v286, 64
        %v1482 = vpop.permute.xlu0 %1481
        %1483 = vrot.lane.b32.xlu0 %v288, 64
        %v1484 = vpop.permute.xlu0 %1483
        %1485 = vrot.lane.b32.xlu0 %v289, 64
        %v1486 = vpop.permute.xlu0 %1485
        %1487 = vrot.lane.b32.xlu0 %v291, 64
        %v1488 = vpop.permute.xlu0 %1487
        %1489 = vrot.lane.b32.xlu0 %v292, 64
        %v1490 = vpop.permute.xlu0 %1489
        %1491 = vrot.lane.b32.xlu0 %v294, 64
        %v1492 = vpop.permute.xlu0 %1491
        %1493 = vrot.lane.b32.xlu0 %v295, 64
        %v1494 = vpop.permute.xlu0 %1493
        %1495 = vrot.lane.b32.xlu0 %v297, 64
        %v1496 = vpop.permute.xlu0 %1495
        %1497 = vrot.lane.b32.xlu0 %v298, 64
        %v1498 = vpop.permute.xlu0 %1497
        %1499 = vrot.lane.b32.xlu0 %v300, 64
        %v1500 = vpop.permute.xlu0 %1499
        %1501 = vrot.lane.b32.xlu0 %v301, 64
        %v1502 = vpop.permute.xlu0 %1501
        %1503 = vrot.lane.b32.xlu0 %v303, 64
        %v1504 = vpop.permute.xlu0 %1503
        %1505 = vrot.lane.b32.xlu0 %v304, 64
        %v1506 = vpop.permute.xlu0 %1505
        %1507 = vrot.lane.b32.xlu0 %v306, 64
        %v1508 = vpop.permute.xlu0 %1507
        %1509 = vrot.lane.b32.xlu0 %v307, 64
        %v1510 = vpop.permute.xlu0 %1509
        %1511 = vrot.lane.b32.xlu0 %v309, 64
        %v1512 = vpop.permute.xlu0 %1511
        %1513 = vrot.lane.b32.xlu0 %v310, 64
        %v1514 = vpop.permute.xlu0 %1513
        %1515 = vrot.lane.b32.xlu0 %v312, 64
        %v1516 = vpop.permute.xlu0 %1515
        %1517 = vrot.lane.b32.xlu0 %v313, 64
        %v1518 = vpop.permute.xlu0 %1517
        %1519 = vrot.lane.b32.xlu0 %v315, 64
        %v1520 = vpop.permute.xlu0 %1519
        %1521 = vrot.lane.b32.xlu0 %v316, 64
        %v1522 = vpop.permute.xlu0 %1521
        %1523 = vrot.lane.b32.xlu0 %v318, 64
        %v1524 = vpop.permute.xlu0 %1523
        %1525 = vrot.lane.b32.xlu0 %v319, 64
        %v1526 = vpop.permute.xlu0 %1525
        %1527 = vrot.lane.b32.xlu0 %v321, 64
        %v1528 = vpop.permute.xlu0 %1527
        %1529 = vrot.lane.b32.xlu0 %v322, 64
        %v1530 = vpop.permute.xlu0 %1529
        %1531 = vrot.lane.b32.xlu0 %v324, 64
        %v1532 = vpop.permute.xlu0 %1531
        %1533 = vrot.lane.b32.xlu0 %v325, 64
        %v1534 = vpop.permute.xlu0 %1533
        %1535 = vrot.lane.b32.xlu0 %v327, 64
        %v1536 = vpop.permute.xlu0 %1535
        %1537 = vrot.lane.b32.xlu0 %v328, 64
        %v1538 = vpop.permute.xlu0 %1537
        %v1573 = vrot.slane %v324, 2
        %v1574 = vrot.slane %v325, 2
        %v1575 = vsel %vm867, %v1573, %v1574
        %v1576 = vrot.slane %v326, 2
        %v1577 = vsel %vm867, %v1574, %v1576
        %v1578 = vrot.slane %v327, 2
        %v1579 = vrot.slane %v328, 2
        %v1580 = vsel %vm867, %v1578, %v1579
        %v1581 = vrot.slane %v329, 2
        %v1582 = vsel %vm867, %v1579, %v1581
        %1583 = vrot.lane.b32.xlu0 %v890, 96
        %v1584 = vpop.permute.xlu0 %1583
        %1585 = vrot.lane.b32.xlu0 %v892, 96
        %v1586 = vpop.permute.xlu0 %1585
        %1587 = vrot.lane.b32.xlu0 %v895, 96
        %v1588 = vpop.permute.xlu0 %1587
        %1589 = vrot.lane.b32.xlu0 %v897, 96
        %v1590 = vpop.permute.xlu0 %1589
        %1591 = vrot.lane.b32.xlu0 %v900, 96
        %v1592 = vpop.permute.xlu0 %1591
        %1593 = vrot.lane.b32.xlu0 %v902, 96
        %v1594 = vpop.permute.xlu0 %1593
        %1595 = vrot.lane.b32.xlu0 %v905, 96
        %v1596 = vpop.permute.xlu0 %1595
        %1597 = vrot.lane.b32.xlu0 %v907, 96
        %v1598 = vpop.permute.xlu0 %1597
        %1599 = vrot.lane.b32.xlu0 %v910, 96
        %v1600 = vpop.permute.xlu0 %1599
        %1601 = vrot.lane.b32.xlu0 %v912, 96
        %v1602 = vpop.permute.xlu0 %1601
        %1603 = vrot.lane.b32.xlu0 %v915, 96
        %v1604 = vpop.permute.xlu0 %1603
        %1605 = vrot.lane.b32.xlu0 %v917, 96
        %v1606 = vpop.permute.xlu0 %1605
        %1607 = vrot.lane.b32.xlu0 %v920, 96
        %v1608 = vpop.permute.xlu0 %1607
        %1609 = vrot.lane.b32.xlu0 %v922, 96
        %v1610 = vpop.permute.xlu0 %1609
        %1611 = vrot.lane.b32.xlu0 %v925, 96
        %v1612 = vpop.permute.xlu0 %1611
        %1613 = vrot.lane.b32.xlu0 %v927, 96
        %v1614 = vpop.permute.xlu0 %1613
        %1615 = vrot.lane.b32.xlu0 %v930, 96
        %v1616 = vpop.permute.xlu0 %1615
        %1617 = vrot.lane.b32.xlu0 %v932, 96
        %v1618 = vpop.permute.xlu0 %1617
        %1619 = vrot.lane.b32.xlu0 %v935, 96
        %v1620 = vpop.permute.xlu0 %1619
        %1621 = vrot.lane.b32.xlu0 %v937, 96
        %v1622 = vpop.permute.xlu0 %1621
        %1623 = vrot.lane.b32.xlu0 %v940, 96
        %v1624 = vpop.permute.xlu0 %1623
        %1625 = vrot.lane.b32.xlu0 %v942, 96
        %v1626 = vpop.permute.xlu0 %1625
        %1627 = vrot.lane.b32.xlu0 %v945, 96
        %v1628 = vpop.permute.xlu0 %1627
        %1629 = vrot.lane.b32.xlu0 %v947, 96
        %v1630 = vpop.permute.xlu0 %1629
        %1631 = vrot.lane.b32.xlu0 %v1325, 96
        %v1632 = vpop.permute.xlu0 %1631
        %1633 = vrot.lane.b32.xlu0 %v1327, 96
        %v1634 = vpop.permute.xlu0 %1633
        %1635 = vrot.lane.b32.xlu0 %v1330, 96
        %v1636 = vpop.permute.xlu0 %1635
        %1637 = vrot.lane.b32.xlu0 %v1332, 96
        %v1638 = vpop.permute.xlu0 %1637
        %1639 = vrot.lane.b32.xlu0 %v1575, 96
        %v1640 = vpop.permute.xlu0 %1639
        %1641 = vrot.lane.b32.xlu0 %v1577, 96
        %v1642 = vpop.permute.xlu0 %1641
        %1643 = vrot.lane.b32.xlu0 %v1580, 96
        %v1644 = vpop.permute.xlu0 %1643
        %1645 = vrot.lane.b32.xlu0 %v1582, 96
        %v1646 = vpop.permute.xlu0 %1645
        %v1679 = vrot.slane %v324, 4
        %v1680 = vrot.slane %v325, 4
        %v1681 = vsel %vm1044, %v1679, %v1680
        %v1682 = vrot.slane %v326, 4
        %v1683 = vsel %vm1044, %v1680, %v1682
        %v1684 = vrot.slane %v327, 4
        %v1685 = vrot.slane %v328, 4
        %v1686 = vsel %vm1044, %v1684, %v1685
        %v1687 = vrot.slane %v329, 4
        %v1688 = vsel %vm1044, %v1685, %v1687
        %vm1721 = vcmask 261120
        %v1722 = vsel %vm1721, %v270, %v949
        %v1723 = vsel %vm1721, %v271, %v951
        %v1724 = vsel %vm1721, %v273, %v953
        %v1725 = vsel %vm1721, %v274, %v955
        %v1726 = vsel %vm1721, %v276, %v957
        %v1727 = vsel %vm1721, %v277, %v959
        %v1728 = vsel %vm1721, %v279, %v961
        %v1729 = vsel %vm1721, %v280, %v963
        %v1730 = vsel %vm1721, %v282, %v965
        %v1731 = vsel %vm1721, %v283, %v967
        %v1732 = vsel %vm1721, %v285, %v969
        %v1733 = vsel %vm1721, %v286, %v971
        %v1734 = vsel %vm1721, %v288, %v973
        %v1735 = vsel %vm1721, %v289, %v975
        %v1736 = vsel %vm1721, %v291, %v977
        %v1737 = vsel %vm1721, %v292, %v979
        %v1738 = vsel %vm1721, %v294, %v981
        %v1739 = vsel %vm1721, %v295, %v983
        %v1740 = vsel %vm1721, %v297, %v985
        %v1741 = vsel %vm1721, %v298, %v987
        %v1742 = vsel %vm1721, %v300, %v989
        %v1743 = vsel %vm1721, %v301, %v991
        %v1744 = vsel %vm1721, %v303, %v993
        %v1745 = vsel %vm1721, %v304, %v995
        %v1746 = vsel %vm1721, %v306, %v997
        %v1747 = vsel %vm1721, %v307, %v999
        %v1748 = vsel %vm1721, %v309, %v1001
        %v1749 = vsel %vm1721, %v310, %v1003
        %v1750 = vsel %vm1721, %v312, %v1005
        %v1751 = vsel %vm1721, %v313, %v1007
        %v1752 = vsel %vm1721, %v315, %v1009
        %v1753 = vsel %vm1721, %v316, %v1011
        %vm1754 = vcmask 523264
        %v1755 = vsel %vm1754, %v1722, %v1126
        %v1756 = vsel %vm1754, %v1723, %v1128
        %v1757 = vsel %vm1754, %v1724, %v1130
        %v1758 = vsel %vm1754, %v1725, %v1132
        %v1759 = vsel %vm1754, %v1726, %v1134
        %v1760 = vsel %vm1754, %v1727, %v1136
        %v1761 = vsel %vm1754, %v1728, %v1138
        %v1762 = vsel %vm1754, %v1729, %v1140
        %v1763 = vsel %vm1754, %v1730, %v1142
        %v1764 = vsel %vm1754, %v1731, %v1144
        %v1765 = vsel %vm1754, %v1732, %v1146
        %v1766 = vsel %vm1754, %v1733, %v1148
        %v1767 = vsel %vm1754, %v1734, %v1150
        %v1768 = vsel %vm1754, %v1735, %v1152
        %v1769 = vsel %vm1754, %v1736, %v1154
        %v1770 = vsel %vm1754, %v1737, %v1156
        %v1771 = vsel %vm1754, %v1738, %v1158
        %v1772 = vsel %vm1754, %v1739, %v1160
        %v1773 = vsel %vm1754, %v1740, %v1162
        %v1774 = vsel %vm1754, %v1741, %v1164
        %v1775 = vsel %vm1754, %v1742, %v1166
        %v1776 = vsel %vm1754, %v1743, %v1168
        %v1777 = vsel %vm1754, %v1744, %v1170
        %v1778 = vsel %vm1754, %v1745, %v1172
        %v1779 = vsel %vm1754, %v1746, %v1174
        %v1780 = vsel %vm1754, %v1747, %v1176
        %v1781 = vsel %vm1754, %v1748, %v1178
        %v1782 = vsel %vm1754, %v1749, %v1180
        %v1783 = vsel %vm1754, %v1750, %v1182
        %v1784 = vsel %vm1754, %v1751, %v1184
        %v1785 = vsel %vm1754, %v1752, %v1186
        %v1786 = vsel %vm1754, %v1753, %v1188
        %vm1787 = vcmask 785408
        %v1788 = vsel %vm1787, %v1755, %v1226
        %v1789 = vsel %vm1787, %v1756, %v1228
        %v1790 = vsel %vm1787, %v1757, %v1230
        %v1791 = vsel %vm1787, %v1758, %v1232
        %v1792 = vsel %vm1787, %v1759, %v1234
        %v1793 = vsel %vm1787, %v1760, %v1236
        %v1794 = vsel %vm1787, %v1761, %v1238
        %v1795 = vsel %vm1787, %v1762, %v1240
        %v1796 = vsel %vm1787, %v1763, %v1242
        %v1797 = vsel %vm1787, %v1764, %v1244
        %v1798 = vsel %vm1787, %v1765, %v1246
        %v1799 = vsel %vm1787, %v1766, %v1248
        %v1800 = vsel %vm1787, %v1767, %v1250
        %v1801 = vsel %vm1787, %v1768, %v1252
        %v1802 = vsel %vm1787, %v1769, %v1254
        %v1803 = vsel %vm1787, %v1770, %v1256
        %v1804 = vsel %vm1787, %v1771, %v1258
        %v1805 = vsel %vm1787, %v1772, %v1260
        %v1806 = vsel %vm1787, %v1773, %v1262
        %v1807 = vsel %vm1787, %v1774, %v1264
        %v1808 = vsel %vm1787, %v1775, %v1266
        %v1809 = vsel %vm1787, %v1776, %v1268
        %v1810 = vsel %vm1787, %v1777, %v1270
        %v1811 = vsel %vm1787, %v1778, %v1272
        %v1812 = vsel %vm1787, %v1779, %v1274
        %v1813 = vsel %vm1787, %v1780, %v1276
        %v1814 = vsel %vm1787, %v1781, %v1278
        %v1815 = vsel %vm1787, %v1782, %v1280
        %v1816 = vsel %vm1787, %v1783, %v1282
        %v1817 = vsel %vm1787, %v1784, %v1284
        %v1818 = vsel %vm1787, %v1785, %v1286
        %v1819 = vsel %vm1787, %v1786, %v1288
        %v1820 = vsel %vm1721, %v880, %v1376
        %v1821 = vsel %vm1721, %v882, %v1378
        %v1822 = vsel %vm1721, %v885, %v1380
        %v1823 = vsel %vm1721, %v887, %v1382
        %v1824 = vsel %vm1721, %v890, %v1384
        %v1825 = vsel %vm1721, %v892, %v1386
        %v1826 = vsel %vm1721, %v895, %v1388
        %v1827 = vsel %vm1721, %v897, %v1390
        %v1828 = vsel %vm1721, %v900, %v1392
        %v1829 = vsel %vm1721, %v902, %v1394
        %v1830 = vsel %vm1721, %v905, %v1396
        %v1831 = vsel %vm1721, %v907, %v1398
        %v1832 = vsel %vm1721, %v910, %v1400
        %v1833 = vsel %vm1721, %v912, %v1402
        %v1834 = vsel %vm1721, %v915, %v1404
        %v1835 = vsel %vm1721, %v917, %v1406
        %v1836 = vsel %vm1721, %v920, %v1408
        %v1837 = vsel %vm1721, %v922, %v1410
        %v1838 = vsel %vm1721, %v925, %v1412
        %v1839 = vsel %vm1721, %v927, %v1414
        %v1840 = vsel %vm1721, %v930, %v1416
        %v1841 = vsel %vm1721, %v932, %v1418
        %v1842 = vsel %vm1721, %v935, %v1420
        %v1843 = vsel %vm1721, %v937, %v1422
        %v1844 = vsel %vm1721, %v940, %v1424
        %v1845 = vsel %vm1721, %v942, %v1426
        %v1846 = vsel %vm1721, %v945, %v1428
        %v1847 = vsel %vm1721, %v947, %v1430
        %v1848 = vsel %vm1721, %v1325, %v1432
        %v1849 = vsel %vm1721, %v1327, %v1434
        %v1850 = vsel %vm1721, %v1330, %v1436
        %v1851 = vsel %vm1721, %v1332, %v1438
        %v1852 = vsel %vm1754, %v1820, %v1476
        %v1853 = vsel %vm1754, %v1821, %v1478
        %v1854 = vsel %vm1754, %v1822, %v1480
        %v1855 = vsel %vm1754, %v1823, %v1482
        %v1856 = vsel %vm1754, %v1824, %v1484
        %v1857 = vsel %vm1754, %v1825, %v1486
        %v1858 = vsel %vm1754, %v1826, %v1488
        %v1859 = vsel %vm1754, %v1827, %v1490
        %v1860 = vsel %vm1754, %v1828, %v1492
        %v1861 = vsel %vm1754, %v1829, %v1494
        %v1862 = vsel %vm1754, %v1830, %v1496
        %v1863 = vsel %vm1754, %v1831, %v1498
        %v1864 = vsel %vm1754, %v1832, %v1500
        %v1865 = vsel %vm1754, %v1833, %v1502
        %v1866 = vsel %vm1754, %v1834, %v1504
        %v1867 = vsel %vm1754, %v1835, %v1506
        %v1868 = vsel %vm1754, %v1836, %v1508
        %v1869 = vsel %vm1754, %v1837, %v1510
        %v1870 = vsel %vm1754, %v1838, %v1512
        %v1871 = vsel %vm1754, %v1839, %v1514
        %v1872 = vsel %vm1754, %v1840, %v1516
        %v1873 = vsel %vm1754, %v1841, %v1518
        %v1874 = vsel %vm1754, %v1842, %v1520
        %v1875 = vsel %vm1754, %v1843, %v1522
        %v1876 = vsel %vm1754, %v1844, %v1524
        %v1877 = vsel %vm1754, %v1845, %v1526
        %v1878 = vsel %vm1754, %v1846, %v1528
        %v1879 = vsel %vm1754, %v1847, %v1530
        %v1880 = vsel %vm1754, %v1848, %v1532
        %v1881 = vsel %vm1754, %v1849, %v1534
        %v1882 = vsel %vm1754, %v1850, %v1536
        %v1883 = vsel %vm1754, %v1851, %v1538
        %v1884 = vsel %vm1787, %v1852, %v1584
        %v1885 = vsel %vm1787, %v1853, %v1586
        %v1886 = vsel %vm1787, %v1854, %v1588
        %v1887 = vsel %vm1787, %v1855, %v1590
        %v1888 = vsel %vm1787, %v1856, %v1592
        %v1889 = vsel %vm1787, %v1857, %v1594
        %v1890 = vsel %vm1787, %v1858, %v1596
        %v1891 = vsel %vm1787, %v1859, %v1598
        %v1892 = vsel %vm1787, %v1860, %v1600
        %v1893 = vsel %vm1787, %v1861, %v1602
        %v1894 = vsel %vm1787, %v1862, %v1604
        %v1895 = vsel %vm1787, %v1863, %v1606
        %v1896 = vsel %vm1787, %v1864, %v1608
        %v1897 = vsel %vm1787, %v1865, %v1610
        %v1898 = vsel %vm1787, %v1866, %v1612
        %v1899 = vsel %vm1787, %v1867, %v1614
        %v1900 = vsel %vm1787, %v1868, %v1616
        %v1901 = vsel %vm1787, %v1869, %v1618
        %v1902 = vsel %vm1787, %v1870, %v1620
        %v1903 = vsel %vm1787, %v1871, %v1622
        %v1904 = vsel %vm1787, %v1872, %v1624
        %v1905 = vsel %vm1787, %v1873, %v1626
        %v1906 = vsel %vm1787, %v1874, %v1628
        %v1907 = vsel %vm1787, %v1875, %v1630
        %v1908 = vsel %vm1787, %v1876, %v1632
        %v1909 = vsel %vm1787, %v1877, %v1634
        %v1910 = vsel %vm1787, %v1878, %v1636
        %v1911 = vsel %vm1787, %v1879, %v1638
        %v1912 = vsel %vm1787, %v1880, %v1640
        %v1913 = vsel %vm1787, %v1881, %v1642
        %v1914 = vsel %vm1787, %v1882, %v1644
        %v1915 = vsel %vm1787, %v1883, %v1646
        %v1916 = vsel %vm1721, %v1067, %v339
        %v1917 = vsel %vm1721, %v1069, %v343
        %v1918 = vsel %vm1721, %v1072, %v350
        %v1919 = vsel %vm1721, %v1074, %v354
        %v1920 = vsel %vm1721, %v1077, %v361
        %v1921 = vsel %vm1721, %v1079, %v365
        %v1922 = vsel %vm1721, %v1082, %v372
        %v1923 = vsel %vm1721, %v1084, %v376
        %v1924 = vsel %vm1721, %v1087, %v383
        %v1925 = vsel %vm1721, %v1089, %v387
        %v1926 = vsel %vm1721, %v1092, %v394
        %v1927 = vsel %vm1721, %v1094, %v398
        %v1928 = vsel %vm1721, %v1097, %v405
        %v1929 = vsel %vm1721, %v1099, %v409
        %v1930 = vsel %vm1721, %v1102, %v416
        %v1931 = vsel %vm1721, %v1104, %v420
        %v1932 = vsel %vm1721, %v1107, %v427
        %v1933 = vsel %vm1721, %v1109, %v431
        %v1934 = vsel %vm1721, %v1112, %v438
        %v1935 = vsel %vm1721, %v1114, %v442
        %v1936 = vsel %vm1721, %v1117, %v449
        %v1937 = vsel %vm1721, %v1119, %v453
        %v1938 = vsel %vm1721, %v1122, %v460
        %v1939 = vsel %vm1721, %v1124, %v464
        %v1940 = vsel %vm1721, %v1367, %v471
        %v1941 = vsel %vm1721, %v1369, %v475
        %v1942 = vsel %vm1721, %v1372, %v482
        %v1943 = vsel %vm1721, %v1374, %v486
        %v1944 = vsel %vm1721, %v1681, %v493
        %v1945 = vsel %vm1721, %v1683, %v497
        %v1946 = vsel %vm1721, %v1686, %v504
        %v1947 = vsel %vm1721, %v1688, %v508
        %vm1948 = vcmask 269312
        %v1949 = vsel %vm1948, %v1916, %v512
        %v1950 = vsel %vm1948, %v1917, %v516
        %v1951 = vsel %vm1948, %v1918, %v520
        %v1952 = vsel %vm1948, %v1919, %v524
        %v1953 = vsel %vm1948, %v1920, %v528
        %v1954 = vsel %vm1948, %v1921, %v532
        %v1955 = vsel %vm1948, %v1922, %v536
        %v1956 = vsel %vm1948, %v1923, %v540
        %v1957 = vsel %vm1948, %v1924, %v544
        %v1958 = vsel %vm1948, %v1925, %v548
        %v1959 = vsel %vm1948, %v1926, %v552
        %v1960 = vsel %vm1948, %v1927, %v556
        %v1961 = vsel %vm1948, %v1928, %v560
        %v1962 = vsel %vm1948, %v1929, %v564
        %v1963 = vsel %vm1948, %v1930, %v568
        %v1964 = vsel %vm1948, %v1931, %v572
        %v1965 = vsel %vm1948, %v1932, %v576
        %v1966 = vsel %vm1948, %v1933, %v580
        %v1967 = vsel %vm1948, %v1934, %v584
        %v1968 = vsel %vm1948, %v1935, %v588
        %v1969 = vsel %vm1948, %v1936, %v592
        %v1970 = vsel %vm1948, %v1937, %v596
        %v1971 = vsel %vm1948, %v1938, %v600
        %v1972 = vsel %vm1948, %v1939, %v604
        %v1973 = vsel %vm1948, %v1940, %v608
        %v1974 = vsel %vm1948, %v1941, %v612
        %v1975 = vsel %vm1948, %v1942, %v616
        %v1976 = vsel %vm1948, %v1943, %v620
        %v1977 = vsel %vm1948, %v1944, %v624
        %v1978 = vsel %vm1948, %v1945, %v628
        %v1979 = vsel %vm1948, %v1946, %v632
        %v1980 = vsel %vm1948, %v1947, %v636
        %vm1981 = vcmask 277504
        %v1982 = vsel %vm1981, %v1949, %v640
        %v1983 = vsel %vm1981, %v1950, %v644
        %v1984 = vsel %vm1981, %v1951, %v648
        %v1985 = vsel %vm1981, %v1952, %v652
        %v1986 = vsel %vm1981, %v1953, %v656
        %v1987 = vsel %vm1981, %v1954, %v660
        %v1988 = vsel %vm1981, %v1955, %v664
        %v1989 = vsel %vm1981, %v1956, %v668
        %v1990 = vsel %vm1981, %v1957, %v672
        %v1991 = vsel %vm1981, %v1958, %v676
        %v1992 = vsel %vm1981, %v1959, %v680
        %v1993 = vsel %vm1981, %v1960, %v684
        %v1994 = vsel %vm1981, %v1961, %v688
        %v1995 = vsel %vm1981, %v1962, %v692
        %v1996 = vsel %vm1981, %v1963, %v696
        %v1997 = vsel %vm1981, %v1964, %v700
        %v1998 = vsel %vm1981, %v1965, %v704
        %v1999 = vsel %vm1981, %v1966, %v708
        %v2000 = vsel %vm1981, %v1967, %v712
        %v2001 = vsel %vm1981, %v1968, %v716
        %v2002 = vsel %vm1981, %v1969, %v720
        %v2003 = vsel %vm1981, %v1970, %v724
        %v2004 = vsel %vm1981, %v1971, %v728
        %v2005 = vsel %vm1981, %v1972, %v732
        %v2006 = vsel %vm1981, %v1973, %v736
        %v2007 = vsel %vm1981, %v1974, %v740
        %v2008 = vsel %vm1981, %v1975, %v744
        %v2009 = vsel %vm1981, %v1976, %v748
        %v2010 = vsel %vm1981, %v1977, %v752
        %v2011 = vsel %vm1981, %v1978, %v756
        %v2012 = vsel %vm1981, %v1979, %v760
        %v2013 = vsel %vm1981, %v1980, %v764
        %vm2014 = vcmask 285696
        %v2015 = vsel %vm2014, %v1982, %v350
        %v2016 = vsel %vm2014, %v1983, %v354
        %v2017 = vsel %vm2014, %v1984, %v361
        %v2018 = vsel %vm2014, %v1985, %v365
        %v2019 = vsel %vm2014, %v1986, %v372
        %v2020 = vsel %vm2014, %v1987, %v376
        %v2021 = vsel %vm2014, %v1988, %v383
        %v2022 = vsel %vm2014, %v1989, %v387
        %v2023 = vsel %vm2014, %v1990, %v394
        %v2024 = vsel %vm2014, %v1991, %v398
        %v2025 = vsel %vm2014, %v1992, %v405
        %v2026 = vsel %vm2014, %v1993, %v409
        %v2027 = vsel %vm2014, %v1994, %v416
        %v2028 = vsel %vm2014, %v1995, %v420
        %v2029 = vsel %vm2014, %v1996, %v427
        %v2030 = vsel %vm2014, %v1997, %v431
        %v2031 = vsel %vm2014, %v1998, %v438
        %v2032 = vsel %vm2014, %v1999, %v442
        %v2033 = vsel %vm2014, %v2000, %v449
        %v2034 = vsel %vm2014, %v2001, %v453
        %v2035 = vsel %vm2014, %v2002, %v460
        %v2036 = vsel %vm2014, %v2003, %v464
        %v2037 = vsel %vm2014, %v2004, %v471
        %v2038 = vsel %vm2014, %v2005, %v475
        %v2039 = vsel %vm2014, %v2006, %v482
        %v2040 = vsel %vm2014, %v2007, %v486
        %v2041 = vsel %vm2014, %v2008, %v493
        %v2042 = vsel %vm2014, %v2009, %v497
        %v2043 = vsel %vm2014, %v2010, %v504
        %v2044 = vsel %vm2014, %v2011, %v508
        %v2045 = vsel %vm2014, %v2012, %v771
        %v2046 = vsel %vm2014, %v2013, %v775
        %vm2047 = vcmask 293888
        %v2048 = vsel %vm2047, %v2015, %v520
        %v2049 = vsel %vm2047, %v2016, %v524
        %v2050 = vsel %vm2047, %v2017, %v528
        %v2051 = vsel %vm2047, %v2018, %v532
        %v2052 = vsel %vm2047, %v2019, %v536
        %v2053 = vsel %vm2047, %v2020, %v540
        %v2054 = vsel %vm2047, %v2021, %v544
        %v2055 = vsel %vm2047, %v2022, %v548
        %v2056 = vsel %vm2047, %v2023, %v552
        %v2057 = vsel %vm2047, %v2024, %v556
        %v2058 = vsel %vm2047, %v2025, %v560
        %v2059 = vsel %vm2047, %v2026, %v564
        %v2060 = vsel %vm2047, %v2027, %v568
        %v2061 = vsel %vm2047, %v2028, %v572
        %v2062 = vsel %vm2047, %v2029, %v576
        %v2063 = vsel %vm2047, %v2030, %v580
        %v2064 = vsel %vm2047, %v2031, %v584
        %v2065 = vsel %vm2047, %v2032, %v588
        %v2066 = vsel %vm2047, %v2033, %v592
        %v2067 = vsel %vm2047, %v2034, %v596
        %v2068 = vsel %vm2047, %v2035, %v600
        %v2069 = vsel %vm2047, %v2036, %v604
        %v2070 = vsel %vm2047, %v2037, %v608
        %v2071 = vsel %vm2047, %v2038, %v612
        %v2072 = vsel %vm2047, %v2039, %v616
        %v2073 = vsel %vm2047, %v2040, %v620
        %v2074 = vsel %vm2047, %v2041, %v624
        %v2075 = vsel %vm2047, %v2042, %v628
        %v2076 = vsel %vm2047, %v2043, %v632
        %v2077 = vsel %vm2047, %v2044, %v636
        %v2078 = vsel %vm2047, %v2045, %v779
        %v2079 = vsel %vm2047, %v2046, %v783
        %vm2080 = vcmask 302080
        %v2081 = vsel %vm2080, %v2048, %v648
        %v2082 = vsel %vm2080, %v2049, %v652
        %v2083 = vsel %vm2080, %v2050, %v656
        %v2084 = vsel %vm2080, %v2051, %v660
        %v2085 = vsel %vm2080, %v2052, %v664
        %v2086 = vsel %vm2080, %v2053, %v668
        %v2087 = vsel %vm2080, %v2054, %v672
        %v2088 = vsel %vm2080, %v2055, %v676
        %v2089 = vsel %vm2080, %v2056, %v680
        %v2090 = vsel %vm2080, %v2057, %v684
        %v2091 = vsel %vm2080, %v2058, %v688
        %v2092 = vsel %vm2080, %v2059, %v692
        %v2093 = vsel %vm2080, %v2060, %v696
        %v2094 = vsel %vm2080, %v2061, %v700
        %v2095 = vsel %vm2080, %v2062, %v704
        %v2096 = vsel %vm2080, %v2063, %v708
        %v2097 = vsel %vm2080, %v2064, %v712
        %v2098 = vsel %vm2080, %v2065, %v716
        %v2099 = vsel %vm2080, %v2066, %v720
        %v2100 = vsel %vm2080, %v2067, %v724
        %v2101 = vsel %vm2080, %v2068, %v728
        %v2102 = vsel %vm2080, %v2069, %v732
        %v2103 = vsel %vm2080, %v2070, %v736
        %v2104 = vsel %vm2080, %v2071, %v740
        %v2105 = vsel %vm2080, %v2072, %v744
        %v2106 = vsel %vm2080, %v2073, %v748
        %v2107 = vsel %vm2080, %v2074, %v752
        %v2108 = vsel %vm2080, %v2075, %v756
        %v2109 = vsel %vm2080, %v2076, %v760
        %v2110 = vsel %vm2080, %v2077, %v764
        %v2111 = vsel %vm2080, %v2078, %v787
        %v2112 = vsel %vm2080, %v2079, %v791
        %vm2113 = vcmask 310272
        %v2114 = vsel %vm2113, %v2081, %v361
        %v2115 = vsel %vm2113, %v2082, %v365
        %v2116 = vsel %vm2113, %v2083, %v372
        %v2117 = vsel %vm2113, %v2084, %v376
        %v2118 = vsel %vm2113, %v2085, %v383
        %v2119 = vsel %vm2113, %v2086, %v387
        %v2120 = vsel %vm2113, %v2087, %v394
        %v2121 = vsel %vm2113, %v2088, %v398
        %v2122 = vsel %vm2113, %v2089, %v405
        %v2123 = vsel %vm2113, %v2090, %v409
        %v2124 = vsel %vm2113, %v2091, %v416
        %v2125 = vsel %vm2113, %v2092, %v420
        %v2126 = vsel %vm2113, %v2093, %v427
        %v2127 = vsel %vm2113, %v2094, %v431
        %v2128 = vsel %vm2113, %v2095, %v438
        %v2129 = vsel %vm2113, %v2096, %v442
        %v2130 = vsel %vm2113, %v2097, %v449
        %v2131 = vsel %vm2113, %v2098, %v453
        %v2132 = vsel %vm2113, %v2099, %v460
        %v2133 = vsel %vm2113, %v2100, %v464
        %v2134 = vsel %vm2113, %v2101, %v471
        %v2135 = vsel %vm2113, %v2102, %v475
        %v2136 = vsel %vm2113, %v2103, %v482
        %v2137 = vsel %vm2113, %v2104, %v486
        %v2138 = vsel %vm2113, %v2105, %v493
        %v2139 = vsel %vm2113, %v2106, %v497
        %v2140 = vsel %vm2113, %v2107, %v504
        %v2141 = vsel %vm2113, %v2108, %v508
        %v2142 = vsel %vm2113, %v2109, %v771
        %v2143 = vsel %vm2113, %v2110, %v775
        %v2144 = vsel %vm2113, %v2111, %v798
        %v2145 = vsel %vm2113, %v2112, %v802
        %vm2146 = vcmask 7168
        %v2147 = vsel %vm2146, %v528, %v656
        %v2148 = vsel %vm2146, %v532, %v660
        %v2149 = vsel %vm2146, %v536, %v664
        %v2150 = vsel %vm2146, %v540, %v668
        %v2151 = vsel %vm2146, %v544, %v672
        %v2152 = vsel %vm2146, %v548, %v676
        %v2153 = vsel %vm2146, %v552, %v680
        %v2154 = vsel %vm2146, %v556, %v684
        %v2155 = vsel %vm2146, %v560, %v688
        %v2156 = vsel %vm2146, %v564, %v692
        %v2157 = vsel %vm2146, %v568, %v696
        %v2158 = vsel %vm2146, %v572, %v700
        %v2159 = vsel %vm2146, %v576, %v704
        %v2160 = vsel %vm2146, %v580, %v708
        %v2161 = vsel %vm2146, %v584, %v712
        %v2162 = vsel %vm2146, %v588, %v716
        %v2163 = vsel %vm2146, %v592, %v720
        %v2164 = vsel %vm2146, %v596, %v724
        %v2165 = vsel %vm2146, %v600, %v728
        %v2166 = vsel %vm2146, %v604, %v732
        %v2167 = vsel %vm2146, %v608, %v736
        %v2168 = vsel %vm2146, %v612, %v740
        %v2169 = vsel %vm2146, %v616, %v744
        %v2170 = vsel %vm2146, %v620, %v748
        %v2171 = vsel %vm2146, %v624, %v752
        %v2172 = vsel %vm2146, %v628, %v756
        %v2173 = vsel %vm2146, %v632, %v760
        %v2174 = vsel %vm2146, %v636, %v764
        %v2175 = vsel %vm2146, %v779, %v787
        %v2176 = vsel %vm2146, %v783, %v791
        %v2177 = vsel %vm2146, %v806, %v814
        %v2178 = vsel %vm2146, %v810, %v818
        %2211 = vrot.lane.b32.xlu0 %v2147, 39
        %v2212 = vpop.permute.xlu0 %2211
        %2213 = vrot.lane.b32.xlu0 %v2148, 39
        %v2214 = vpop.permute.xlu0 %2213
        %2215 = vrot.lane.b32.xlu0 %v2149, 39
        %v2216 = vpop.permute.xlu0 %2215
        %2217 = vrot.lane.b32.xlu0 %v2150, 39
        %v2218 = vpop.permute.xlu0 %2217
        %2219 = vrot.lane.b32.xlu0 %v2151, 39
        %v2220 = vpop.permute.xlu0 %2219
        %2221 = vrot.lane.b32.xlu0 %v2152, 39
        %v2222 = vpop.permute.xlu0 %2221
        %2223 = vrot.lane.b32.xlu0 %v2153, 39
        %v2224 = vpop.permute.xlu0 %2223
        %2225 = vrot.lane.b32.xlu0 %v2154, 39
        %v2226 = vpop.permute.xlu0 %2225
        %2227 = vrot.lane.b32.xlu0 %v2155, 39
        %v2228 = vpop.permute.xlu0 %2227
        %2229 = vrot.lane.b32.xlu0 %v2156, 39
        %v2230 = vpop.permute.xlu0 %2229
        %2231 = vrot.lane.b32.xlu0 %v2157, 39
        %v2232 = vpop.permute.xlu0 %2231
        %2233 = vrot.lane.b32.xlu0 %v2158, 39
        %v2234 = vpop.permute.xlu0 %2233
        %2235 = vrot.lane.b32.xlu0 %v2159, 39
        %v2236 = vpop.permute.xlu0 %2235
        %2237 = vrot.lane.b32.xlu0 %v2160, 39
        %v2238 = vpop.permute.xlu0 %2237
        %2239 = vrot.lane.b32.xlu0 %v2161, 39
        %v2240 = vpop.permute.xlu0 %2239
        %2241 = vrot.lane.b32.xlu0 %v2162, 39
        %v2242 = vpop.permute.xlu0 %2241
        %2243 = vrot.lane.b32.xlu0 %v2163, 39
        %v2244 = vpop.permute.xlu0 %2243
        %2245 = vrot.lane.b32.xlu0 %v2164, 39
        %v2246 = vpop.permute.xlu0 %2245
        %2247 = vrot.lane.b32.xlu0 %v2165, 39
        %v2248 = vpop.permute.xlu0 %2247
        %2249 = vrot.lane.b32.xlu0 %v2166, 39
        %v2250 = vpop.permute.xlu0 %2249
        %2251 = vrot.lane.b32.xlu0 %v2167, 39
        %v2252 = vpop.permute.xlu0 %2251
        %2253 = vrot.lane.b32.xlu0 %v2168, 39
        %v2254 = vpop.permute.xlu0 %2253
        %2255 = vrot.lane.b32.xlu0 %v2169, 39
        %v2256 = vpop.permute.xlu0 %2255
        %2257 = vrot.lane.b32.xlu0 %v2170, 39
        %v2258 = vpop.permute.xlu0 %2257
        %2259 = vrot.lane.b32.xlu0 %v2171, 39
        %v2260 = vpop.permute.xlu0 %2259
        %2261 = vrot.lane.b32.xlu0 %v2172, 39
        %v2262 = vpop.permute.xlu0 %2261
        %2263 = vrot.lane.b32.xlu0 %v2173, 39
        %v2264 = vpop.permute.xlu0 %2263
        %2265 = vrot.lane.b32.xlu0 %v2174, 39
        %v2266 = vpop.permute.xlu0 %2265
        %2267 = vrot.lane.b32.xlu0 %v2175, 39
        %v2268 = vpop.permute.xlu0 %2267
        %2269 = vrot.lane.b32.xlu0 %v2176, 39
        %v2270 = vpop.permute.xlu0 %2269
        %2271 = vrot.lane.b32.xlu0 %v2177, 39
        %v2272 = vpop.permute.xlu0 %2271
        %2273 = vrot.lane.b32.xlu0 %v2178, 39
        %v2274 = vpop.permute.xlu0 %2273
        %vm2307 = vcmask 318464
        %v2308 = vsel %vm2307, %v2114, %v2212
        %v2309 = vsel %vm2307, %v2115, %v2214
        %v2310 = vsel %vm2307, %v2116, %v2216
        %v2311 = vsel %vm2307, %v2117, %v2218
        %v2312 = vsel %vm2307, %v2118, %v2220
        %v2313 = vsel %vm2307, %v2119, %v2222
        %v2314 = vsel %vm2307, %v2120, %v2224
        %v2315 = vsel %vm2307, %v2121, %v2226
        %v2316 = vsel %vm2307, %v2122, %v2228
        %v2317 = vsel %vm2307, %v2123, %v2230
        %v2318 = vsel %vm2307, %v2124, %v2232
        %v2319 = vsel %vm2307, %v2125, %v2234
        %v2320 = vsel %vm2307, %v2126, %v2236
        %v2321 = vsel %vm2307, %v2127, %v2238
        %v2322 = vsel %vm2307, %v2128, %v2240
        %v2323 = vsel %vm2307, %v2129, %v2242
        %v2324 = vsel %vm2307, %v2130, %v2244
        %v2325 = vsel %vm2307, %v2131, %v2246
        %v2326 = vsel %vm2307, %v2132, %v2248
        %v2327 = vsel %vm2307, %v2133, %v2250
        %v2328 = vsel %vm2307, %v2134, %v2252
        %v2329 = vsel %vm2307, %v2135, %v2254
        %v2330 = vsel %vm2307, %v2136, %v2256
        %v2331 = vsel %vm2307, %v2137, %v2258
        %v2332 = vsel %vm2307, %v2138, %v2260
        %v2333 = vsel %vm2307, %v2139, %v2262
        %v2334 = vsel %vm2307, %v2140, %v2264
        %v2335 = vsel %vm2307, %v2141, %v2266
        %v2336 = vsel %vm2307, %v2142, %v2268
        %v2337 = vsel %vm2307, %v2143, %v2270
        %v2338 = vsel %vm2307, %v2144, %v2272
        %v2339 = vsel %vm2307, %v2145, %v2274
        %v2340 = vld [vmem:[%s2] sm:$0xff]
        %v2341 = vld [vmem:[%s2 + $0x8] sm:$0xff]
        %v2342 = vld [vmem:[%s2 + $0x10] sm:$0xff]
        %v2343 = vld [vmem:[%s2 + $0x18] sm:$0xff]
        %v2344 = vld [vmem:[%s2 + $0x20] sm:$0xff]
        %v2345 = vld [vmem:[%s2 + $0x28] sm:$0xff]
        %v2346 = vld [vmem:[%s2 + $0x30] sm:$0xff]
        %v2347 = vld [vmem:[%s2 + $0x38] sm:$0xff]
        %v2348 = vld [vmem:[%s2 + $0x40] sm:$0xff]
        %v2349 = vld [vmem:[%s2 + $0x48] sm:$0xff]
        %v2350 = vld [vmem:[%s2 + $0x50] sm:$0xff]
        %v2351 = vld [vmem:[%s2 + $0x58] sm:$0xff]
        %v2352 = vld [vmem:[%s2 + $0x60] sm:$0xff]
        %v2353 = vld [vmem:[%s2 + $0x68] sm:$0xff]
        %v2354 = vld [vmem:[%s2 + $0x70] sm:$0xff]
        %v2355 = vld [vmem:[%s2 + $0x78] sm:$0xff]
        %v2356 = vld [vmem:[%s2 + $0x80] sm:$0xff]
        %v2357 = vld [vmem:[%s2 + $0x88] sm:$0xff]
        %v2358 = vld [vmem:[%s2 + $0x90] sm:$0xff]
        %v2359 = vld [vmem:[%s2 + $0x98] sm:$0xff]
        %v2360 = vld [vmem:[%s2 + $0xa0] sm:$0xff]
        %v2361 = vld [vmem:[%s2 + $0xa8] sm:$0xff]
        %v2362 = vld [vmem:[%s2 + $0xb0] sm:$0xff]
        %v2363 = vld [vmem:[%s2 + $0xb8] sm:$0xff]
        %v2364 = vld [vmem:[%s2 + $0xc0] sm:$0xff]
        %v2365 = vld [vmem:[%s2 + $0xc8] sm:$0xff]
        %v2366 = vld [vmem:[%s2 + $0xd0] sm:$0xff]
        %v2367 = vld [vmem:[%s2 + $0xd8] sm:$0xff]
        %v2368 = vld [vmem:[%s2 + $0xe0] sm:$0xff]
        %v2369 = vld [vmem:[%s2 + $0xe8] sm:$0xff]
        %v2370 = vld [vmem:[%s2 + $0xf0] sm:$0xff]
        %v2371 = vld [vmem:[%s2 + $0xf8] sm:$0xff]
        %v2372 = vld [vmem:[%s2 + $0x100] sm:$0xff]
        %v2373 = vld [vmem:[%s2 + $0x108] sm:$0xff]
        %v2374 = vld [vmem:[%s2 + $0x110] sm:$0xff]
        %v2375 = vld [vmem:[%s2 + $0x118] sm:$0xff]
        %v2376 = vld [vmem:[%s2 + $0x120] sm:$0xff]
        %v2377 = vld [vmem:[%s2 + $0x128] sm:$0x1]
        %v2378 = vld [vmem:[%s3] sm:$0x1]
        %v2380 = vlaneseq
        %v2381 = vshrl.u32 %v2380, 7
        %v2382 = vsub.s32 0, %v2381
        %v2383 = vrot.slane %v2378, %v2382
        %vm2385 = vcmask 334848
        %v2387 = vsel %vm2385, %v2308, 0
        %v2390 = vsel %vm2385, %v2309, 0
        %v2393 = vsel %vm2385, %v2310, 0
        %v2396 = vsel %vm2385, %v2311, 0
        %v2399 = vsel %vm2385, %v2312, 0
        %v2402 = vsel %vm2385, %v2313, 0
        %v2405 = vsel %vm2385, %v2314, 0
        %v2408 = vsel %vm2385, %v2315, 0
        %v2411 = vsel %vm2385, %v2316, 0
        %v2414 = vsel %vm2385, %v2317, 0
        %v2417 = vsel %vm2385, %v2318, 0
        %v2420 = vsel %vm2385, %v2319, 0
        %v2423 = vsel %vm2385, %v2320, 0
        %v2426 = vsel %vm2385, %v2321, 0
        %v2429 = vsel %vm2385, %v2322, 0
        %v2432 = vsel %vm2385, %v2323, 0
        %v2435 = vsel %vm2385, %v2324, 0
        %v2438 = vsel %vm2385, %v2325, 0
        %v2441 = vsel %vm2385, %v2326, 0
        %v2444 = vsel %vm2385, %v2327, 0
        %v2447 = vsel %vm2385, %v2328, 0
        %v2450 = vsel %vm2385, %v2329, 0
        %v2453 = vsel %vm2385, %v2330, 0
        %v2456 = vsel %vm2385, %v2331, 0
        %v2459 = vsel %vm2385, %v2332, 0
        %v2462 = vsel %vm2385, %v2333, 0
        %v2465 = vsel %vm2385, %v2334, 0
        %v2468 = vsel %vm2385, %v2335, 0
        %v2471 = vsel %vm2385, %v2336, 0
        %v2474 = vsel %vm2385, %v2337, 0
        %v2477 = vsel %vm2385, %v2338, 0
        %v2480 = vsel %vm2385, %v2339, 0
        %vm2482 = vcmask 1040384
        %v2484 = vsel %vm2482, %v2377, 0
        %2486 = vmatprep.subr.mxu0 0.0
        %2487 = vmatpush1.msra.mxu0 %v2340
        %2488 = vmatprep.subr.mxu0 0.0
        %2489 = vmatpush1.msra.mxu0 %v2341
        %2490 = vmatprep.subr.mxu0 0.0
        %2491 = vmatpush1.msra.mxu0 %v2342
        %2492 = vmatprep.subr.mxu0 0.0
        %2493 = vmatpush1.msra.mxu0 %v2343
        %2494 = vmatprep.subr.mxu0 0.0
        %2495 = vmatpush1.msra.mxu0 %v2344
        %2496 = vmatprep.subr.mxu0 0.0
        %2497 = vmatpush1.msra.mxu0 %v2345
        %2498 = vmatprep.subr.mxu0 0.0
        %2499 = vmatpush1.msra.mxu0 %v2346
        %2500 = vmatprep.subr.mxu0 0.0
        %2501 = vmatpush1.msra.mxu0 %v2347
        %2502 = vmatprep.subr.mxu0 0.0
        %2503 = vmatpush1.msra.mxu0 %v2348
        %2504 = vmatprep.subr.mxu0 0.0
        %2505 = vmatpush1.msra.mxu0 %v2349
        %2506 = vmatprep.subr.mxu0 0.0
        %2507 = vmatpush1.msra.mxu0 %v2350
        %2508 = vmatprep.subr.mxu0 0.0
        %2509 = vmatpush1.msra.mxu0 %v2351
        %2510 = vmatprep.subr.mxu0 0.0
        %2511 = vmatpush1.msra.mxu0 %v2352
        %2512 = vmatprep.subr.mxu0 0.0
        %2513 = vmatpush1.msra.mxu0 %v2353
        %2514 = vmatprep.subr.mxu0 0.0
        %2515 = vmatpush1.msra.mxu0 %v2354
        %2516 = vmatprep.subr.mxu0 0.0
        %2517 = vmatpush1.msra.mxu0 %v2355
        %2518 = vmatprep.subr.mxu0 0.0
        %2519 = vmatpush1.msra.mxu0 %v2356
        %2520 = vmatprep.subr.mxu0 0.0
        %2521 = vmatpush1.msra.mxu0 %v2357
        %2522 = vmatprep.subr.mxu0 0.0
        %2523 = vmatpush1.msra.mxu0 %v2358
        %2524 = vmatprep.subr.mxu0 0.0
        %2525 = vmatpush1.msra.mxu0 %v2359
        %2526 = vmatprep.subr.mxu0 0.0
        %2527 = vmatpush1.msra.mxu0 %v2360
        %2528 = vmatprep.subr.mxu0 0.0
        %2529 = vmatpush1.msra.mxu0 %v2361
        %2530 = vmatprep.subr.mxu0 0.0
        %2531 = vmatpush1.msra.mxu0 %v2362
        %2532 = vmatprep.subr.mxu0 0.0
        %2533 = vmatpush1.msra.mxu0 %v2363
        %2534 = vmatprep.subr.mxu0 0.0
        %2535 = vmatpush1.msra.mxu0 %v2364
        %2536 = vmatprep.subr.mxu0 0.0
        %2537 = vmatpush1.msra.mxu0 %v2365
        %2538 = vmatprep.subr.mxu0 0.0
        %2539 = vmatpush1.msra.mxu0 %v2366
        %2540 = vmatprep.subr.mxu0 0.0
        %2541 = vmatpush1.msra.mxu0 %v2367
        %2542 = vmatprep.subr.mxu0 0.0
        %2543 = vmatpush1.msra.mxu0 %v2368
        %2544 = vmatprep.subr.mxu0 0.0
        %2545 = vmatpush1.msra.mxu0 %v2369
        %2546 = vmatprep.subr.mxu0 0.0
        %2547 = vmatpush1.msra.mxu0 %v2370
        %2548 = vmatprep.subr.mxu0 0.0
        %2549 = vmatpush1.msra.mxu0 %v2371
        %2550 = vmatprep.mubr.f32.mxu0 %v1884
        %2551 = vmatmul.mubr.f32.gmra.mrb[0].mxu0 %v1788
        %v2552 = vpop.f32.mrb[0].mxu0
        %v2553 = vadd.f32 %v2383, %v2552
        %v2554 = vpop.f32.mrb[0].mxu0
        %2555 = vmatprep.mubr.f32.mxu0 %v1885
        %2556 = vmatmul.mubr.f32.gmra.mrb[0].mxu0 %v1789
        %v2557 = vpop.f32.mrb[0].mxu0
        %v2558 = vadd.f32 %v2383, %v2557
        %v2559 = vpop.f32.mrb[0].mxu0
        %2560 = vmatprep.mubr.f32.mxu0 %v1886
        %2561 = vmatmul.mubr.f32.gmra.mrb[0].mxu0 %v1790
        %v2562 = vpop.f32.mrb[0].mxu0
        %v2563 = vadd.f32 %v2383, %v2562
        %v2564 = vpop.f32.mrb[0].mxu0
        %2565 = vmatprep.mubr.f32.mxu0 %v1887
        %2566 = vmatmul.mubr.f32.gmra.mrb[0].mxu0 %v1791
        %v2567 = vpop.f32.mrb[0].mxu0
        %v2568 = vadd.f32 %v2383, %v2567
        %v2569 = vpop.f32.mrb[0].mxu0
        %2570 = vmatprep.mubr.f32.mxu0 %v1888
        %2571 = vmatmul.mubr.f32.gmra.mrb[0].mxu0 %v1792
        %v2572 = vpop.f32.mrb[0].mxu0
        %v2573 = vadd.f32 %v2383, %v2572
        %v2574 = vpop.f32.mrb[0].mxu0
        %2575 = vmatprep.mubr.f32.mxu0 %v1889
        %2576 = vmatmul.mubr.f32.gmra.mrb[0].mxu0 %v1793
        %v2577 = vpop.f32.mrb[0].mxu0
        %v2578 = vadd.f32 %v2383, %v2577
        %v2579 = vpop.f32.mrb[0].mxu0
        %2580 = vmatprep.mubr.f32.mxu0 %v1890
        %2581 = vmatmul.mubr.f32.gmra.mrb[0].mxu0 %v1794
        %v2582 = vpop.f32.mrb[0].mxu0
        %v2583 = vadd.f32 %v2383, %v2582
        %v2584 = vpop.f32.mrb[0].mxu0
        %2585 = vmatprep.mubr.f32.mxu0 %v1891
        %2586 = vmatmul.mubr.f32.gmra.mrb[0].mxu0 %v1795
        %v2587 = vpop.f32.mrb[0].mxu0
        %v2588 = vadd.f32 %v2383, %v2587
        %v2589 = vpop.f32.mrb[0].mxu0
        %2590 = vmatprep.mubr.f32.mxu0 %v1892
        %2591 = vmatmul.mubr.f32.gmra.mrb[0].mxu0 %v1796
        %v2592 = vpop.f32.mrb[0].mxu0
        %v2593 = vadd.f32 %v2383, %v2592
        %v2594 = vpop.f32.mrb[0].mxu0
        %2595 = vmatprep.mubr.f32.mxu0 %v1893
        %2596 = vmatmul.mubr.f32.gmra.mrb[0].mxu0 %v1797
        %v2597 = vpop.f32.mrb[0].mxu0
        %v2598 = vadd.f32 %v2383, %v2597
        %v2599 = vpop.f32.mrb[0].mxu0
        %2600 = vmatprep.mubr.f32.mxu0 %v1894
        %2601 = vmatmul.mubr.f32.gmra.mrb[0].mxu0 %v1798
        %v2602 = vpop.f32.mrb[0].mxu0
        %v2603 = vadd.f32 %v2383, %v2602
        %v2604 = vpop.f32.mrb[0].mxu0
        %2605 = vmatprep.mubr.f32.mxu0 %v1895
        %2606 = vmatmul.mubr.f32.gmra.mrb[0].mxu0 %v1799
        %v2607 = vpop.f32.mrb[0].mxu0
        %v2608 = vadd.f32 %v2383, %v2607
        %v2609 = vpop.f32.mrb[0].mxu0
        %2610 = vmatprep.mubr.f32.mxu0 %v1896
        %2611 = vmatmul.mubr.f32.gmra.mrb[0].mxu0 %v1800
        %v2612 = vpop.f32.mrb[0].mxu0
        %v2613 = vadd.f32 %v2383, %v2612
        %v2614 = vpop.f32.mrb[0].mxu0
        %2615 = vmatprep.mubr.f32.mxu0 %v1897
        %2616 = vmatmul.mubr.f32.gmra.mrb[0].mxu0 %v1801
        %v2617 = vpop.f32.mrb[0].mxu0
        %v2618 = vadd.f32 %v2383, %v2617
        %v2619 = vpop.f32.mrb[0].mxu0
        %2620 = vmatprep.mubr.f32.mxu0 %v1898
        %2621 = vmatmul.mubr.f32.gmra.mrb[0].mxu0 %v1802
        %v2622 = vpop.f32.mrb[0].mxu0
        %v2623 = vadd.f32 %v2383, %v2622
        %v2624 = vpop.f32.mrb[0].mxu0
        %2625 = vmatprep.mubr.f32.mxu0 %v1899
        %2626 = vmatmul.mubr.f32.gmra.mrb[0].mxu0 %v1803
        %v2627 = vpop.f32.mrb[0].mxu0
        %v2628 = vadd.f32 %v2383, %v2627
        %v2629 = vpop.f32.mrb[0].mxu0
        %2630 = vmatprep.mubr.f32.mxu0 %v1900
        %2631 = vmatmul.mubr.f32.gmra.mrb[0].mxu0 %v1804
        %v2632 = vpop.f32.mrb[0].mxu0
        %v2633 = vadd.f32 %v2383, %v2632
        %v2634 = vpop.f32.mrb[0].mxu0
        %2635 = vmatprep.mubr.f32.mxu0 %v1901
        %2636 = vmatmul.mubr.f32.gmra.mrb[0].mxu0 %v1805
        %v2637 = vpop.f32.mrb[0].mxu0
        %v2638 = vadd.f32 %v2383, %v2637
        %v2639 = vpop.f32.mrb[0].mxu0
        %2640 = vmatprep.mubr.f32.mxu0 %v1902
        %2641 = vmatmul.mubr.f32.gmra.mrb[0].mxu0 %v1806
        %v2642 = vpop.f32.mrb[0].mxu0
        %v2643 = vadd.f32 %v2383, %v2642
        %v2644 = vpop.f32.mrb[0].mxu0
        %2645 = vmatprep.mubr.f32.mxu0 %v1903
        %2646 = vmatmul.mubr.f32.gmra.mrb[0].mxu0 %v1807
        %v2647 = vpop.f32.mrb[0].mxu0
        %v2648 = vadd.f32 %v2383, %v2647
        %v2649 = vpop.f32.mrb[0].mxu0
        %2650 = vmatprep.mubr.f32.mxu0 %v1904
        %2651 = vmatmul.mubr.f32.gmra.mrb[0].mxu0 %v1808
        %v2652 = vpop.f32.mrb[0].mxu0
        %v2653 = vadd.f32 %v2383, %v2652
        %v2654 = vpop.f32.mrb[0].mxu0
        %2655 = vmatprep.mubr.f32.mxu0 %v1905
        %2656 = vmatmul.mubr.f32.gmra.mrb[0].mxu0 %v1809
        %v2657 = vpop.f32.mrb[0].mxu0
        %v2658 = vadd.f32 %v2383, %v2657
        %v2659 = vpop.f32.mrb[0].mxu0
        %2660 = vmatprep.mubr.f32.mxu0 %v1906
        %2661 = vmatmul.mubr.f32.gmra.mrb[0].mxu0 %v1810
        %v2662 = vpop.f32.mrb[0].mxu0
        %v2663 = vadd.f32 %v2383, %v2662
        %v2664 = vpop.f32.mrb[0].mxu0
        %2665 = vmatprep.mubr.f32.mxu0 %v1907
        %2666 = vmatmul.mubr.f32.gmra.mrb[0].mxu0 %v1811
        %v2667 = vpop.f32.mrb[0].mxu0
        %v2668 = vadd.f32 %v2383, %v2667
        %v2669 = vpop.f32.mrb[0].mxu0
        %2670 = vmatprep.mubr.f32.mxu0 %v1908
        %2671 = vmatmul.mubr.f32.gmra.mrb[0].mxu0 %v1812
        %v2672 = vpop.f32.mrb[0].mxu0
        %v2673 = vadd.f32 %v2383, %v2672
        %v2674 = vpop.f32.mrb[0].mxu0
        %2675 = vmatprep.mubr.f32.mxu0 %v1909
        %2676 = vmatmul.mubr.f32.gmra.mrb[0].mxu0 %v1813
        %v2677 = vpop.f32.mrb[0].mxu0
        %v2678 = vadd.f32 %v2383, %v2677
        %v2679 = vpop.f32.mrb[0].mxu0
        %2680 = vmatprep.mubr.f32.mxu0 %v1910
        %2681 = vmatmul.mubr.f32.gmra.mrb[0].mxu0 %v1814
        %v2682 = vpop.f32.mrb[0].mxu0
        %v2683 = vadd.f32 %v2383, %v2682
        %v2684 = vpop.f32.mrb[0].mxu0
        %2685 = vmatprep.mubr.f32.mxu0 %v1911
        %2686 = vmatmul.mubr.f32.gmra.mrb[0].mxu0 %v1815
        %v2687 = vpop.f32.mrb[0].mxu0
        %v2688 = vadd.f32 %v2383, %v2687
        %v2689 = vpop.f32.mrb[0].mxu0
        %2690 = vmatprep.mubr.f32.mxu0 %v1912
        %2691 = vmatmul.mubr.f32.gmra.mrb[0].mxu0 %v1816
        %v2692 = vpop.f32.mrb[0].mxu0
        %v2693 = vadd.f32 %v2383, %v2692
        %v2694 = vpop.f32.mrb[0].mxu0
        %2695 = vmatprep.mubr.f32.mxu0 %v1913
        %2696 = vmatmul.mubr.f32.gmra.mrb[0].mxu0 %v1817
        %v2697 = vpop.f32.mrb[0].mxu0
        %v2698 = vadd.f32 %v2383, %v2697
        %v2699 = vpop.f32.mrb[0].mxu0
        %2700 = vmatprep.mubr.f32.mxu0 %v1914
        %2701 = vmatmul.mubr.f32.gmra.mrb[0].mxu0 %v1818
        %v2702 = vpop.f32.mrb[0].mxu0
        %v2703 = vadd.f32 %v2383, %v2702
        %v2704 = vpop.f32.mrb[0].mxu0
        %2705 = vmatprep.mubr.f32.mxu0 %v1915
        %2706 = vmatmul.mubr.f32.gmra.mrb[0].mxu0 %v1819
        %v2707 = vpop.f32.mrb[0].mxu0
        %v2708 = vadd.f32 %v2383, %v2707
        %v2709 = vpop.f32.mrb[0].mxu0
        %2710 = vdwg.mxu0
        %2711 = vmatprep.subr.mxu0 0.0
        %2712 = vmatpush1.msra.mxu0 %v2372
        %2713 = vmatprep.subr.mxu0 0.0
        %2714 = vmatpush1.msra.mxu0 %v2373
        %2715 = vmatprep.subr.mxu0 0.0
        %2716 = vmatpush1.msra.mxu0 %v2374
        %2717 = vmatprep.subr.mxu0 0.0
        %2718 = vmatpush1.msra.mxu0 %v2375
        %2719 = vmatprep.subr.mxu0 0.0
        %2720 = vmatpush1.msra.mxu0 %v2376
        %2721 = vmatprep.subr.mxu0 0.0
        %2722 = vmatpush1.msra.mxu0 %v2484
        %2723 = vmatprep.subr.mxu0 0.0
        %2724 = vmatpush1.msra.mxu0 0.0
        %2725 = vmatprep.subr.mxu0 0.0
        %2726 = vmatpush1.msra.mxu0 0.0
        %2727 = vmatprep.subr.mxu0 0.0
        %2728 = vmatpush1.msra.mxu0 0.0
        %2729 = vmatprep.subr.mxu0 0.0
        %2730 = vmatpush1.msra.mxu0 0.0
        %2731 = vmatprep.subr.mxu0 0.0
        %2732 = vmatpush1.msra.mxu0 0.0
        %2733 = vmatprep.subr.mxu0 0.0
        %2734 = vmatpush1.msra.mxu0 0.0
        %2735 = vmatprep.subr.mxu0 0.0
        %2736 = vmatpush1.msra.mxu0 0.0
        %2737 = vmatprep.subr.mxu0 0.0
        %2738 = vmatpush1.msra.mxu0 0.0
        %2739 = vmatprep.subr.mxu0 0.0
        %2740 = vmatpush1.msra.mxu0 0.0
        %2741 = vmatprep.subr.mxu0 0.0
        %2742 = vmatpush1.msra.mxu0 0.0
        %2743 = vmatprep.subr.mxu0 0.0
        %2744 = vmatpush1.msra.mxu0 0.0
        %2745 = vmatprep.subr.mxu0 0.0
        %2746 = vmatpush1.msra.mxu0 0.0
        %2747 = vmatprep.subr.mxu0 0.0
        %2748 = vmatpush1.msra.mxu0 0.0
        %2749 = vmatprep.subr.mxu0 0.0
        %2750 = vmatpush1.msra.mxu0 0.0
        %2751 = vmatprep.subr.mxu0 0.0
        %2752 = vmatpush1.msra.mxu0 0.0
        %2753 = vmatprep.subr.mxu0 0.0
        %2754 = vmatpush1.msra.mxu0 0.0
        %2755 = vmatprep.subr.mxu0 0.0
        %2756 = vmatpush1.msra.mxu0 0.0
        %2757 = vmatprep.subr.mxu0 0.0
        %2758 = vmatpush1.msra.mxu0 0.0
        %2759 = vmatprep.subr.mxu0 0.0
        %2760 = vmatpush1.msra.mxu0 0.0
        %2761 = vmatprep.subr.mxu0 0.0
        %2762 = vmatpush1.msra.mxu0 0.0
        %2763 = vmatprep.subr.mxu0 0.0
        %2764 = vmatpush1.msra.mxu0 0.0
        %2765 = vmatprep.subr.mxu0 0.0
        %2766 = vmatpush1.msra.mxu0 0.0
        %2767 = vmatprep.subr.mxu0 0.0
        %2768 = vmatpush1.msra.mxu0 0.0
        %2769 = vmatprep.subr.mxu0 0.0
        %2770 = vmatpush1.msra.mxu0 0.0
        %2771 = vmatprep.subr.mxu0 0.0
        %2772 = vmatpush1.msra.mxu0 0.0
        %2773 = vmatprep.subr.mxu0 0.0
        %2774 = vmatpush1.msra.mxu0 0.0
        %2775 = vmatprep.mubr.f32.mxu0 0.0
        %2776 = vmatmul.mubr.f32.gmra.mrb[0].mxu0 %v2387
        %v2777 = vpop.f32.mrb[0].mxu0
        %v2778 = vadd.f32 %v2553, %v2777
        %v2779 = vpop.f32.mrb[0].mxu0
        %2780 = vmatprep.mubr.f32.mxu0 0.0
        %2781 = vmatmul.mubr.f32.gmra.mrb[0].mxu0 %v2390
        %v2782 = vpop.f32.mrb[0].mxu0
        %v2783 = vadd.f32 %v2558, %v2782
        %v2784 = vpop.f32.mrb[0].mxu0
        %2785 = vmatprep.mubr.f32.mxu0 0.0
        %2786 = vmatmul.mubr.f32.gmra.mrb[0].mxu0 %v2393
        %v2787 = vpop.f32.mrb[0].mxu0
        %v2788 = vadd.f32 %v2563, %v2787
        %v2789 = vpop.f32.mrb[0].mxu0
        %2790 = vmatprep.mubr.f32.mxu0 0.0
        %2791 = vmatmul.mubr.f32.gmra.mrb[0].mxu0 %v2396
        %v2792 = vpop.f32.mrb[0].mxu0
        %v2793 = vadd.f32 %v2568, %v2792
        %v2794 = vpop.f32.mrb[0].mxu0
        %2795 = vmatprep.mubr.f32.mxu0 0.0
        %2796 = vmatmul.mubr.f32.gmra.mrb[0].mxu0 %v2399
        %v2797 = vpop.f32.mrb[0].mxu0
        %v2798 = vadd.f32 %v2573, %v2797
        %v2799 = vpop.f32.mrb[0].mxu0
        %2800 = vmatprep.mubr.f32.mxu0 0.0
        %2801 = vmatmul.mubr.f32.gmra.mrb[0].mxu0 %v2402
        %v2802 = vpop.f32.mrb[0].mxu0
        %v2803 = vadd.f32 %v2578, %v2802
        %v2804 = vpop.f32.mrb[0].mxu0
        %2805 = vmatprep.mubr.f32.mxu0 0.0
        %2806 = vmatmul.mubr.f32.gmra.mrb[0].mxu0 %v2405
        %v2807 = vpop.f32.mrb[0].mxu0
        %v2808 = vadd.f32 %v2583, %v2807
        %v2809 = vpop.f32.mrb[0].mxu0
        %2810 = vmatprep.mubr.f32.mxu0 0.0
        %2811 = vmatmul.mubr.f32.gmra.mrb[0].mxu0 %v2408
        %v2812 = vpop.f32.mrb[0].mxu0
        %v2813 = vadd.f32 %v2588, %v2812
        %v2814 = vpop.f32.mrb[0].mxu0
        %2815 = vmatprep.mubr.f32.mxu0 0.0
        %2816 = vmatmul.mubr.f32.gmra.mrb[0].mxu0 %v2411
        %v2817 = vpop.f32.mrb[0].mxu0
        %v2818 = vadd.f32 %v2593, %v2817
        %v2819 = vpop.f32.mrb[0].mxu0
        %2820 = vmatprep.mubr.f32.mxu0 0.0
        %2821 = vmatmul.mubr.f32.gmra.mrb[0].mxu0 %v2414
        %v2822 = vpop.f32.mrb[0].mxu0
        %v2823 = vadd.f32 %v2598, %v2822
        %v2824 = vpop.f32.mrb[0].mxu0
        %2825 = vmatprep.mubr.f32.mxu0 0.0
        %2826 = vmatmul.mubr.f32.gmra.mrb[0].mxu0 %v2417
        %v2827 = vpop.f32.mrb[0].mxu0
        %v2828 = vadd.f32 %v2603, %v2827
        %v2829 = vpop.f32.mrb[0].mxu0
        %2830 = vmatprep.mubr.f32.mxu0 0.0
        %2831 = vmatmul.mubr.f32.gmra.mrb[0].mxu0 %v2420
        %v2832 = vpop.f32.mrb[0].mxu0
        %v2833 = vadd.f32 %v2608, %v2832
        %v2834 = vpop.f32.mrb[0].mxu0
        %2835 = vmatprep.mubr.f32.mxu0 0.0
        %2836 = vmatmul.mubr.f32.gmra.mrb[0].mxu0 %v2423
        %v2837 = vpop.f32.mrb[0].mxu0
        %v2838 = vadd.f32 %v2613, %v2837
        %v2839 = vpop.f32.mrb[0].mxu0
        %2840 = vmatprep.mubr.f32.mxu0 0.0
        %2841 = vmatmul.mubr.f32.gmra.mrb[0].mxu0 %v2426
        %v2842 = vpop.f32.mrb[0].mxu0
        %v2843 = vadd.f32 %v2618, %v2842
        %v2844 = vpop.f32.mrb[0].mxu0
        %2845 = vmatprep.mubr.f32.mxu0 0.0
        %2846 = vmatmul.mubr.f32.gmra.mrb[0].mxu0 %v2429
        %v2847 = vpop.f32.mrb[0].mxu0
        %v2848 = vadd.f32 %v2623, %v2847
        %v2849 = vpop.f32.mrb[0].mxu0
        %2850 = vmatprep.mubr.f32.mxu0 0.0
        %2851 = vmatmul.mubr.f32.gmra.mrb[0].mxu0 %v2432
        %v2852 = vpop.f32.mrb[0].mxu0
        %v2853 = vadd.f32 %v2628, %v2852
        %v2854 = vpop.f32.mrb[0].mxu0
        %2855 = vmatprep.mubr.f32.mxu0 0.0
        %2856 = vmatmul.mubr.f32.gmra.mrb[0].mxu0 %v2435
        %v2857 = vpop.f32.mrb[0].mxu0
        %v2858 = vadd.f32 %v2633, %v2857
        %v2859 = vpop.f32.mrb[0].mxu0
        %2860 = vmatprep.mubr.f32.mxu0 0.0
        %2861 = vmatmul.mubr.f32.gmra.mrb[0].mxu0 %v2438
        %v2862 = vpop.f32.mrb[0].mxu0
        %v2863 = vadd.f32 %v2638, %v2862
        %v2864 = vpop.f32.mrb[0].mxu0
        %2865 = vmatprep.mubr.f32.mxu0 0.0
        %2866 = vmatmul.mubr.f32.gmra.mrb[0].mxu0 %v2441
        %v2867 = vpop.f32.mrb[0].mxu0
        %v2868 = vadd.f32 %v2643, %v2867
        %v2869 = vpop.f32.mrb[0].mxu0
        %2870 = vmatprep.mubr.f32.mxu0 0.0
        %2871 = vmatmul.mubr.f32.gmra.mrb[0].mxu0 %v2444
        %v2872 = vpop.f32.mrb[0].mxu0
        %v2873 = vadd.f32 %v2648, %v2872
        %v2874 = vpop.f32.mrb[0].mxu0
        %2875 = vmatprep.mubr.f32.mxu0 0.0
        %2876 = vmatmul.mubr.f32.gmra.mrb[0].mxu0 %v2447
        %v2877 = vpop.f32.mrb[0].mxu0
        %v2878 = vadd.f32 %v2653, %v2877
        %v2879 = vpop.f32.mrb[0].mxu0
        %2880 = vmatprep.mubr.f32.mxu0 0.0
        %2881 = vmatmul.mubr.f32.gmra.mrb[0].mxu0 %v2450
        %v2882 = vpop.f32.mrb[0].mxu0
        %v2883 = vadd.f32 %v2658, %v2882
        %v2884 = vpop.f32.mrb[0].mxu0
        %2885 = vmatprep.mubr.f32.mxu0 0.0
        %2886 = vmatmul.mubr.f32.gmra.mrb[0].mxu0 %v2453
        %v2887 = vpop.f32.mrb[0].mxu0
        %v2888 = vadd.f32 %v2663, %v2887
        %v2889 = vpop.f32.mrb[0].mxu0
        %2890 = vmatprep.mubr.f32.mxu0 0.0
        %2891 = vmatmul.mubr.f32.gmra.mrb[0].mxu0 %v2456
        %v2892 = vpop.f32.mrb[0].mxu0
        %v2893 = vadd.f32 %v2668, %v2892
        %v2894 = vpop.f32.mrb[0].mxu0
        %2895 = vmatprep.mubr.f32.mxu0 0.0
        %2896 = vmatmul.mubr.f32.gmra.mrb[0].mxu0 %v2459
        %v2897 = vpop.f32.mrb[0].mxu0
        %v2898 = vadd.f32 %v2673, %v2897
        %v2899 = vpop.f32.mrb[0].mxu0
        %2900 = vmatprep.mubr.f32.mxu0 0.0
        %2901 = vmatmul.mubr.f32.gmra.mrb[0].mxu0 %v2462
        %v2902 = vpop.f32.mrb[0].mxu0
        %v2903 = vadd.f32 %v2678, %v2902
        %v2904 = vpop.f32.mrb[0].mxu0
        %2905 = vmatprep.mubr.f32.mxu0 0.0
        %2906 = vmatmul.mubr.f32.gmra.mrb[0].mxu0 %v2465
        %v2907 = vpop.f32.mrb[0].mxu0
        %v2908 = vadd.f32 %v2683, %v2907
        %v2909 = vpop.f32.mrb[0].mxu0
        %2910 = vmatprep.mubr.f32.mxu0 0.0
        %2911 = vmatmul.mubr.f32.gmra.mrb[0].mxu0 %v2468
        %v2912 = vpop.f32.mrb[0].mxu0
        %v2913 = vadd.f32 %v2688, %v2912
        %v2914 = vpop.f32.mrb[0].mxu0
        %2915 = vmatprep.mubr.f32.mxu0 0.0
        %2916 = vmatmul.mubr.f32.gmra.mrb[0].mxu0 %v2471
        %v2917 = vpop.f32.mrb[0].mxu0
        %v2918 = vadd.f32 %v2693, %v2917
        %v2919 = vpop.f32.mrb[0].mxu0
        %2920 = vmatprep.mubr.f32.mxu0 0.0
        %2921 = vmatmul.mubr.f32.gmra.mrb[0].mxu0 %v2474
        %v2922 = vpop.f32.mrb[0].mxu0
        %v2923 = vadd.f32 %v2698, %v2922
        %v2924 = vpop.f32.mrb[0].mxu0
        %2925 = vmatprep.mubr.f32.mxu0 0.0
        %2926 = vmatmul.mubr.f32.gmra.mrb[0].mxu0 %v2477
        %v2927 = vpop.f32.mrb[0].mxu0
        %v2928 = vadd.f32 %v2703, %v2927
        %v2929 = vpop.f32.mrb[0].mxu0
        %2930 = vmatprep.mubr.f32.mxu0 0.0
        %2931 = vmatmul.mubr.f32.gmra.mrb[0].mxu0 %v2480
        %v2932 = vpop.f32.mrb[0].mxu0
        %v2933 = vadd.f32 %v2708, %v2932
        %v2934 = vpop.f32.mrb[0].mxu0
        %2935 = vdwg.mxu0
        %v2936 = vxor.u32 %v2778, 2147483648
        %v2937 = vxor.u32 %v2783, 2147483648
        %v2938 = vxor.u32 %v2788, 2147483648
        %v2939 = vxor.u32 %v2793, 2147483648
        %v2940 = vxor.u32 %v2798, 2147483648
        %v2941 = vxor.u32 %v2803, 2147483648
        %v2942 = vxor.u32 %v2808, 2147483648
        %v2943 = vxor.u32 %v2813, 2147483648
        %v2944 = vxor.u32 %v2818, 2147483648
        %v2945 = vxor.u32 %v2823, 2147483648
        %v2946 = vxor.u32 %v2828, 2147483648
        %v2947 = vxor.u32 %v2833, 2147483648
        %v2948 = vxor.u32 %v2838, 2147483648
        %v2949 = vxor.u32 %v2843, 2147483648
        %v2950 = vxor.u32 %v2848, 2147483648
        %v2951 = vxor.u32 %v2853, 2147483648
        %v2952 = vxor.u32 %v2858, 2147483648
        %v2953 = vxor.u32 %v2863, 2147483648
        %v2954 = vxor.u32 %v2868, 2147483648
        %v2955 = vxor.u32 %v2873, 2147483648
        %v2956 = vxor.u32 %v2878, 2147483648
        %v2957 = vxor.u32 %v2883, 2147483648
        %v2958 = vxor.u32 %v2888, 2147483648
        %v2959 = vxor.u32 %v2893, 2147483648
        %v2960 = vxor.u32 %v2898, 2147483648
        %v2961 = vxor.u32 %v2903, 2147483648
        %v2962 = vxor.u32 %v2908, 2147483648
        %v2963 = vxor.u32 %v2913, 2147483648
        %v2964 = vxor.u32 %v2918, 2147483648
        %v2965 = vxor.u32 %v2923, 2147483648
        %v2966 = vxor.u32 %v2928, 2147483648
        %v2967 = vxor.u32 %v2933, 2147483648
        %v2968 = vmul.f32 %v2936, 1.442695
        %v2969 = vpow.pop %v2968
        %v2970 = vmul.f32 %v2937, 1.442695
        %v2971 = vpow.pop %v2970
        %v2972 = vmul.f32 %v2938, 1.442695
        %v2973 = vpow.pop %v2972
        %v2974 = vmul.f32 %v2939, 1.442695
        %v2975 = vpow.pop %v2974
        %v2976 = vmul.f32 %v2940, 1.442695
        %v2977 = vpow.pop %v2976
        %v2978 = vmul.f32 %v2941, 1.442695
        %v2979 = vpow.pop %v2978
        %v2980 = vmul.f32 %v2942, 1.442695
        %v2981 = vpow.pop %v2980
        %v2982 = vmul.f32 %v2943, 1.442695
        %v2983 = vpow.pop %v2982
        %v2984 = vmul.f32 %v2944, 1.442695
        %v2985 = vpow.pop %v2984
        %v2986 = vmul.f32 %v2945, 1.442695
        %v2987 = vpow.pop %v2986
        %v2988 = vmul.f32 %v2946, 1.442695
        %v2989 = vpow.pop %v2988
        %v2990 = vmul.f32 %v2947, 1.442695
        %v2991 = vpow.pop %v2990
        %v2992 = vmul.f32 %v2948, 1.442695
        %v2993 = vpow.pop %v2992
        %v2994 = vmul.f32 %v2949, 1.442695
        %v2995 = vpow.pop %v2994
        %v2996 = vmul.f32 %v2950, 1.442695
        %v2997 = vpow.pop %v2996
        %v2998 = vmul.f32 %v2951, 1.442695
        %v2999 = vpow.pop %v2998
        %v3000 = vmul.f32 %v2952, 1.442695
        %v3001 = vpow.pop %v3000
        %v3002 = vmul.f32 %v2953, 1.442695
        %v3003 = vpow.pop %v3002
        %v3004 = vmul.f32 %v2954, 1.442695
        %v3005 = vpow.pop %v3004
        %v3006 = vmul.f32 %v2955, 1.442695
        %v3007 = vpow.pop %v3006
        %v3008 = vmul.f32 %v2956, 1.442695
        %v3009 = vpow.pop %v3008
        %v3010 = vmul.f32 %v2957, 1.442695
        %v3011 = vpow.pop %v3010
        %v3012 = vmul.f32 %v2958, 1.442695
        %v3013 = vpow.pop %v3012
        %v3014 = vmul.f32 %v2959, 1.442695
        %v3015 = vpow.pop %v3014
        %v3016 = vmul.f32 %v2960, 1.442695
        %v3017 = vpow.pop %v3016
        %v3018 = vmul.f32 %v2961, 1.442695
        %v3019 = vpow.pop %v3018
        %v3020 = vmul.f32 %v2962, 1.442695
        %v3021 = vpow.pop %v3020
        %v3022 = vmul.f32 %v2963, 1.442695
        %v3023 = vpow.pop %v3022
        %v3024 = vmul.f32 %v2964, 1.442695
        %v3025 = vpow.pop %v3024
        %v3026 = vmul.f32 %v2965, 1.442695
        %v3027 = vpow.pop %v3026
        %v3028 = vmul.f32 %v2966, 1.442695
        %v3029 = vpow.pop %v3028
        %v3030 = vmul.f32 %v2967, 1.442695
        %v3031 = vpow.pop %v3030
        %v3032 = vadd.f32 %v2969, 1.0
        %v3033 = vadd.f32 %v2971, 1.0
        %v3034 = vadd.f32 %v2973, 1.0
        %v3035 = vadd.f32 %v2975, 1.0
        %v3036 = vadd.f32 %v2977, 1.0
        %v3037 = vadd.f32 %v2979, 1.0
        %v3038 = vadd.f32 %v2981, 1.0
        %v3039 = vadd.f32 %v2983, 1.0
        %v3040 = vadd.f32 %v2985, 1.0
        %v3041 = vadd.f32 %v2987, 1.0
        %v3042 = vadd.f32 %v2989, 1.0
        %v3043 = vadd.f32 %v2991, 1.0
        %v3044 = vadd.f32 %v2993, 1.0
        %v3045 = vadd.f32 %v2995, 1.0
        %v3046 = vadd.f32 %v2997, 1.0
        %v3047 = vadd.f32 %v2999, 1.0
        %v3048 = vadd.f32 %v3001, 1.0
        %v3049 = vadd.f32 %v3003, 1.0
        %v3050 = vadd.f32 %v3005, 1.0
        %v3051 = vadd.f32 %v3007, 1.0
        %v3052 = vadd.f32 %v3009, 1.0
        %v3053 = vadd.f32 %v3011, 1.0
        %v3054 = vadd.f32 %v3013, 1.0
        %v3055 = vadd.f32 %v3015, 1.0
        %v3056 = vadd.f32 %v3017, 1.0
        %v3057 = vadd.f32 %v3019, 1.0
        %v3058 = vadd.f32 %v3021, 1.0
        %v3059 = vadd.f32 %v3023, 1.0
        %v3060 = vadd.f32 %v3025, 1.0
        %v3061 = vadd.f32 %v3027, 1.0
        %v3062 = vadd.f32 %v3029, 1.0
        %v3063 = vadd.f32 %v3031, 1.0
        %v3064 = vrcp.pop %v3032
        %v3065 = vmul.f32 1.0, %v3064
        %v3066 = vrcp.pop %v3033
        %v3067 = vmul.f32 1.0, %v3066
        %v3068 = vrcp.pop %v3034
        %v3069 = vmul.f32 1.0, %v3068
        %v3070 = vrcp.pop %v3035
        %v3071 = vmul.f32 1.0, %v3070
        %v3072 = vrcp.pop %v3036
        %v3073 = vmul.f32 1.0, %v3072
        %v3074 = vrcp.pop %v3037
        %v3075 = vmul.f32 1.0, %v3074
        %v3076 = vrcp.pop %v3038
        %v3077 = vmul.f32 1.0, %v3076
        %v3078 = vrcp.pop %v3039
        %v3079 = vmul.f32 1.0, %v3078
        %v3080 = vrcp.pop %v3040
        %v3081 = vmul.f32 1.0, %v3080
        %v3082 = vrcp.pop %v3041
        %v3083 = vmul.f32 1.0, %v3082
        %v3084 = vrcp.pop %v3042
        %v3085 = vmul.f32 1.0, %v3084
        %v3086 = vrcp.pop %v3043
        %v3087 = vmul.f32 1.0, %v3086
        %v3088 = vrcp.pop %v3044
        %v3089 = vmul.f32 1.0, %v3088
        %v3090 = vrcp.pop %v3045
        %v3091 = vmul.f32 1.0, %v3090
        %v3092 = vrcp.pop %v3046
        %v3093 = vmul.f32 1.0, %v3092
        %v3094 = vrcp.pop %v3047
        %v3095 = vmul.f32 1.0, %v3094
        %v3096 = vrcp.pop %v3048
        %v3097 = vmul.f32 1.0, %v3096
        %v3098 = vrcp.pop %v3049
        %v3099 = vmul.f32 1.0, %v3098
        %v3100 = vrcp.pop %v3050
        %v3101 = vmul.f32 1.0, %v3100
        %v3102 = vrcp.pop %v3051
        %v3103 = vmul.f32 1.0, %v3102
        %v3104 = vrcp.pop %v3052
        %v3105 = vmul.f32 1.0, %v3104
        %v3106 = vrcp.pop %v3053
        %v3107 = vmul.f32 1.0, %v3106
        %v3108 = vrcp.pop %v3054
        %v3109 = vmul.f32 1.0, %v3108
        %v3110 = vrcp.pop %v3055
        %v3111 = vmul.f32 1.0, %v3110
        %v3112 = vrcp.pop %v3056
        %v3113 = vmul.f32 1.0, %v3112
        %v3114 = vrcp.pop %v3057
        %v3115 = vmul.f32 1.0, %v3114
        %v3116 = vrcp.pop %v3058
        %v3117 = vmul.f32 1.0, %v3116
        %v3118 = vrcp.pop %v3059
        %v3119 = vmul.f32 1.0, %v3118
        %v3120 = vrcp.pop %v3060
        %v3121 = vmul.f32 1.0, %v3120
        %v3122 = vrcp.pop %v3061
        %v3123 = vmul.f32 1.0, %v3122
        %v3124 = vrcp.pop %v3062
        %v3125 = vmul.f32 1.0, %v3124
        %v3126 = vrcp.pop %v3063
        %v3127 = vmul.f32 1.0, %v3126
        %v3128 = vtanh.pop %v2778
        %v3129 = vtanh.pop %v2783
        %v3130 = vtanh.pop %v2788
        %v3131 = vtanh.pop %v2793
        %v3132 = vtanh.pop %v2798
        %v3133 = vtanh.pop %v2803
        %v3134 = vtanh.pop %v2808
        %v3135 = vtanh.pop %v2813
        %v3136 = vtanh.pop %v2818
        %v3137 = vtanh.pop %v2823
        %v3138 = vtanh.pop %v2828
        %v3139 = vtanh.pop %v2833
        %v3140 = vtanh.pop %v2838
        %v3141 = vtanh.pop %v2843
        %v3142 = vtanh.pop %v2848
        %v3143 = vtanh.pop %v2853
        %v3144 = vtanh.pop %v2858
        %v3145 = vtanh.pop %v2863
        %v3146 = vtanh.pop %v2868
        %v3147 = vtanh.pop %v2873
        %v3148 = vtanh.pop %v2878
        %v3149 = vtanh.pop %v2883
        %v3150 = vtanh.pop %v2888
        %v3151 = vtanh.pop %v2893
        %v3152 = vtanh.pop %v2898
        %v3153 = vtanh.pop %v2903
        %v3154 = vtanh.pop %v2908
        %v3155 = vtanh.pop %v2913
        %v3156 = vtanh.pop %v2918
        %v3157 = vtanh.pop %v2923
        %v3158 = vtanh.pop %v2928
        %v3159 = vtanh.pop %v2933
        %3192 = vrot.lane.b32.xlu0 %v3128, 96
        %v3193 = vpop.permute.xlu0 %3192
        %3194 = vrot.lane.b32.xlu0 %v3129, 96
        %v3195 = vpop.permute.xlu0 %3194
        %3196 = vrot.lane.b32.xlu0 %v3130, 96
        %v3197 = vpop.permute.xlu0 %3196
        %3198 = vrot.lane.b32.xlu0 %v3131, 96
        %v3199 = vpop.permute.xlu0 %3198
        %3200 = vrot.lane.b32.xlu0 %v3132, 96
        %v3201 = vpop.permute.xlu0 %3200
        %3202 = vrot.lane.b32.xlu0 %v3133, 96
        %v3203 = vpop.permute.xlu0 %3202
        %3204 = vrot.lane.b32.xlu0 %v3134, 96
        %v3205 = vpop.permute.xlu0 %3204
        %3206 = vrot.lane.b32.xlu0 %v3135, 96
        %v3207 = vpop.permute.xlu0 %3206
        %3208 = vrot.lane.b32.xlu0 %v3136, 96
        %v3209 = vpop.permute.xlu0 %3208
        %3210 = vrot.lane.b32.xlu0 %v3137, 96
        %v3211 = vpop.permute.xlu0 %3210
        %3212 = vrot.lane.b32.xlu0 %v3138, 96
        %v3213 = vpop.permute.xlu0 %3212
        %3214 = vrot.lane.b32.xlu0 %v3139, 96
        %v3215 = vpop.permute.xlu0 %3214
        %3216 = vrot.lane.b32.xlu0 %v3140, 96
        %v3217 = vpop.permute.xlu0 %3216
        %3218 = vrot.lane.b32.xlu0 %v3141, 96
        %v3219 = vpop.permute.xlu0 %3218
        %3220 = vrot.lane.b32.xlu0 %v3142, 96
        %v3221 = vpop.permute.xlu0 %3220
        %3222 = vrot.lane.b32.xlu0 %v3143, 96
        %v3223 = vpop.permute.xlu0 %3222
        %3224 = vrot.lane.b32.xlu0 %v3144, 96
        %v3225 = vpop.permute.xlu0 %3224
        %3226 = vrot.lane.b32.xlu0 %v3145, 96
        %v3227 = vpop.permute.xlu0 %3226
        %3228 = vrot.lane.b32.xlu0 %v3146, 96
        %v3229 = vpop.permute.xlu0 %3228
        %3230 = vrot.lane.b32.xlu0 %v3147, 96
        %v3231 = vpop.permute.xlu0 %3230
        %3232 = vrot.lane.b32.xlu0 %v3148, 96
        %v3233 = vpop.permute.xlu0 %3232
        %3234 = vrot.lane.b32.xlu0 %v3149, 96
        %v3235 = vpop.permute.xlu0 %3234
        %3236 = vrot.lane.b32.xlu0 %v3150, 96
        %v3237 = vpop.permute.xlu0 %3236
        %3238 = vrot.lane.b32.xlu0 %v3151, 96
        %v3239 = vpop.permute.xlu0 %3238
        %3240 = vrot.lane.b32.xlu0 %v3152, 96
        %v3241 = vpop.permute.xlu0 %3240
        %3242 = vrot.lane.b32.xlu0 %v3153, 96
        %v3243 = vpop.permute.xlu0 %3242
        %3244 = vrot.lane.b32.xlu0 %v3154, 96
        %v3245 = vpop.permute.xlu0 %3244
        %3246 = vrot.lane.b32.xlu0 %v3155, 96
        %v3247 = vpop.permute.xlu0 %3246
        %3248 = vrot.lane.b32.xlu0 %v3156, 96
        %v3249 = vpop.permute.xlu0 %3248
        %3250 = vrot.lane.b32.xlu0 %v3157, 96
        %v3251 = vpop.permute.xlu0 %3250
        %3252 = vrot.lane.b32.xlu0 %v3158, 96
        %v3253 = vpop.permute.xlu0 %3252
        %3254 = vrot.lane.b32.xlu0 %v3159, 96
        %v3255 = vpop.permute.xlu0 %3254
        %v3288 = vmul.f32 %v3065, %v3193
        %v3289 = vmul.f32 %v3067, %v3195
        %v3290 = vmul.f32 %v3069, %v3197
        %v3291 = vmul.f32 %v3071, %v3199
        %v3292 = vmul.f32 %v3073, %v3201
        %v3293 = vmul.f32 %v3075, %v3203
        %v3294 = vmul.f32 %v3077, %v3205
        %v3295 = vmul.f32 %v3079, %v3207
        %v3296 = vmul.f32 %v3081, %v3209
        %v3297 = vmul.f32 %v3083, %v3211
        %v3298 = vmul.f32 %v3085, %v3213
        %v3299 = vmul.f32 %v3087, %v3215
        %v3300 = vmul.f32 %v3089, %v3217
        %v3301 = vmul.f32 %v3091, %v3219
        %v3302 = vmul.f32 %v3093, %v3221
        %v3303 = vmul.f32 %v3095, %v3223
        %v3304 = vmul.f32 %v3097, %v3225
        %v3305 = vmul.f32 %v3099, %v3227
        %v3306 = vmul.f32 %v3101, %v3229
        %v3307 = vmul.f32 %v3103, %v3231
        %v3308 = vmul.f32 %v3105, %v3233
        %v3309 = vmul.f32 %v3107, %v3235
        %v3310 = vmul.f32 %v3109, %v3237
        %v3311 = vmul.f32 %v3111, %v3239
        %v3312 = vmul.f32 %v3113, %v3241
        %v3313 = vmul.f32 %v3115, %v3243
        %v3314 = vmul.f32 %v3117, %v3245
        %v3315 = vmul.f32 %v3119, %v3247
        %v3316 = vmul.f32 %v3121, %v3249
        %v3317 = vmul.f32 %v3123, %v3251
        %v3318 = vmul.f32 %v3125, %v3253
        %v3319 = vmul.f32 %v3127, %v3255
        %3352 = vrot.lane.b32.xlu0 %v1884, 32
        %v3353 = vpop.permute.xlu0 %3352
        %3354 = vrot.lane.b32.xlu0 %v1885, 32
        %v3355 = vpop.permute.xlu0 %3354
        %3356 = vrot.lane.b32.xlu0 %v1886, 32
        %v3357 = vpop.permute.xlu0 %3356
        %3358 = vrot.lane.b32.xlu0 %v1887, 32
        %v3359 = vpop.permute.xlu0 %3358
        %3360 = vrot.lane.b32.xlu0 %v1888, 32
        %v3361 = vpop.permute.xlu0 %3360
        %3362 = vrot.lane.b32.xlu0 %v1889, 32
        %v3363 = vpop.permute.xlu0 %3362
        %3364 = vrot.lane.b32.xlu0 %v1890, 32
        %v3365 = vpop.permute.xlu0 %3364
        %3366 = vrot.lane.b32.xlu0 %v1891, 32
        %v3367 = vpop.permute.xlu0 %3366
        %3368 = vrot.lane.b32.xlu0 %v1892, 32
        %v3369 = vpop.permute.xlu0 %3368
        %3370 = vrot.lane.b32.xlu0 %v1893, 32
        %v3371 = vpop.permute.xlu0 %3370
        %3372 = vrot.lane.b32.xlu0 %v1894, 32
        %v3373 = vpop.permute.xlu0 %3372
        %3374 = vrot.lane.b32.xlu0 %v1895, 32
        %v3375 = vpop.permute.xlu0 %3374
        %3376 = vrot.lane.b32.xlu0 %v1896, 32
        %v3377 = vpop.permute.xlu0 %3376
        %3378 = vrot.lane.b32.xlu0 %v1897, 32
        %v3379 = vpop.permute.xlu0 %3378
        %3380 = vrot.lane.b32.xlu0 %v1898, 32
        %v3381 = vpop.permute.xlu0 %3380
        %3382 = vrot.lane.b32.xlu0 %v1899, 32
        %v3383 = vpop.permute.xlu0 %3382
        %3384 = vrot.lane.b32.xlu0 %v1900, 32
        %v3385 = vpop.permute.xlu0 %3384
        %3386 = vrot.lane.b32.xlu0 %v1901, 32
        %v3387 = vpop.permute.xlu0 %3386
        %3388 = vrot.lane.b32.xlu0 %v1902, 32
        %v3389 = vpop.permute.xlu0 %3388
        %3390 = vrot.lane.b32.xlu0 %v1903, 32
        %v3391 = vpop.permute.xlu0 %3390
        %3392 = vrot.lane.b32.xlu0 %v1904, 32
        %v3393 = vpop.permute.xlu0 %3392
        %3394 = vrot.lane.b32.xlu0 %v1905, 32
        %v3395 = vpop.permute.xlu0 %3394
        %3396 = vrot.lane.b32.xlu0 %v1906, 32
        %v3397 = vpop.permute.xlu0 %3396
        %3398 = vrot.lane.b32.xlu0 %v1907, 32
        %v3399 = vpop.permute.xlu0 %3398
        %3400 = vrot.lane.b32.xlu0 %v1908, 32
        %v3401 = vpop.permute.xlu0 %3400
        %3402 = vrot.lane.b32.xlu0 %v1909, 32
        %v3403 = vpop.permute.xlu0 %3402
        %3404 = vrot.lane.b32.xlu0 %v1910, 32
        %v3405 = vpop.permute.xlu0 %3404
        %3406 = vrot.lane.b32.xlu0 %v1911, 32
        %v3407 = vpop.permute.xlu0 %3406
        %3408 = vrot.lane.b32.xlu0 %v1912, 32
        %v3409 = vpop.permute.xlu0 %3408
        %3410 = vrot.lane.b32.xlu0 %v1913, 32
        %v3411 = vpop.permute.xlu0 %3410
        %3412 = vrot.lane.b32.xlu0 %v1914, 32
        %v3413 = vpop.permute.xlu0 %3412
        %3414 = vrot.lane.b32.xlu0 %v1915, 32
        %v3415 = vpop.permute.xlu0 %3414
        %v3448 = vsel %vm1721, %v3288, %v3353
        %v3449 = vsel %vm1721, %v3289, %v3355
        %v3450 = vsel %vm1721, %v3290, %v3357
        %v3451 = vsel %vm1721, %v3291, %v3359
        %v3452 = vsel %vm1721, %v3292, %v3361
        %v3453 = vsel %vm1721, %v3293, %v3363
        %v3454 = vsel %vm1721, %v3294, %v3365
        %v3455 = vsel %vm1721, %v3295, %v3367
        %v3456 = vsel %vm1721, %v3296, %v3369
        %v3457 = vsel %vm1721, %v3297, %v3371
        %v3458 = vsel %vm1721, %v3298, %v3373
        %v3459 = vsel %vm1721, %v3299, %v3375
        %v3460 = vsel %vm1721, %v3300, %v3377
        %v3461 = vsel %vm1721, %v3301, %v3379
        %v3462 = vsel %vm1721, %v3302, %v3381
        %v3463 = vsel %vm1721, %v3303, %v3383
        %v3464 = vsel %vm1721, %v3304, %v3385
        %v3465 = vsel %vm1721, %v3305, %v3387
        %v3466 = vsel %vm1721, %v3306, %v3389
        %v3467 = vsel %vm1721, %v3307, %v3391
        %v3468 = vsel %vm1721, %v3308, %v3393
        %v3469 = vsel %vm1721, %v3309, %v3395
        %v3470 = vsel %vm1721, %v3310, %v3397
        %v3471 = vsel %vm1721, %v3311, %v3399
        %v3472 = vsel %vm1721, %v3312, %v3401
        %v3473 = vsel %vm1721, %v3313, %v3403
        %v3474 = vsel %vm1721, %v3314, %v3405
        %v3475 = vsel %vm1721, %v3315, %v3407
        %v3476 = vsel %vm1721, %v3316, %v3409
        %v3477 = vsel %vm1721, %v3317, %v3411
        %v3478 = vsel %vm1721, %v3318, %v3413
        %v3479 = vsel %vm1721, %v3319, %v3415
        %v3480 = vld [vmem:[%s4] sm:$0xff]
        %v3481 = vld [vmem:[%s4 + $0x8] sm:$0xff]
        %v3482 = vld [vmem:[%s4 + $0x10] sm:$0xff]
        %v3483 = vld [vmem:[%s4 + $0x18] sm:$0xff]
        %v3484 = vld [vmem:[%s4 + $0x20] sm:$0xff]
        %v3485 = vld [vmem:[%s4 + $0x28] sm:$0xff]
        %v3486 = vld [vmem:[%s4 + $0x30] sm:$0xff]
        %v3487 = vld [vmem:[%s4 + $0x38] sm:$0xff]
        %v3488 = vld [vmem:[%s5] sm:$0x1]
        %v3490 = vlaneseq
        %v3491 = vshrl.u32 %v3490, 7
        %v3492 = vsub.s32 0, %v3491
        %v3493 = vrot.slane %v3488, %v3492
        %v3496 = vsel %vm1754, %v3448, 0
        %v3499 = vsel %vm1754, %v3449, 0
        %v3502 = vsel %vm1754, %v3450, 0
        %v3505 = vsel %vm1754, %v3451, 0
        %v3508 = vsel %vm1754, %v3452, 0
        %v3511 = vsel %vm1754, %v3453, 0
        %v3514 = vsel %vm1754, %v3454, 0
        %v3517 = vsel %vm1754, %v3455, 0
        %v3520 = vsel %vm1754, %v3456, 0
        %v3523 = vsel %vm1754, %v3457, 0
        %v3526 = vsel %vm1754, %v3458, 0
        %v3529 = vsel %vm1754, %v3459, 0
        %v3532 = vsel %vm1754, %v3460, 0
        %v3535 = vsel %vm1754, %v3461, 0
        %v3538 = vsel %vm1754, %v3462, 0
        %v3541 = vsel %vm1754, %v3463, 0
        %v3544 = vsel %vm1754, %v3464, 0
        %v3547 = vsel %vm1754, %v3465, 0
        %v3550 = vsel %vm1754, %v3466, 0
        %v3553 = vsel %vm1754, %v3467, 0
        %v3556 = vsel %vm1754, %v3468, 0
        %v3559 = vsel %vm1754, %v3469, 0
        %v3562 = vsel %vm1754, %v3470, 0
        %v3565 = vsel %vm1754, %v3471, 0
        %v3568 = vsel %vm1754, %v3472, 0
        %v3571 = vsel %vm1754, %v3473, 0
        %v3574 = vsel %vm1754, %v3474, 0
        %v3577 = vsel %vm1754, %v3475, 0
        %v3580 = vsel %vm1754, %v3476, 0
        %v3583 = vsel %vm1754, %v3477, 0
        %v3586 = vsel %vm1754, %v3478, 0
        %v3589 = vsel %vm1754, %v3479, 0
        %3591 = vmatprep.subr.mxu0 0.0
        %3592 = vmatpush1.msra.mxu0 %v3480
        %3593 = vmatprep.subr.mxu0 0.0
        %3594 = vmatpush1.msra.mxu0 %v3481
        %3595 = vmatprep.subr.mxu0 0.0
        %3596 = vmatpush1.msra.mxu0 %v3482
        %3597 = vmatprep.subr.mxu0 0.0
        %3598 = vmatpush1.msra.mxu0 %v3483
        %3599 = vmatprep.subr.mxu0 0.0
        %3600 = vmatpush1.msra.mxu0 %v3484
        %3601 = vmatprep.subr.mxu0 0.0
        %3602 = vmatpush1.msra.mxu0 %v3485
        %3603 = vmatprep.subr.mxu0 0.0
        %3604 = vmatpush1.msra.mxu0 %v3486
        %3605 = vmatprep.subr.mxu0 0.0
        %3606 = vmatpush1.msra.mxu0 %v3487
        %3607 = vmatprep.subr.mxu0 0.0
        %3608 = vmatpush1.msra.mxu0 0.0
        %3609 = vmatprep.subr.mxu0 0.0
        %3610 = vmatpush1.msra.mxu0 0.0
        %3611 = vmatprep.subr.mxu0 0.0
        %3612 = vmatpush1.msra.mxu0 0.0
        %3613 = vmatprep.subr.mxu0 0.0
        %3614 = vmatpush1.msra.mxu0 0.0
        %3615 = vmatprep.subr.mxu0 0.0
        %3616 = vmatpush1.msra.mxu0 0.0
        %3617 = vmatprep.subr.mxu0 0.0
        %3618 = vmatpush1.msra.mxu0 0.0
        %3619 = vmatprep.subr.mxu0 0.0
        %3620 = vmatpush1.msra.mxu0 0.0
        %3621 = vmatprep.subr.mxu0 0.0
        %3622 = vmatpush1.msra.mxu0 0.0
        %3623 = vmatprep.subr.mxu0 0.0
        %3624 = vmatpush1.msra.mxu0 0.0
        %3625 = vmatprep.subr.mxu0 0.0
        %3626 = vmatpush1.msra.mxu0 0.0
        %3627 = vmatprep.subr.mxu0 0.0
        %3628 = vmatpush1.msra.mxu0 0.0
        %3629 = vmatprep.subr.mxu0 0.0
        %3630 = vmatpush1.msra.mxu0 0.0
        %3631 = vmatprep.subr.mxu0 0.0
        %3632 = vmatpush1.msra.mxu0 0.0
        %3633 = vmatprep.subr.mxu0 0.0
        %3634 = vmatpush1.msra.mxu0 0.0
        %3635 = vmatprep.subr.mxu0 0.0
        %3636 = vmatpush1.msra.mxu0 0.0
        %3637 = vmatprep.subr.mxu0 0.0
        %3638 = vmatpush1.msra.mxu0 0.0
        %3639 = vmatprep.subr.mxu0 0.0
        %3640 = vmatpush1.msra.mxu0 0.0
        %3641 = vmatprep.subr.mxu0 0.0
        %3642 = vmatpush1.msra.mxu0 0.0
        %3643 = vmatprep.subr.mxu0 0.0
        %3644 = vmatpush1.msra.mxu0 0.0
        %3645 = vmatprep.subr.mxu0 0.0
        %3646 = vmatpush1.msra.mxu0 0.0
        %3647 = vmatprep.subr.mxu0 0.0
        %3648 = vmatpush1.msra.mxu0 0.0
        %3649 = vmatprep.subr.mxu0 0.0
        %3650 = vmatpush1.msra.mxu0 0.0
        %3651 = vmatprep.subr.mxu0 0.0
        %3652 = vmatpush1.msra.mxu0 0.0
        %3653 = vmatprep.subr.mxu0 0.0
        %3654 = vmatpush1.msra.mxu0 0.0
        %3655 = vmatprep.mubr.f32.mxu0 0.0
        %3656 = vmatmul.mubr.f32.gmra.mrb[0].mxu0 %v3496
        %v3657 = vpop.f32.mrb[0].mxu0
        %v3658 = vadd.f32 %v3493, %v3657
        %v3659 = vpop.f32.mrb[0].mxu0
        %3660 = vmatprep.mubr.f32.mxu0 0.0
        %3661 = vmatmul.mubr.f32.gmra.mrb[0].mxu0 %v3499
        %v3662 = vpop.f32.mrb[0].mxu0
        %v3663 = vadd.f32 %v3493, %v3662
        %v3664 = vpop.f32.mrb[0].mxu0
        %3665 = vmatprep.mubr.f32.mxu0 0.0
        %3666 = vmatmul.mubr.f32.gmra.mrb[0].mxu0 %v3502
        %v3667 = vpop.f32.mrb[0].mxu0
        %v3668 = vadd.f32 %v3493, %v3667
        %v3669 = vpop.f32.mrb[0].mxu0
        %3670 = vmatprep.mubr.f32.mxu0 0.0
        %3671 = vmatmul.mubr.f32.gmra.mrb[0].mxu0 %v3505
        %v3672 = vpop.f32.mrb[0].mxu0
        %v3673 = vadd.f32 %v3493, %v3672
        %v3674 = vpop.f32.mrb[0].mxu0
        %3675 = vmatprep.mubr.f32.mxu0 0.0
        %3676 = vmatmul.mubr.f32.gmra.mrb[0].mxu0 %v3508
        %v3677 = vpop.f32.mrb[0].mxu0
        %v3678 = vadd.f32 %v3493, %v3677
        %v3679 = vpop.f32.mrb[0].mxu0
        %3680 = vmatprep.mubr.f32.mxu0 0.0
        %3681 = vmatmul.mubr.f32.gmra.mrb[0].mxu0 %v3511
        %v3682 = vpop.f32.mrb[0].mxu0
        %v3683 = vadd.f32 %v3493, %v3682
        %v3684 = vpop.f32.mrb[0].mxu0
        %3685 = vmatprep.mubr.f32.mxu0 0.0
        %3686 = vmatmul.mubr.f32.gmra.mrb[0].mxu0 %v3514
        %v3687 = vpop.f32.mrb[0].mxu0
        %v3688 = vadd.f32 %v3493, %v3687
        %v3689 = vpop.f32.mrb[0].mxu0
        %3690 = vmatprep.mubr.f32.mxu0 0.0
        %3691 = vmatmul.mubr.f32.gmra.mrb[0].mxu0 %v3517
        %v3692 = vpop.f32.mrb[0].mxu0
        %v3693 = vadd.f32 %v3493, %v3692
        %v3694 = vpop.f32.mrb[0].mxu0
        %3695 = vmatprep.mubr.f32.mxu0 0.0
        %3696 = vmatmul.mubr.f32.gmra.mrb[0].mxu0 %v3520
        %v3697 = vpop.f32.mrb[0].mxu0
        %v3698 = vadd.f32 %v3493, %v3697
        %v3699 = vpop.f32.mrb[0].mxu0
        %3700 = vmatprep.mubr.f32.mxu0 0.0
        %3701 = vmatmul.mubr.f32.gmra.mrb[0].mxu0 %v3523
        %v3702 = vpop.f32.mrb[0].mxu0
        %v3703 = vadd.f32 %v3493, %v3702
        %v3704 = vpop.f32.mrb[0].mxu0
        %3705 = vmatprep.mubr.f32.mxu0 0.0
        %3706 = vmatmul.mubr.f32.gmra.mrb[0].mxu0 %v3526
        %v3707 = vpop.f32.mrb[0].mxu0
        %v3708 = vadd.f32 %v3493, %v3707
        %v3709 = vpop.f32.mrb[0].mxu0
        %3710 = vmatprep.mubr.f32.mxu0 0.0
        %3711 = vmatmul.mubr.f32.gmra.mrb[0].mxu0 %v3529
        %v3712 = vpop.f32.mrb[0].mxu0
        %v3713 = vadd.f32 %v3493, %v3712
        %v3714 = vpop.f32.mrb[0].mxu0
        %3715 = vmatprep.mubr.f32.mxu0 0.0
        %3716 = vmatmul.mubr.f32.gmra.mrb[0].mxu0 %v3532
        %v3717 = vpop.f32.mrb[0].mxu0
        %v3718 = vadd.f32 %v3493, %v3717
        %v3719 = vpop.f32.mrb[0].mxu0
        %3720 = vmatprep.mubr.f32.mxu0 0.0
        %3721 = vmatmul.mubr.f32.gmra.mrb[0].mxu0 %v3535
        %v3722 = vpop.f32.mrb[0].mxu0
        %v3723 = vadd.f32 %v3493, %v3722
        %v3724 = vpop.f32.mrb[0].mxu0
        %3725 = vmatprep.mubr.f32.mxu0 0.0
        %3726 = vmatmul.mubr.f32.gmra.mrb[0].mxu0 %v3538
        %v3727 = vpop.f32.mrb[0].mxu0
        %v3728 = vadd.f32 %v3493, %v3727
        %v3729 = vpop.f32.mrb[0].mxu0
        %3730 = vmatprep.mubr.f32.mxu0 0.0
        %3731 = vmatmul.mubr.f32.gmra.mrb[0].mxu0 %v3541
        %v3732 = vpop.f32.mrb[0].mxu0
        %v3733 = vadd.f32 %v3493, %v3732
        %v3734 = vpop.f32.mrb[0].mxu0
        %3735 = vmatprep.mubr.f32.mxu0 0.0
        %3736 = vmatmul.mubr.f32.gmra.mrb[0].mxu0 %v3544
        %v3737 = vpop.f32.mrb[0].mxu0
        %v3738 = vadd.f32 %v3493, %v3737
        %v3739 = vpop.f32.mrb[0].mxu0
        %3740 = vmatprep.mubr.f32.mxu0 0.0
        %3741 = vmatmul.mubr.f32.gmra.mrb[0].mxu0 %v3547
        %v3742 = vpop.f32.mrb[0].mxu0
        %v3743 = vadd.f32 %v3493, %v3742
        %v3744 = vpop.f32.mrb[0].mxu0
        %3745 = vmatprep.mubr.f32.mxu0 0.0
        %3746 = vmatmul.mubr.f32.gmra.mrb[0].mxu0 %v3550
        %v3747 = vpop.f32.mrb[0].mxu0
        %v3748 = vadd.f32 %v3493, %v3747
        %v3749 = vpop.f32.mrb[0].mxu0
        %3750 = vmatprep.mubr.f32.mxu0 0.0
        %3751 = vmatmul.mubr.f32.gmra.mrb[0].mxu0 %v3553
        %v3752 = vpop.f32.mrb[0].mxu0
        %v3753 = vadd.f32 %v3493, %v3752
        %v3754 = vpop.f32.mrb[0].mxu0
        %3755 = vmatprep.mubr.f32.mxu0 0.0
        %3756 = vmatmul.mubr.f32.gmra.mrb[0].mxu0 %v3556
        %v3757 = vpop.f32.mrb[0].mxu0
        %v3758 = vadd.f32 %v3493, %v3757
        %v3759 = vpop.f32.mrb[0].mxu0
        %3760 = vmatprep.mubr.f32.mxu0 0.0
        %3761 = vmatmul.mubr.f32.gmra.mrb[0].mxu0 %v3559
        %v3762 = vpop.f32.mrb[0].mxu0
        %v3763 = vadd.f32 %v3493, %v3762
        %v3764 = vpop.f32.mrb[0].mxu0
        %3765 = vmatprep.mubr.f32.mxu0 0.0
        %3766 = vmatmul.mubr.f32.gmra.mrb[0].mxu0 %v3562
        %v3767 = vpop.f32.mrb[0].mxu0
        %v3768 = vadd.f32 %v3493, %v3767
        %v3769 = vpop.f32.mrb[0].mxu0
        %3770 = vmatprep.mubr.f32.mxu0 0.0
        %3771 = vmatmul.mubr.f32.gmra.mrb[0].mxu0 %v3565
        %v3772 = vpop.f32.mrb[0].mxu0
        %v3773 = vadd.f32 %v3493, %v3772
        %v3774 = vpop.f32.mrb[0].mxu0
        %3775 = vmatprep.mubr.f32.mxu0 0.0
        %3776 = vmatmul.mubr.f32.gmra.mrb[0].mxu0 %v3568
        %v3777 = vpop.f32.mrb[0].mxu0
        %v3778 = vadd.f32 %v3493, %v3777
        %v3779 = vpop.f32.mrb[0].mxu0
        %3780 = vmatprep.mubr.f32.mxu0 0.0
        %3781 = vmatmul.mubr.f32.gmra.mrb[0].mxu0 %v3571
        %v3782 = vpop.f32.mrb[0].mxu0
        %v3783 = vadd.f32 %v3493, %v3782
        %v3784 = vpop.f32.mrb[0].mxu0
        %3785 = vmatprep.mubr.f32.mxu0 0.0
        %3786 = vmatmul.mubr.f32.gmra.mrb[0].mxu0 %v3574
        %v3787 = vpop.f32.mrb[0].mxu0
        %v3788 = vadd.f32 %v3493, %v3787
        %v3789 = vpop.f32.mrb[0].mxu0
        %3790 = vmatprep.mubr.f32.mxu0 0.0
        %3791 = vmatmul.mubr.f32.gmra.mrb[0].mxu0 %v3577
        %v3792 = vpop.f32.mrb[0].mxu0
        %v3793 = vadd.f32 %v3493, %v3792
        %v3794 = vpop.f32.mrb[0].mxu0
        %3795 = vmatprep.mubr.f32.mxu0 0.0
        %3796 = vmatmul.mubr.f32.gmra.mrb[0].mxu0 %v3580
        %v3797 = vpop.f32.mrb[0].mxu0
        %v3798 = vadd.f32 %v3493, %v3797
        %v3799 = vpop.f32.mrb[0].mxu0
        %3800 = vmatprep.mubr.f32.mxu0 0.0
        %3801 = vmatmul.mubr.f32.gmra.mrb[0].mxu0 %v3583
        %v3802 = vpop.f32.mrb[0].mxu0
        %v3803 = vadd.f32 %v3493, %v3802
        %v3804 = vpop.f32.mrb[0].mxu0
        %3805 = vmatprep.mubr.f32.mxu0 0.0
        %3806 = vmatmul.mubr.f32.gmra.mrb[0].mxu0 %v3586
        %v3807 = vpop.f32.mrb[0].mxu0
        %v3808 = vadd.f32 %v3493, %v3807
        %v3809 = vpop.f32.mrb[0].mxu0
        %3810 = vmatprep.mubr.f32.mxu0 0.0
        %3811 = vmatmul.mubr.f32.gmra.mrb[0].mxu0 %v3589
        %v3812 = vpop.f32.mrb[0].mxu0
        %v3813 = vadd.f32 %v3493, %v3812
        %v3814 = vpop.f32.mrb[0].mxu0
        %3815 = vdwg.mxu0
        %3816 = vxpose.xlu0.b32.start [1/16] %v3658, 128
        %3817 = vxpose.xlu0.b32.cont [2/16] %v3663, 128
        %3818 = vxpose.xlu0.b32.cont [3/16] %v3668, 128
        %3819 = vxpose.xlu0.b32.cont [4/16] %v3673, 128
        %3820 = vxpose.xlu0.b32.cont [5/16] %v3678, 128
        %3821 = vxpose.xlu0.b32.cont [6/16] %v3683, 128
        %3822 = vxpose.xlu0.b32.cont [7/16] %v3688, 128
        %3823 = vxpose.xlu0.b32.cont [8/16] %v3693, 128
        %3824 = vxpose.xlu0.b32.cont [9/16] %v3698, 128
        %3825 = vxpose.xlu0.b32.cont [10/16] %v3703, 128
        %3826 = vxpose.xlu0.b32.cont [11/16] %v3708, 128
        %3827 = vxpose.xlu0.b32.cont [12/16] %v3713, 128
        %3828 = vxpose.xlu0.b32.cont [13/16] %v3718, 128
        %3829 = vxpose.xlu0.b32.cont [14/16] %v3723, 128
        %3830 = vxpose.xlu0.b32.cont [15/16] %v3728, 128
        %3831 = vxpose.xlu0.b32.end [16/16] %v3733, 128
        %v3832 = vpop.trf.xlu0
        %v3833 = vpop.trf.xlu0
        %v3834 = vpop.trf.xlu0
        %v3835 = vpop.trf.xlu0
        %v3836 = vpop.trf.xlu0
        %v3837 = vpop.trf.xlu0
        %v3838 = vpop.trf.xlu0
        %v3839 = vpop.trf.xlu0
        %v3840 = vpop.trf.xlu0
        %v3841 = vpop.trf.xlu0
        %v3842 = vpop.trf.xlu0
        %v3843 = vpop.trf.xlu0
        %v3844 = vpop.trf.xlu0
        %v3845 = vpop.trf.xlu0
        %v3846 = vpop.trf.xlu0
        %v3847 = vpop.trf.xlu0
        %3848 = vxpose.xlu0.b32.start [1/16] %v3738, 128
        %3849 = vxpose.xlu0.b32.cont [2/16] %v3743, 128
        %3850 = vxpose.xlu0.b32.cont [3/16] %v3748, 128
        %3851 = vxpose.xlu0.b32.cont [4/16] %v3753, 128
        %3852 = vxpose.xlu0.b32.cont [5/16] %v3758, 128
        %3853 = vxpose.xlu0.b32.cont [6/16] %v3763, 128
        %3854 = vxpose.xlu0.b32.cont [7/16] %v3768, 128
        %3855 = vxpose.xlu0.b32.cont [8/16] %v3773, 128
        %3856 = vxpose.xlu0.b32.cont [9/16] %v3778, 128
        %3857 = vxpose.xlu0.b32.cont [10/16] %v3783, 128
        %3858 = vxpose.xlu0.b32.cont [11/16] %v3788, 128
        %3859 = vxpose.xlu0.b32.cont [12/16] %v3793, 128
        %3860 = vxpose.xlu0.b32.cont [13/16] %v3798, 128
        %3861 = vxpose.xlu0.b32.cont [14/16] %v3803, 128
        %3862 = vxpose.xlu0.b32.cont [15/16] %v3808, 128
        %3863 = vxpose.xlu0.b32.end [16/16] %v3813, 128
        %v3864 = vpop.trf.xlu0
        %v3865 = vpop.trf.xlu0
        %v3866 = vpop.trf.xlu0
        %v3867 = vpop.trf.xlu0
        %v3868 = vpop.trf.xlu0
        %v3869 = vpop.trf.xlu0
        %v3870 = vpop.trf.xlu0
        %v3871 = vpop.trf.xlu0
        %v3872 = vpop.trf.xlu0
        %v3873 = vpop.trf.xlu0
        %v3874 = vpop.trf.xlu0
        %v3875 = vpop.trf.xlu0
        %v3876 = vpop.trf.xlu0
        %v3877 = vpop.trf.xlu0
        %v3878 = vpop.trf.xlu0
        %v3879 = vpop.trf.xlu0
        %3880 = vst [vmem:[%s259] sm:$0xff] %v3832
        %3881 = vst [vmem:[%s259 + $0x8] sm:$0xff] %v3864
        %3882 = vst [vmem:[%s259 + $0x10] sm:$0xff] %v3833
        %3883 = vst [vmem:[%s259 + $0x18] sm:$0xff] %v3865
        %3884 = vst [vmem:[%s259 + $0x20] sm:$0xff] %v3834
        %3885 = vst [vmem:[%s259 + $0x28] sm:$0xff] %v3866
        %3886 = vst [vmem:[%s259 + $0x30] sm:$0xff] %v3835
        %3887 = vst [vmem:[%s259 + $0x38] sm:$0xff] %v3867
        %3888 = vst [vmem:[%s259 + $0x40] sm:$0xff] %v3836
        %3889 = vst [vmem:[%s259 + $0x48] sm:$0xff] %v3868
        %3890 = vst [vmem:[%s259 + $0x50] sm:$0xff] %v3837
        %3891 = vst [vmem:[%s259 + $0x58] sm:$0xff] %v3869
        %3892 = vst [vmem:[%s259 + $0x60] sm:$0xff] %v3838
        %3893 = vst [vmem:[%s259 + $0x68] sm:$0xff] %v3870
        %3894 = vst [vmem:[%s259 + $0x70] sm:$0xff] %v3839
        %3895 = vst [vmem:[%s259 + $0x78] sm:$0xff] %v3871
        %s3896 = sand.u32 %s164, 1
        %s3897 = scalar_lea.sflag [#allocation3], %s3896
        %s3898 = sand.u32 %s164, 1
        %s3899 = smul.addr %s3898, 128
        %s3900 = scalar_lea.vmem [#allocation2], %s3899
        // Predicated region
        $region45: #{tpu_custom_call.1} parent=43 // pred_check
          %p3901 = pneg %p174
        $region46: #{tpu_custom_call.1} parent=43 // pred_check_branch
          %3903 = sbr.rel (%p3901) target = $region48
        $region47: #{tpu_custom_call.1} parent=43 // pred_region
          %s3905 = ssub.s32 2048, 2048
          %3906 = vsyncadd %s3897, %s3905
          %s3907 = smul.addr %s20, 16
          %s3908 = smul.addr %s3907, 128
          %s3909 = scalar_lea.hbm %s6, %s3908
          %s3910 = sshll.u32 %s3900, 4
          %s3911 = int_to_ptr.vmem [resolvable:$true] %s3910
          %3916 = dma.vmem_to_hbm [thread:$0]  %s3911, 2048, %s3909, %s3897, 256, 256, 16
        $region48: #{tpu_custom_call.1} parent=43 // pred_fallthru
          _
      $region44: #{tpu_custom_call.1} parent=5 // pred_fallthru
        _
      %p3917 = scmp.le.s32.totalorder 2, %s15
      // Predicated region
      $region49: #{tpu_custom_call.1} parent=5 // pred_check
        %p3918 = pneg %p3917
      $region50: #{tpu_custom_call.1} parent=5 // pred_check_branch
        %3920 = sbr.rel (%p3918) target = $region52
      $region51: #{tpu_custom_call.1} parent=5 // pred_region
        %s3921 = ssub.s32 %s15, 2
        // Predicated region
        $region53: #{tpu_custom_call.1} parent=51 // pred_check
          %p3922 = pneg %p180
        $region54: #{tpu_custom_call.1} parent=51 // pred_check_branch
          %3924 = sbr.rel (%p3922) target = $region56
        $region55: #{tpu_custom_call.1} parent=51 // pred_region
          %s3925 = sand.u32 %s165, 1
          %s3926 = scalar_lea.sflag [#allocation3], %s3925
          %s3927 = sand.u32 %s165, 1
          %s3928 = smul.addr %s3927, 128
          %s3929 = scalar_lea.vmem [#allocation2], %s3928
          %3930 = dma.done %s3926, 2048
        $region56: #{tpu_custom_call.1} parent=51 // pred_fallthru
          _
      $region52: #{tpu_custom_call.1} parent=5 // pred_fallthru
        _
    $region6: #{tpu_custom_call.1} parent=1 // loop_footer
      %s19 = sadd.s32 1, %s15
    $region7: #{tpu_custom_call.1} parent=1 // loop_footer_branch
      %14 = sbr.rel target = $region3
    $region8: #{tpu_custom_call.1} parent=1 // loop_exit
      _
    %3931 = vsyncpa [#allocation3], 1
    %s3932 = scalar_lea.sflag [#allocation3], 1
    %3933 = vsyncpa %s3932, 1

</llo_original>
